<compile_context>
chip_gen: v7x
topology: tpu7x:2x2x1
jax: 0.10.0
libtpu: 0.0.40
codegen_flags: <defaults>
</compile_context>

<pallas_src>
import math

import jax
import jax.numpy as jnp
from jax.experimental import pallas as pl
from jax.experimental.pallas import tpu as pltpu

GN_EPS = 1e-5
_SQRT_2_OVER_PI = 0.7978845608028654
KSIZE = 7


def _gelu(x):
    # TODO(synk): PyTorch nn.GELU() defaults to the exact erf form; the tanh
    # approximation is used here (erf has no guaranteed Mosaic lowering);
    # max abs deviation vs erf-GELU is ~1e-3.
    return 0.5 * x * (1.0 + jnp.tanh(_SQRT_2_OVER_PI * (x + 0.044715 * x * x * x)))


# ------------------------------ Pallas kernel ------------------------------

def _conv1d_strided_im2col(h_ref, w_ref, b_ref, *, ksize, stride):
    """Valid 1-D conv reading rows stride*i+k straight from a VMEM scratch ref.

    h_ref: (L, F) f32 scratch; w_ref: (ksize*F, F) bf16 slab; b_ref: (1, F) f32.
    Returns (l_out, F) f32 — only the strided output rows are ever built, so the
    MXU does no wasted work and there is no post-conv selection matmul.
    """
    L = h_ref.shape[0]
    l_out = (L - ksize) // stride + 1
    if stride == 1:
        cols = [h_ref[pl.ds(k, l_out), :] for k in range(ksize)]
    else:
        # Stride folded into the im2col row gather (strided sublane load).
        cols = [h_ref[pl.ds(k, l_out, stride=stride), :] for k in range(ksize)]
    x = jnp.concatenate(cols, axis=-1).astype(jnp.bfloat16)      # (l_out, ksize*F)
    return jnp.dot(x, w_ref[...], preferred_element_type=jnp.float32) + b_ref[...]


def _path(x_ref, w1_ref, b1_ref, wc1_ref, bc1_ref, g_ref, beta_ref,
          wc2_ref, bc2_ref, o_ref, h_scr, y_scr, *, stride):
    """1x1 conv -> GELU -> conv(7,stride) -> GroupNorm(C groups) -> GELU
       -> conv(7,stride) -> GELU for one batch element."""
    x = x_ref[0]                                                  # (L, C_in) f32
    # 1x1 Conv1d == per-position linear projection (bf16 operands, f32 accum).
    h = jnp.dot(x.astype(jnp.bfloat16), w1_ref[...],
                preferred_element_type=jnp.float32) + b1_ref[...]
    h_scr[...] = _gelu(h)                                         # (L, F) f32

    y = _conv1d_strided_im2col(h_scr, wc1_ref, bc1_ref, ksize=KSIZE, stride=stride)
    # GroupNorm with num_groups == num_channels: per-channel stats over length,
    # computed in a single pass (sum and sum-of-squares), all in f32.
    n = jnp.float32(y.shape[0])
    mean = jnp.sum(y, axis=0, keepdims=True) / n
    var = jnp.sum(y * y, axis=0, keepdims=True) / n - mean * mean
    y = (y - mean) * jax.lax.rsqrt(var + GN_EPS)
    y_scr[...] = _gelu(y * g_ref[...] + beta_ref[...])            # (l1, F) f32

    z = _conv1d_strided_im2col(y_scr, wc2_ref, bc2_ref, ksize=KSIZE, stride=stride)
    o_ref[0] = _gelu(z)


def _fused_kernel(a_ref, t_ref,
                  a_w1, a_b1, a_wc1, a_bc1, a_g, a_be, a_wc2, a_bc2,
                  t_w1, t_b1, t_wc1, t_bc1, t_g, t_be, t_wc2, t_bc2,
                  a_out, t_out,
                  a_h, a_y, t_h, t_y):
    """Both non-trivial paths of the module for one batch element per grid step."""
    _path(a_ref, a_w1, a_b1, a_wc1, a_bc1, a_g, a_be, a_wc2, a_bc2,
          a_out, a_h, a_y, stride=3)
    _path(t_ref, t_w1, t_b1, t_wc1, t_bc1, t_g, t_be, t_wc2, t_bc2,
          t_out, t_h, t_y, stride=1)


# ------------------------------ Parameter packing ------------------------------

def pack_path_params(p):
    """One-time repack of PyTorch-layout weights into lane-dense MXU slabs.

    Hoisted out of the forward so the transposes/casts never sit on the
    per-call critical path.  Matmul weights are bf16; biases / GN affine f32.
    """
    f = p["proj_w"].shape[0]
    k = p["c1_w"].shape[2]
    pack_conv = lambda w: (jnp.transpose(w, (2, 1, 0))
                           .reshape(k * f, f).astype(jnp.bfloat16))   # (kF, F)
    row = lambda v: v.reshape(1, f).astype(jnp.float32)
    return dict(
        w1=jnp.transpose(p["proj_w"][:, :, 0]).astype(jnp.bfloat16),  # (C_in, F)
        b1=row(p["proj_b"]),
        wc1=pack_conv(p["c1_w"]), bc1=row(p["c1_b"]),
        gn_g=row(p["gn_g"]), gn_b=row(p["gn_b"]),
        wc2=pack_conv(p["c2_w"]), bc2=row(p["c2_b"]),
    )


# ------------------------------ Pallas wrapper ------------------------------

def multimodal_downsampler_forward(x, packed, *, ksize=KSIZE):
    """Forward of MultimodalDownsamplerS32Mean (features_only=False).

    x = (a, v, t) with a:(B,L_A,1024), v passthrough, t:(B,L_T,1024).
    packed = {"a": pack_path_params(...), "t": pack_path_params(...)}.
    """
    a, v, t = x
    pa, pt = packed["a"], packed["t"]
    B, L_A, c_in = a.shape
    _, L_T, _ = t.shape
    f = pa["w1"].shape[1]
    la1 = (L_A - ksize) // 3 + 1
    la2 = (la1 - ksize) // 3 + 1
    lt1 = L_T - (ksize - 1)
    lt2 = lt1 - (ksize - 1)

    def rep(shape):
        n = len(shape)
        return pl.BlockSpec(shape, lambda b, n=n: (0,) * n)

    def w_specs():
        return [rep((c_in, f)), rep((1, f)), rep((ksize * f, f)), rep((1, f)),
                rep((1, f)), rep((1, f)), rep((ksize * f, f)), rep((1, f))]

    a_out, t_out = pl.pallas_call(
        _fused_kernel,
        out_shape=(jax.ShapeDtypeStruct((B, la2, f), jnp.float32),
                   jax.ShapeDtypeStruct((B, lt2, f), jnp.float32)),
        grid=(B,),
        in_specs=[pl.BlockSpec((1, L_A, c_in), lambda b: (b, 0, 0)),
                  pl.BlockSpec((1, L_T, c_in), lambda b: (b, 0, 0))]
                 + w_specs() + w_specs(),
        out_specs=(pl.BlockSpec((1, la2, f), lambda b: (b, 0, 0)),
                   pl.BlockSpec((1, lt2, f), lambda b: (b, 0, 0))),
        scratch_shapes=[pltpu.VMEM((L_A, f), jnp.float32),   # audio h
                        pltpu.VMEM((la1, f), jnp.float32),   # audio y
                        pltpu.VMEM((L_T, f), jnp.float32),   # text h
                        pltpu.VMEM((lt1, f), jnp.float32)],  # text y
        compiler_params=pltpu.CompilerParams(
            dimension_semantics=("parallel",),
            vmem_limit_bytes=32 * 1024 * 1024),
    )(a, t,
      pa["w1"], pa["b1"], pa["wc1"], pa["bc1"], pa["gn_g"], pa["gn_b"],
      pa["wc2"], pa["bc2"],
      pt["w1"], pt["b1"], pt["wc1"], pt["bc1"], pt["gn_g"], pt["gn_b"],
      pt["wc2"], pt["bc2"])

    return a_out, v, t_out            # v path is nn.Identity


# ------------------------------ Reference (pure JAX, f32) ------------------------------

def _conv1d_ref(x_ncl, w, b, stride):
    y = jax.lax.conv_general_dilated(
        x_ncl, w, window_strides=(stride,), padding="VALID",
        dimension_numbers=("NCH", "OIH", "NCH"))
    return y + b[None, :, None]


def downsampler_path_ref(x, p, *, stride):
    h = jnp.transpose(x, (0, 2, 1))                       # (B, C_in, L)
    h = _gelu(_conv1d_ref(h, p["proj_w"], p["proj_b"], 1))
    h = _conv1d_ref(h, p["c1_w"], p["c1_b"], stride)
    mean = jnp.mean(h, axis=2, keepdims=True)
    var = jnp.mean((h - mean) ** 2, axis=2, keepdims=True)
    h = (h - mean) * jax.lax.rsqrt(var + GN_EPS)
    h = h * p["gn_g"][None, :, None] + p["gn_b"][None, :, None]
    h = _gelu(h)
    h = _gelu(_conv1d_ref(h, p["c2_w"], p["c2_b"], stride))
    return jnp.transpose(h, (0, 2, 1))                    # (B, L_out, F)


# ------------------------------ Parameters ------------------------------

def init_path_params(key, c_in, f, ksize):
    ks = jax.random.split(key, 8)

    def u(k, shape, fan_in):
        bound = 1.0 / math.sqrt(fan_in)
        return jax.random.uniform(k, shape, jnp.float32, -bound, bound)

    return dict(
        proj_w=u(ks[0], (f, c_in, 1), c_in),
        proj_b=u(ks[1], (f,), c_in),
        c1_w=u(ks[2], (f, f, ksize), f * ksize),
        c1_b=u(ks[3], (f,), f * ksize),
        gn_g=1.0 + 0.1 * jax.random.normal(ks[4], (f,), jnp.float32),
        gn_b=0.1 * jax.random.normal(ks[5], (f,), jnp.float32),
        c2_w=u(ks[6], (f, f, ksize), f * ksize),
        c2_b=u(ks[7], (f,), f * ksize),
    )


# ------------------------------ Main ------------------------------

if __name__ == "__main__":
    B = 2
    C_IN = 1024            # input channels hard-coded in the module's Conv1d(1024, ...)
    F = 128                # out_f_size (small, exactly lane-dense)
    K = 7
    L_A, L_V, L_T = 100, 12, 24

    root = jax.random.PRNGKey(0)
    k_in, k_pa, k_pt = jax.random.split(root, 3)
    ka, kv, kt = jax.random.split(k_in, 3)
    a = jax.random.normal(ka, (B, L_A, C_IN), jnp.float32)
    v = jax.random.normal(kv, (B, L_V, F), jnp.float32)
    t = jax.random.normal(kt, (B, L_T, C_IN), jnp.float32)

    params = {"a": init_path_params(k_pa, C_IN, F, K),
              "t": init_path_params(k_pt, C_IN, F, K)}
    # One-time weight packing (hoisted out of the forward path).
    packed = {"a": pack_path_params(params["a"]),
              "t": pack_path_params(params["t"])}
    packed = jax.tree_util.tree_map(jax.block_until_ready, packed)

    a_out, v_out, t_out = multimodal_downsampler_forward((a, v, t), packed)
    a_out = jax.block_until_ready(a_out)
    t_out = jax.block_until_ready(t_out)

    la1 = (L_A - K) // 3 + 1
    la2 = (la1 - K) // 3 + 1
    lt2 = L_T - 2 * (K - 1)
    assert a_out.shape == (B, la2, F), a_out.shape
    assert t_out.shape == (B, lt2, F), t_out.shape
    assert v_out.shape == v.shape

    a_ref = downsampler_path_ref(a, params["a"], stride=3)
    t_ref = downsampler_path_ref(t, params["t"], stride=1)

    assert bool(jnp.all(jnp.isfinite(a_out))) and bool(jnp.all(jnp.isfinite(t_out)))
    # Tolerance covers bf16 MXU operands (f32 accumulation) vs the f32 reference.
    assert jnp.allclose(a_out, a_ref, rtol=2e-2, atol=2e-2), (
        f"a path max abs diff {float(jnp.max(jnp.abs(a_out - a_ref)))}")
    assert jnp.allclose(t_out, t_ref, rtol=2e-2, atol=2e-2), (
        f"t path max abs diff {float(jnp.max(jnp.abs(t_out - t_ref)))}")
    assert bool(jnp.all(v_out == v))

    print("KERNEL_OK")
</pallas_src>

<mosaic_0001>
module attributes {stable_mosaic.version = 11 : i64} {
  func.func @_fused_kernel(%arg0: i32, %arg1: memref<1x100x1024xf32, #tpu.memory_space<vmem>>, %arg2: memref<1x24x1024xf32, #tpu.memory_space<vmem>>, %arg3: memref<1024x128xbf16, #tpu.memory_space<vmem>>, %arg4: memref<1x128xf32, #tpu.memory_space<vmem>>, %arg5: memref<896x128xbf16, #tpu.memory_space<vmem>>, %arg6: memref<1x128xf32, #tpu.memory_space<vmem>>, %arg7: memref<1x128xf32, #tpu.memory_space<vmem>>, %arg8: memref<1x128xf32, #tpu.memory_space<vmem>>, %arg9: memref<896x128xbf16, #tpu.memory_space<vmem>>, %arg10: memref<1x128xf32, #tpu.memory_space<vmem>>, %arg11: memref<1024x128xbf16, #tpu.memory_space<vmem>>, %arg12: memref<1x128xf32, #tpu.memory_space<vmem>>, %arg13: memref<896x128xbf16, #tpu.memory_space<vmem>>, %arg14: memref<1x128xf32, #tpu.memory_space<vmem>>, %arg15: memref<1x128xf32, #tpu.memory_space<vmem>>, %arg16: memref<1x128xf32, #tpu.memory_space<vmem>>, %arg17: memref<896x128xbf16, #tpu.memory_space<vmem>>, %arg18: memref<1x128xf32, #tpu.memory_space<vmem>>, %arg19: memref<1x9x128xf32, #tpu.memory_space<vmem>>, %arg20: memref<1x12x128xf32, #tpu.memory_space<vmem>>, %arg21: memref<100x128xf32, #tpu.memory_space<vmem>>, %arg22: memref<32x128xf32, #tpu.memory_space<vmem>>, %arg23: memref<24x128xf32, #tpu.memory_space<vmem>>, %arg24: memref<18x128xf32, #tpu.memory_space<vmem>>) attributes {dimension_semantics = [#tpu.dimension_semantics<parallel>], iteration_bounds = array<i64: 2>, scalar_prefetch = 0 : i64, scratch_operands = 4 : i64, tpu.core_type = #tpu.core_type<tc>, window_params = [{transform_indices = @transform_0, window_bounds = array<i64: 1, 100, 1024>}, {transform_indices = @transform_1, window_bounds = array<i64: 1, 24, 1024>}, {pipeline_mode = #tpu.pipeline_mode<synchronous>, transform_indices = @transform_2, window_bounds = array<i64: 1024, 128>}, {pipeline_mode = #tpu.pipeline_mode<synchronous>, transform_indices = @transform_3, window_bounds = array<i64: 1, 128>}, {pipeline_mode = #tpu.pipeline_mode<synchronous>, transform_indices = @transform_4, window_bounds = array<i64: 896, 128>}, {pipeline_mode = #tpu.pipeline_mode<synchronous>, transform_indices = @transform_5, window_bounds = array<i64: 1, 128>}, {pipeline_mode = #tpu.pipeline_mode<synchronous>, transform_indices = @transform_6, window_bounds = array<i64: 1, 128>}, {pipeline_mode = #tpu.pipeline_mode<synchronous>, transform_indices = @transform_7, window_bounds = array<i64: 1, 128>}, {pipeline_mode = #tpu.pipeline_mode<synchronous>, transform_indices = @transform_8, window_bounds = array<i64: 896, 128>}, {pipeline_mode = #tpu.pipeline_mode<synchronous>, transform_indices = @transform_9, window_bounds = array<i64: 1, 128>}, {pipeline_mode = #tpu.pipeline_mode<synchronous>, transform_indices = @transform_10, window_bounds = array<i64: 1024, 128>}, {pipeline_mode = #tpu.pipeline_mode<synchronous>, transform_indices = @transform_11, window_bounds = array<i64: 1, 128>}, {pipeline_mode = #tpu.pipeline_mode<synchronous>, transform_indices = @transform_12, window_bounds = array<i64: 896, 128>}, {pipeline_mode = #tpu.pipeline_mode<synchronous>, transform_indices = @transform_13, window_bounds = array<i64: 1, 128>}, {pipeline_mode = #tpu.pipeline_mode<synchronous>, transform_indices = @transform_14, window_bounds = array<i64: 1, 128>}, {pipeline_mode = #tpu.pipeline_mode<synchronous>, transform_indices = @transform_15, window_bounds = array<i64: 1, 128>}, {pipeline_mode = #tpu.pipeline_mode<synchronous>, transform_indices = @transform_16, window_bounds = array<i64: 896, 128>}, {pipeline_mode = #tpu.pipeline_mode<synchronous>, transform_indices = @transform_17, window_bounds = array<i64: 1, 128>}, {transform_indices = @transform_18, window_bounds = array<i64: 1, 9, 128>}, {transform_indices = @transform_19, window_bounds = array<i64: 1, 12, 128>}]} {
    %c0 = arith.constant 0 : index
    %c0_0 = arith.constant 0 : index
    %c0_1 = arith.constant 0 : index
    %0 = vector.load %arg1[%c0, %c0_0, %c0_1] : memref<1x100x1024xf32, #tpu.memory_space<vmem>>, vector<1x100x1024xf32>
    %1 = vector.shape_cast %0 : vector<1x100x1024xf32> to vector<100x1024xf32>
    %2 = arith.truncf %1 : vector<100x1024xf32> to vector<100x1024xbf16>
    %c0_2 = arith.constant 0 : index
    %c0_3 = arith.constant 0 : index
    %3 = vector.load %arg3[%c0_2, %c0_3] : memref<1024x128xbf16, #tpu.memory_space<vmem>>, vector<1024x128xbf16>
    %cst = arith.constant dense<0.000000e+00> : vector<100x128xf32>
    %4 = tpu.matmul %2, %3, %cst {dimension_numbers = #tpu.dot_dimension_numbers<[1], [0], [0], [1], [0, 0, 1, 1], [], []>} : vector<100x1024xbf16>, vector<1024x128xbf16>, vector<100x128xf32> -> vector<100x128xf32>
    %c0_4 = arith.constant 0 : index
    %c0_5 = arith.constant 0 : index
    %5 = vector.load %arg4[%c0_4, %c0_5] : memref<1x128xf32, #tpu.memory_space<vmem>>, vector<1x128xf32>
    %6 = vector.broadcast %5 : vector<1x128xf32> to vector<100x128xf32>
    %7 = arith.addf %4, %6 : vector<100x128xf32>
    %cst_6 = arith.constant 5.000000e-01 : f32
    %8 = vector.broadcast %cst_6 : f32 to vector<100x128xf32>
    %9 = arith.mulf %8, %7 : vector<100x128xf32>
    %cst_7 = arith.constant 4.471500e-02 : f32
    %10 = vector.broadcast %cst_7 : f32 to vector<100x128xf32>
    %11 = arith.mulf %10, %7 : vector<100x128xf32>
    %12 = arith.mulf %11, %7 : vector<100x128xf32>
    %13 = arith.mulf %12, %7 : vector<100x128xf32>
    %14 = arith.addf %7, %13 : vector<100x128xf32>
    %cst_8 = arith.constant 0.797884583 : f32
    %15 = vector.broadcast %cst_8 : f32 to vector<100x128xf32>
    %16 = arith.mulf %15, %14 : vector<100x128xf32>
    %17 = math.tanh %16 : vector<100x128xf32>
    %cst_9 = arith.constant 1.000000e+00 : f32
    %18 = vector.broadcast %cst_9 : f32 to vector<100x128xf32>
    %19 = arith.addf %18, %17 : vector<100x128xf32>
    %20 = arith.mulf %9, %19 : vector<100x128xf32>
    %c0_10 = arith.constant 0 : index
    %c0_11 = arith.constant 0 : index
    %21 = vector.load %arg21[%c0_10, %c0_11] : memref<100x128xf32, #tpu.memory_space<vmem>>, vector<100x128xf32>
    tpu.vector_store %arg21[%c0_10, %c0_11], %20 {strides = array<i32>} : memref<100x128xf32, #tpu.memory_space<vmem>>, vector<100x128xf32>,
    %c0_12 = arith.constant 0 : index
    %c0_13 = arith.constant 0 : index
    %22 = tpu.strided_load %arg21[%c0_12, %c0_13] {strides = array<i32: 3, 1>} : memref<100x128xf32, #tpu.memory_space<vmem>>, vector<32x128xf32>
    %c1 = arith.constant 1 : index
    %c0_14 = arith.constant 0 : index
    %23 = tpu.strided_load %arg21[%c1, %c0_14] {strides = array<i32: 3, 1>} : memref<100x128xf32, #tpu.memory_space<vmem>>, vector<32x128xf32>
    %c2 = arith.constant 2 : index
    %c0_15 = arith.constant 0 : index
    %24 = tpu.strided_load %arg21[%c2, %c0_15] {strides = array<i32: 3, 1>} : memref<100x128xf32, #tpu.memory_space<vmem>>, vector<32x128xf32>
    %c3 = arith.constant 3 : index
    %c0_16 = arith.constant 0 : index
    %25 = tpu.strided_load %arg21[%c3, %c0_16] {strides = array<i32: 3, 1>} : memref<100x128xf32, #tpu.memory_space<vmem>>, vector<32x128xf32>
    %c4 = arith.constant 4 : index
    %c0_17 = arith.constant 0 : index
    %26 = tpu.strided_load %arg21[%c4, %c0_17] {strides = array<i32: 3, 1>} : memref<100x128xf32, #tpu.memory_space<vmem>>, vector<32x128xf32>
    %c5 = arith.constant 5 : index
    %c0_18 = arith.constant 0 : index
    %27 = tpu.strided_load %arg21[%c5, %c0_18] {strides = array<i32: 3, 1>} : memref<100x128xf32, #tpu.memory_space<vmem>>, vector<32x128xf32>
    %c6 = arith.constant 6 : index
    %c0_19 = arith.constant 0 : index
    %28 = tpu.strided_load %arg21[%c6, %c0_19] {strides = array<i32: 3, 1>} : memref<100x128xf32, #tpu.memory_space<vmem>>, vector<32x128xf32>
    %29 = tpu.concatenate %22, %23, %24, %25, %26, %27, %28 in 1 : vector<32x128xf32>, vector<32x128xf32>, vector<32x128xf32>, vector<32x128xf32>, vector<32x128xf32>, vector<32x128xf32>, vector<32x128xf32> -> vector<32x896xf32>
    %30 = arith.truncf %29 : vector<32x896xf32> to vector<32x896xbf16>
    %c0_20 = arith.constant 0 : index
    %c0_21 = arith.constant 0 : index
    %31 = vector.load %arg5[%c0_20, %c0_21] : memref<896x128xbf16, #tpu.memory_space<vmem>>, vector<896x128xbf16>
    %cst_22 = arith.constant dense<0.000000e+00> : vector<32x128xf32>
    %32 = tpu.matmul %30, %31, %cst_22 {dimension_numbers = #tpu.dot_dimension_numbers<[1], [0], [0], [1], [0, 0, 1, 1], [], []>} : vector<32x896xbf16>, vector<896x128xbf16>, vector<32x128xf32> -> vector<32x128xf32>
    %c0_23 = arith.constant 0 : index
    %c0_24 = arith.constant 0 : index
    %33 = vector.load %arg6[%c0_23, %c0_24] : memref<1x128xf32, #tpu.memory_space<vmem>>, vector<1x128xf32>
    %34 = vector.broadcast %33 : vector<1x128xf32> to vector<32x128xf32>
    %35 = arith.addf %32, %34 : vector<32x128xf32>
    %cst_25 = arith.constant dense<0.000000e+00> : vector<128xf32>
    %36 = vector.multi_reduction <add>, %35, %cst_25 [0] : vector<32x128xf32> to vector<128xf32>
    %37 = vector.shape_cast %36 : vector<128xf32> to vector<1x128xf32>
    %cst_26 = arith.constant 3.200000e+01 : f32
    %38 = vector.broadcast %cst_26 : f32 to vector<1x128xf32>
    %39 = arith.divf %37, %38 : vector<1x128xf32>
    %40 = arith.mulf %35, %35 : vector<32x128xf32>
    %cst_27 = arith.constant dense<0.000000e+00> : vector<128xf32>
    %41 = vector.multi_reduction <add>, %40, %cst_27 [0] : vector<32x128xf32> to vector<128xf32>
    %42 = vector.shape_cast %41 : vector<128xf32> to vector<1x128xf32>
    %cst_28 = arith.constant 3.200000e+01 : f32
    %43 = vector.broadcast %cst_28 : f32 to vector<1x128xf32>
    %44 = arith.divf %42, %43 : vector<1x128xf32>
    %45 = arith.mulf %39, %39 : vector<1x128xf32>
    %46 = arith.subf %44, %45 : vector<1x128xf32>
    %47 = vector.broadcast %39 : vector<1x128xf32> to vector<32x128xf32>
    %48 = arith.subf %35, %47 : vector<32x128xf32>
    %cst_29 = arith.constant 9.99999974E-6 : f32
    %49 = vector.broadcast %cst_29 : f32 to vector<1x128xf32>
    %50 = arith.addf %46, %49 : vector<1x128xf32>
    %51 = math.rsqrt %50 : vector<1x128xf32>
    %52 = vector.broadcast %51 : vector<1x128xf32> to vector<32x128xf32>
    %53 = arith.mulf %48, %52 : vector<32x128xf32>
    %c0_30 = arith.constant 0 : index
    %c0_31 = arith.constant 0 : index
    %54 = vector.load %arg7[%c0_30, %c0_31] : memref<1x128xf32, #tpu.memory_space<vmem>>, vector<1x128xf32>
    %55 = vector.broadcast %54 : vector<1x128xf32> to vector<32x128xf32>
    %56 = arith.mulf %53, %55 : vector<32x128xf32>
    %c0_32 = arith.constant 0 : index
    %c0_33 = arith.constant 0 : index
    %57 = vector.load %arg8[%c0_32, %c0_33] : memref<1x128xf32, #tpu.memory_space<vmem>>, vector<1x128xf32>
    %58 = vector.broadcast %57 : vector<1x128xf32> to vector<32x128xf32>
    %59 = arith.addf %56, %58 : vector<32x128xf32>
    %cst_34 = arith.constant 5.000000e-01 : f32
    %60 = vector.broadcast %cst_34 : f32 to vector<32x128xf32>
    %61 = arith.mulf %60, %59 : vector<32x128xf32>
    %cst_35 = arith.constant 4.471500e-02 : f32
    %62 = vector.broadcast %cst_35 : f32 to vector<32x128xf32>
    %63 = arith.mulf %62, %59 : vector<32x128xf32>
    %64 = arith.mulf %63, %59 : vector<32x128xf32>
    %65 = arith.mulf %64, %59 : vector<32x128xf32>
    %66 = arith.addf %59, %65 : vector<32x128xf32>
    %cst_36 = arith.constant 0.797884583 : f32
    %67 = vector.broadcast %cst_36 : f32 to vector<32x128xf32>
    %68 = arith.mulf %67, %66 : vector<32x128xf32>
    %69 = math.tanh %68 : vector<32x128xf32>
    %cst_37 = arith.constant 1.000000e+00 : f32
    %70 = vector.broadcast %cst_37 : f32 to vector<32x128xf32>
    %71 = arith.addf %70, %69 : vector<32x128xf32>
    %72 = arith.mulf %61, %71 : vector<32x128xf32>
    %c0_38 = arith.constant 0 : index
    %c0_39 = arith.constant 0 : index
    %73 = vector.load %arg22[%c0_38, %c0_39] : memref<32x128xf32, #tpu.memory_space<vmem>>, vector<32x128xf32>
    tpu.vector_store %arg22[%c0_38, %c0_39], %72 {strides = array<i32>} : memref<32x128xf32, #tpu.memory_space<vmem>>, vector<32x128xf32>,
    %c0_40 = arith.constant 0 : index
    %c0_41 = arith.constant 0 : index
    %74 = tpu.strided_load %arg22[%c0_40, %c0_41] {strides = array<i32: 3, 1>} : memref<32x128xf32, #tpu.memory_space<vmem>>, vector<9x128xf32>
    %c1_42 = arith.constant 1 : index
    %c0_43 = arith.constant 0 : index
    %75 = tpu.strided_load %arg22[%c1_42, %c0_43] {strides = array<i32: 3, 1>} : memref<32x128xf32, #tpu.memory_space<vmem>>, vector<9x128xf32>
    %c2_44 = arith.constant 2 : index
    %c0_45 = arith.constant 0 : index
    %76 = tpu.strided_load %arg22[%c2_44, %c0_45] {strides = array<i32: 3, 1>} : memref<32x128xf32, #tpu.memory_space<vmem>>, vector<9x128xf32>
    %c3_46 = arith.constant 3 : index
    %c0_47 = arith.constant 0 : index
    %77 = tpu.strided_load %arg22[%c3_46, %c0_47] {strides = array<i32: 3, 1>} : memref<32x128xf32, #tpu.memory_space<vmem>>, vector<9x128xf32>
    %c4_48 = arith.constant 4 : index
    %c0_49 = arith.constant 0 : index
    %78 = tpu.strided_load %arg22[%c4_48, %c0_49] {strides = array<i32: 3, 1>} : memref<32x128xf32, #tpu.memory_space<vmem>>, vector<9x128xf32>
    %c5_50 = arith.constant 5 : index
    %c0_51 = arith.constant 0 : index
    %79 = tpu.strided_load %arg22[%c5_50, %c0_51] {strides = array<i32: 3, 1>} : memref<32x128xf32, #tpu.memory_space<vmem>>, vector<9x128xf32>
    %c6_52 = arith.constant 6 : index
    %c0_53 = arith.constant 0 : index
    %80 = tpu.strided_load %arg22[%c6_52, %c0_53] {strides = array<i32: 3, 1>} : memref<32x128xf32, #tpu.memory_space<vmem>>, vector<9x128xf32>
    %81 = tpu.concatenate %74, %75, %76, %77, %78, %79, %80 in 1 : vector<9x128xf32>, vector<9x128xf32>, vector<9x128xf32>, vector<9x128xf32>, vector<9x128xf32>, vector<9x128xf32>, vector<9x128xf32> -> vector<9x896xf32>
    %82 = arith.truncf %81 : vector<9x896xf32> to vector<9x896xbf16>
    %c0_54 = arith.constant 0 : index
    %c0_55 = arith.constant 0 : index
    %83 = vector.load %arg9[%c0_54, %c0_55] : memref<896x128xbf16, #tpu.memory_space<vmem>>, vector<896x128xbf16>
    %cst_56 = arith.constant dense<0.000000e+00> : vector<9x128xf32>
    %84 = tpu.matmul %82, %83, %cst_56 {dimension_numbers = #tpu.dot_dimension_numbers<[1], [0], [0], [1], [0, 0, 1, 1], [], []>} : vector<9x896xbf16>, vector<896x128xbf16>, vector<9x128xf32> -> vector<9x128xf32>
    %c0_57 = arith.constant 0 : index
    %c0_58 = arith.constant 0 : index
    %85 = vector.load %arg10[%c0_57, %c0_58] : memref<1x128xf32, #tpu.memory_space<vmem>>, vector<1x128xf32>
    %86 = vector.broadcast %85 : vector<1x128xf32> to vector<9x128xf32>
    %87 = arith.addf %84, %86 : vector<9x128xf32>
    %cst_59 = arith.constant 5.000000e-01 : f32
    %88 = vector.broadcast %cst_59 : f32 to vector<9x128xf32>
    %89 = arith.mulf %88, %87 : vector<9x128xf32>
    %cst_60 = arith.constant 4.471500e-02 : f32
    %90 = vector.broadcast %cst_60 : f32 to vector<9x128xf32>
    %91 = arith.mulf %90, %87 : vector<9x128xf32>
    %92 = arith.mulf %91, %87 : vector<9x128xf32>
    %93 = arith.mulf %92, %87 : vector<9x128xf32>
    %94 = arith.addf %87, %93 : vector<9x128xf32>
    %cst_61 = arith.constant 0.797884583 : f32
    %95 = vector.broadcast %cst_61 : f32 to vector<9x128xf32>
    %96 = arith.mulf %95, %94 : vector<9x128xf32>
    %97 = math.tanh %96 : vector<9x128xf32>
    %cst_62 = arith.constant 1.000000e+00 : f32
    %98 = vector.broadcast %cst_62 : f32 to vector<9x128xf32>
    %99 = arith.addf %98, %97 : vector<9x128xf32>
    %100 = arith.mulf %89, %99 : vector<9x128xf32>
    %c0_63 = arith.constant 0 : index
    %c0_64 = arith.constant 0 : index
    %c0_65 = arith.constant 0 : index
    %101 = vector.load %arg19[%c0_63, %c0_64, %c0_65] : memref<1x9x128xf32, #tpu.memory_space<vmem>>, vector<1x9x128xf32>
    %102 = vector.shape_cast %101 : vector<1x9x128xf32> to vector<9x128xf32>
    %103 = vector.shape_cast %100 : vector<9x128xf32> to vector<1x9x128xf32>
    tpu.vector_store %arg19[%c0_63, %c0_64, %c0_65], %103 {strides = array<i32>} : memref<1x9x128xf32, #tpu.memory_space<vmem>>, vector<1x9x128xf32>,
    %c0_66 = arith.constant 0 : index
    %c0_67 = arith.constant 0 : index
    %c0_68 = arith.constant 0 : index
    %104 = vector.load %arg2[%c0_66, %c0_67, %c0_68] : memref<1x24x1024xf32, #tpu.memory_space<vmem>>, vector<1x24x1024xf32>
    %105 = vector.shape_cast %104 : vector<1x24x1024xf32> to vector<24x1024xf32>
    %106 = arith.truncf %105 : vector<24x1024xf32> to vector<24x1024xbf16>
    %c0_69 = arith.constant 0 : index
    %c0_70 = arith.constant 0 : index
    %107 = vector.load %arg11[%c0_69, %c0_70] : memref<1024x128xbf16, #tpu.memory_space<vmem>>, vector<1024x128xbf16>
    %cst_71 = arith.constant dense<0.000000e+00> : vector<24x128xf32>
    %108 = tpu.matmul %106, %107, %cst_71 {dimension_numbers = #tpu.dot_dimension_numbers<[1], [0], [0], [1], [0, 0, 1, 1], [], []>} : vector<24x1024xbf16>, vector<1024x128xbf16>, vector<24x128xf32> -> vector<24x128xf32>
    %c0_72 = arith.constant 0 : index
    %c0_73 = arith.constant 0 : index
    %109 = vector.load %arg12[%c0_72, %c0_73] : memref<1x128xf32, #tpu.memory_space<vmem>>, vector<1x128xf32>
    %110 = vector.broadcast %109 : vector<1x128xf32> to vector<24x128xf32>
    %111 = arith.addf %108, %110 : vector<24x128xf32>
    %cst_74 = arith.constant 5.000000e-01 : f32
    %112 = vector.broadcast %cst_74 : f32 to vector<24x128xf32>
    %113 = arith.mulf %112, %111 : vector<24x128xf32>
    %cst_75 = arith.constant 4.471500e-02 : f32
    %114 = vector.broadcast %cst_75 : f32 to vector<24x128xf32>
    %115 = arith.mulf %114, %111 : vector<24x128xf32>
    %116 = arith.mulf %115, %111 : vector<24x128xf32>
    %117 = arith.mulf %116, %111 : vector<24x128xf32>
    %118 = arith.addf %111, %117 : vector<24x128xf32>
    %cst_76 = arith.constant 0.797884583 : f32
    %119 = vector.broadcast %cst_76 : f32 to vector<24x128xf32>
    %120 = arith.mulf %119, %118 : vector<24x128xf32>
    %121 = math.tanh %120 : vector<24x128xf32>
    %cst_77 = arith.constant 1.000000e+00 : f32
    %122 = vector.broadcast %cst_77 : f32 to vector<24x128xf32>
    %123 = arith.addf %122, %121 : vector<24x128xf32>
    %124 = arith.mulf %113, %123 : vector<24x128xf32>
    %c0_78 = arith.constant 0 : index
    %c0_79 = arith.constant 0 : index
    %125 = vector.load %arg23[%c0_78, %c0_79] : memref<24x128xf32, #tpu.memory_space<vmem>>, vector<24x128xf32>
    tpu.vector_store %arg23[%c0_78, %c0_79], %124 {strides = array<i32>} : memref<24x128xf32, #tpu.memory_space<vmem>>, vector<24x128xf32>,
    %c0_80 = arith.constant 0 : index
    %c0_81 = arith.constant 0 : index
    %126 = vector.load %arg23[%c0_80, %c0_81] : memref<24x128xf32, #tpu.memory_space<vmem>>, vector<18x128xf32>
    %c1_82 = arith.constant 1 : index
    %c0_83 = arith.constant 0 : index
    %127 = vector.load %arg23[%c1_82, %c0_83] : memref<24x128xf32, #tpu.memory_space<vmem>>, vector<18x128xf32>
    %c2_84 = arith.constant 2 : index
    %c0_85 = arith.constant 0 : index
    %128 = vector.load %arg23[%c2_84, %c0_85] : memref<24x128xf32, #tpu.memory_space<vmem>>, vector<18x128xf32>
    %c3_86 = arith.constant 3 : index
    %c0_87 = arith.constant 0 : index
    %129 = vector.load %arg23[%c3_86, %c0_87] : memref<24x128xf32, #tpu.memory_space<vmem>>, vector<18x128xf32>
    %c4_88 = arith.constant 4 : index
    %c0_89 = arith.constant 0 : index
    %130 = vector.load %arg23[%c4_88, %c0_89] : memref<24x128xf32, #tpu.memory_space<vmem>>, vector<18x128xf32>
    %c5_90 = arith.constant 5 : index
    %c0_91 = arith.constant 0 : index
    %131 = vector.load %arg23[%c5_90, %c0_91] : memref<24x128xf32, #tpu.memory_space<vmem>>, vector<18x128xf32>
    %c6_92 = arith.constant 6 : index
    %c0_93 = arith.constant 0 : index
    %132 = vector.load %arg23[%c6_92, %c0_93] : memref<24x128xf32, #tpu.memory_space<vmem>>, vector<18x128xf32>
    %133 = tpu.concatenate %126, %127, %128, %129, %130, %131, %132 in 1 : vector<18x128xf32>, vector<18x128xf32>, vector<18x128xf32>, vector<18x128xf32>, vector<18x128xf32>, vector<18x128xf32>, vector<18x128xf32> -> vector<18x896xf32>
    %134 = arith.truncf %133 : vector<18x896xf32> to vector<18x896xbf16>
    %c0_94 = arith.constant 0 : index
    %c0_95 = arith.constant 0 : index
    %135 = vector.load %arg13[%c0_94, %c0_95] : memref<896x128xbf16, #tpu.memory_space<vmem>>, vector<896x128xbf16>
    %cst_96 = arith.constant dense<0.000000e+00> : vector<18x128xf32>
    %136 = tpu.matmul %134, %135, %cst_96 {dimension_numbers = #tpu.dot_dimension_numbers<[1], [0], [0], [1], [0, 0, 1, 1], [], []>} : vector<18x896xbf16>, vector<896x128xbf16>, vector<18x128xf32> -> vector<18x128xf32>
    %c0_97 = arith.constant 0 : index
    %c0_98 = arith.constant 0 : index
    %137 = vector.load %arg14[%c0_97, %c0_98] : memref<1x128xf32, #tpu.memory_space<vmem>>, vector<1x128xf32>
    %138 = vector.broadcast %137 : vector<1x128xf32> to vector<18x128xf32>
    %139 = arith.addf %136, %138 : vector<18x128xf32>
    %cst_99 = arith.constant dense<0.000000e+00> : vector<128xf32>
    %140 = vector.multi_reduction <add>, %139, %cst_99 [0] : vector<18x128xf32> to vector<128xf32>
    %141 = vector.shape_cast %140 : vector<128xf32> to vector<1x128xf32>
    %cst_100 = arith.constant 1.800000e+01 : f32
    %142 = vector.broadcast %cst_100 : f32 to vector<1x128xf32>
    %143 = arith.divf %141, %142 : vector<1x128xf32>
    %144 = arith.mulf %139, %139 : vector<18x128xf32>
    %cst_101 = arith.constant dense<0.000000e+00> : vector<128xf32>
    %145 = vector.multi_reduction <add>, %144, %cst_101 [0] : vector<18x128xf32> to vector<128xf32>
    %146 = vector.shape_cast %145 : vector<128xf32> to vector<1x128xf32>
    %cst_102 = arith.constant 1.800000e+01 : f32
    %147 = vector.broadcast %cst_102 : f32 to vector<1x128xf32>
    %148 = arith.divf %146, %147 : vector<1x128xf32>
    %149 = arith.mulf %143, %143 : vector<1x128xf32>
    %150 = arith.subf %148, %149 : vector<1x128xf32>
    %151 = vector.broadcast %143 : vector<1x128xf32> to vector<18x128xf32>
    %152 = arith.subf %139, %151 : vector<18x128xf32>
    %cst_103 = arith.constant 9.99999974E-6 : f32
    %153 = vector.broadcast %cst_103 : f32 to vector<1x128xf32>
    %154 = arith.addf %150, %153 : vector<1x128xf32>
    %155 = math.rsqrt %154 : vector<1x128xf32>
    %156 = vector.broadcast %155 : vector<1x128xf32> to vector<18x128xf32>
    %157 = arith.mulf %152, %156 : vector<18x128xf32>
    %c0_104 = arith.constant 0 : index
    %c0_105 = arith.constant 0 : index
    %158 = vector.load %arg15[%c0_104, %c0_105] : memref<1x128xf32, #tpu.memory_space<vmem>>, vector<1x128xf32>
    %159 = vector.broadcast %158 : vector<1x128xf32> to vector<18x128xf32>
    %160 = arith.mulf %157, %159 : vector<18x128xf32>
    %c0_106 = arith.constant 0 : index
    %c0_107 = arith.constant 0 : index
    %161 = vector.load %arg16[%c0_106, %c0_107] : memref<1x128xf32, #tpu.memory_space<vmem>>, vector<1x128xf32>
    %162 = vector.broadcast %161 : vector<1x128xf32> to vector<18x128xf32>
    %163 = arith.addf %160, %162 : vector<18x128xf32>
    %cst_108 = arith.constant 5.000000e-01 : f32
    %164 = vector.broadcast %cst_108 : f32 to vector<18x128xf32>
    %165 = arith.mulf %164, %163 : vector<18x128xf32>
    %cst_109 = arith.constant 4.471500e-02 : f32
    %166 = vector.broadcast %cst_109 : f32 to vector<18x128xf32>
    %167 = arith.mulf %166, %163 : vector<18x128xf32>
    %168 = arith.mulf %167, %163 : vector<18x128xf32>
    %169 = arith.mulf %168, %163 : vector<18x128xf32>
    %170 = arith.addf %163, %169 : vector<18x128xf32>
    %cst_110 = arith.constant 0.797884583 : f32
    %171 = vector.broadcast %cst_110 : f32 to vector<18x128xf32>
    %172 = arith.mulf %171, %170 : vector<18x128xf32>
    %173 = math.tanh %172 : vector<18x128xf32>
    %cst_111 = arith.constant 1.000000e+00 : f32
    %174 = vector.broadcast %cst_111 : f32 to vector<18x128xf32>
    %175 = arith.addf %174, %173 : vector<18x128xf32>
    %176 = arith.mulf %165, %175 : vector<18x128xf32>
    %c0_112 = arith.constant 0 : index
    %c0_113 = arith.constant 0 : index
    %177 = vector.load %arg24[%c0_112, %c0_113] : memref<18x128xf32, #tpu.memory_space<vmem>>, vector<18x128xf32>
    tpu.vector_store %arg24[%c0_112, %c0_113], %176 {strides = array<i32>} : memref<18x128xf32, #tpu.memory_space<vmem>>, vector<18x128xf32>,
    %c0_114 = arith.constant 0 : index
    %c0_115 = arith.constant 0 : index
    %178 = vector.load %arg24[%c0_114, %c0_115] : memref<18x128xf32, #tpu.memory_space<vmem>>, vector<12x128xf32>
    %c1_116 = arith.constant 1 : index
    %c0_117 = arith.constant 0 : index
    %179 = vector.load %arg24[%c1_116, %c0_117] : memref<18x128xf32, #tpu.memory_space<vmem>>, vector<12x128xf32>
    %c2_118 = arith.constant 2 : index
    %c0_119 = arith.constant 0 : index
    %180 = vector.load %arg24[%c2_118, %c0_119] : memref<18x128xf32, #tpu.memory_space<vmem>>, vector<12x128xf32>
    %c3_120 = arith.constant 3 : index
    %c0_121 = arith.constant 0 : index
    %181 = vector.load %arg24[%c3_120, %c0_121] : memref<18x128xf32, #tpu.memory_space<vmem>>, vector<12x128xf32>
    %c4_122 = arith.constant 4 : index
    %c0_123 = arith.constant 0 : index
    %182 = vector.load %arg24[%c4_122, %c0_123] : memref<18x128xf32, #tpu.memory_space<vmem>>, vector<12x128xf32>
    %c5_124 = arith.constant 5 : index
    %c0_125 = arith.constant 0 : index
    %183 = vector.load %arg24[%c5_124, %c0_125] : memref<18x128xf32, #tpu.memory_space<vmem>>, vector<12x128xf32>
    %c6_126 = arith.constant 6 : index
    %c0_127 = arith.constant 0 : index
    %184 = vector.load %arg24[%c6_126, %c0_127] : memref<18x128xf32, #tpu.memory_space<vmem>>, vector<12x128xf32>
    %185 = tpu.concatenate %178, %179, %180, %181, %182, %183, %184 in 1 : vector<12x128xf32>, vector<12x128xf32>, vector<12x128xf32>, vector<12x128xf32>, vector<12x128xf32>, vector<12x128xf32>, vector<12x128xf32> -> vector<12x896xf32>
    %186 = arith.truncf %185 : vector<12x896xf32> to vector<12x896xbf16>
    %c0_128 = arith.constant 0 : index
    %c0_129 = arith.constant 0 : index
    %187 = vector.load %arg17[%c0_128, %c0_129] : memref<896x128xbf16, #tpu.memory_space<vmem>>, vector<896x128xbf16>
    %cst_130 = arith.constant dense<0.000000e+00> : vector<12x128xf32>
    %188 = tpu.matmul %186, %187, %cst_130 {dimension_numbers = #tpu.dot_dimension_numbers<[1], [0], [0], [1], [0, 0, 1, 1], [], []>} : vector<12x896xbf16>, vector<896x128xbf16>, vector<12x128xf32> -> vector<12x128xf32>
    %c0_131 = arith.constant 0 : index
    %c0_132 = arith.constant 0 : index
    %189 = vector.load %arg18[%c0_131, %c0_132] : memref<1x128xf32, #tpu.memory_space<vmem>>, vector<1x128xf32>
    %190 = vector.broadcast %189 : vector<1x128xf32> to vector<12x128xf32>
    %191 = arith.addf %188, %190 : vector<12x128xf32>
    %cst_133 = arith.constant 5.000000e-01 : f32
    %192 = vector.broadcast %cst_133 : f32 to vector<12x128xf32>
    %193 = arith.mulf %192, %191 : vector<12x128xf32>
    %cst_134 = arith.constant 4.471500e-02 : f32
    %194 = vector.broadcast %cst_134 : f32 to vector<12x128xf32>
    %195 = arith.mulf %194, %191 : vector<12x128xf32>
    %196 = arith.mulf %195, %191 : vector<12x128xf32>
    %197 = arith.mulf %196, %191 : vector<12x128xf32>
    %198 = arith.addf %191, %197 : vector<12x128xf32>
    %cst_135 = arith.constant 0.797884583 : f32
    %199 = vector.broadcast %cst_135 : f32 to vector<12x128xf32>
    %200 = arith.mulf %199, %198 : vector<12x128xf32>
    %201 = math.tanh %200 : vector<12x128xf32>
    %cst_136 = arith.constant 1.000000e+00 : f32
    %202 = vector.broadcast %cst_136 : f32 to vector<12x128xf32>
    %203 = arith.addf %202, %201 : vector<12x128xf32>
    %204 = arith.mulf %193, %203 : vector<12x128xf32>
    %c0_137 = arith.constant 0 : index
    %c0_138 = arith.constant 0 : index
    %c0_139 = arith.constant 0 : index
    %205 = vector.load %arg20[%c0_137, %c0_138, %c0_139] : memref<1x12x128xf32, #tpu.memory_space<vmem>>, vector<1x12x128xf32>
    %206 = vector.shape_cast %205 : vector<1x12x128xf32> to vector<12x128xf32>
    %207 = vector.shape_cast %204 : vector<12x128xf32> to vector<1x12x128xf32>
    tpu.vector_store %arg20[%c0_137, %c0_138, %c0_139], %207 {strides = array<i32>} : memref<1x12x128xf32, #tpu.memory_space<vmem>>, vector<1x12x128xf32>,
    return
  }
  func.func @transform_0(%arg0: i32) -> (i32, i32, i32) {
    %c0_i32 = arith.constant 0 : i32
    %c0_i32_0 = arith.constant 0 : i32
    %c0_i32_1 = arith.constant 0 : i32
    return %arg0, %c0_i32, %c0_i32_0 : i32, i32, i32
  }
  func.func @transform_1(%arg0: i32) -> (i32, i32, i32) {
    %c0_i32 = arith.constant 0 : i32
    %c0_i32_0 = arith.constant 0 : i32
    %c0_i32_1 = arith.constant 0 : i32
    return %arg0, %c0_i32, %c0_i32_0 : i32, i32, i32
  }
  func.func @transform_2(%arg0: i32) -> (i32, i32) {
    %c0_i32 = arith.constant 0 : i32
    %c0_i32_0 = arith.constant 0 : i32
    %c0_i32_1 = arith.constant 0 : i32
    return %c0_i32, %c0_i32_0 : i32, i32
  }
  func.func @transform_3(%arg0: i32) -> (i32, i32) {
    %c0_i32 = arith.constant 0 : i32
    %c0_i32_0 = arith.constant 0 : i32
    %c0_i32_1 = arith.constant 0 : i32
    return %c0_i32, %c0_i32_0 : i32, i32
  }
  func.func @transform_4(%arg0: i32) -> (i32, i32) {
    %c0_i32 = arith.constant 0 : i32
    %c0_i32_0 = arith.constant 0 : i32
    %c0_i32_1 = arith.constant 0 : i32
    return %c0_i32, %c0_i32_0 : i32, i32
  }
  func.func @transform_5(%arg0: i32) -> (i32, i32) {
    %c0_i32 = arith.constant 0 : i32
    %c0_i32_0 = arith.constant 0 : i32
    %c0_i32_1 = arith.constant 0 : i32
    return %c0_i32, %c0_i32_0 : i32, i32
  }
  func.func @transform_6(%arg0: i32) -> (i32, i32) {
    %c0_i32 = arith.constant 0 : i32
    %c0_i32_0 = arith.constant 0 : i32
    %c0_i32_1 = arith.constant 0 : i32
    return %c0_i32, %c0_i32_0 : i32, i32
  }
  func.func @transform_7(%arg0: i32) -> (i32, i32) {
    %c0_i32 = arith.constant 0 : i32
    %c0_i32_0 = arith.constant 0 : i32
    %c0_i32_1 = arith.constant 0 : i32
    return %c0_i32, %c0_i32_0 : i32, i32
  }
  func.func @transform_8(%arg0: i32) -> (i32, i32) {
    %c0_i32 = arith.constant 0 : i32
    %c0_i32_0 = arith.constant 0 : i32
    %c0_i32_1 = arith.constant 0 : i32
    return %c0_i32, %c0_i32_0 : i32, i32
  }
  func.func @transform_9(%arg0: i32) -> (i32, i32) {
    %c0_i32 = arith.constant 0 : i32
    %c0_i32_0 = arith.constant 0 : i32
    %c0_i32_1 = arith.constant 0 : i32
    return %c0_i32, %c0_i32_0 : i32, i32
  }
  func.func @transform_10(%arg0: i32) -> (i32, i32) {
    %c0_i32 = arith.constant 0 : i32
    %c0_i32_0 = arith.constant 0 : i32
    %c0_i32_1 = arith.constant 0 : i32
    return %c0_i32, %c0_i32_0 : i32, i32
  }
  func.func @transform_11(%arg0: i32) -> (i32, i32) {
    %c0_i32 = arith.constant 0 : i32
    %c0_i32_0 = arith.constant 0 : i32
    %c0_i32_1 = arith.constant 0 : i32
    return %c0_i32, %c0_i32_0 : i32, i32
  }
  func.func @transform_12(%arg0: i32) -> (i32, i32) {
    %c0_i32 = arith.constant 0 : i32
    %c0_i32_0 = arith.constant 0 : i32
    %c0_i32_1 = arith.constant 0 : i32
    return %c0_i32, %c0_i32_0 : i32, i32
  }
  func.func @transform_13(%arg0: i32) -> (i32, i32) {
    %c0_i32 = arith.constant 0 : i32
    %c0_i32_0 = arith.constant 0 : i32
    %c0_i32_1 = arith.constant 0 : i32
    return %c0_i32, %c0_i32_0 : i32, i32
  }
  func.func @transform_14(%arg0: i32) -> (i32, i32) {
    %c0_i32 = arith.constant 0 : i32
    %c0_i32_0 = arith.constant 0 : i32
    %c0_i32_1 = arith.constant 0 : i32
    return %c0_i32, %c0_i32_0 : i32, i32
  }
  func.func @transform_15(%arg0: i32) -> (i32, i32) {
    %c0_i32 = arith.constant 0 : i32
    %c0_i32_0 = arith.constant 0 : i32
    %c0_i32_1 = arith.constant 0 : i32
    return %c0_i32, %c0_i32_0 : i32, i32
  }
  func.func @transform_16(%arg0: i32) -> (i32, i32) {
    %c0_i32 = arith.constant 0 : i32
    %c0_i32_0 = arith.constant 0 : i32
    %c0_i32_1 = arith.constant 0 : i32
    return %c0_i32, %c0_i32_0 : i32, i32
  }
  func.func @transform_17(%arg0: i32) -> (i32, i32) {
    %c0_i32 = arith.constant 0 : i32
    %c0_i32_0 = arith.constant 0 : i32
    %c0_i32_1 = arith.constant 0 : i32
    return %c0_i32, %c0_i32_0 : i32, i32
  }
  func.func @transform_18(%arg0: i32) -> (i32, i32, i32) {
    %c0_i32 = arith.constant 0 : i32
    %c0_i32_0 = arith.constant 0 : i32
    %c0_i32_1 = arith.constant 0 : i32
    return %arg0, %c0_i32, %c0_i32_0 : i32, i32, i32
  }
  func.func @transform_19(%arg0: i32) -> (i32, i32, i32) {
    %c0_i32 = arith.constant 0 : i32
    %c0_i32_0 = arith.constant 0 : i32
    %c0_i32_1 = arith.constant 0 : i32
    return %arg0, %c0_i32, %c0_i32_0 : i32, i32, i32
  }
}

</mosaic_0001>

<llo_original>
// kernel: tpu_custom_call.1
$region0: #{tpu_custom_call.1}
  #allocation0 [shape = 'u32[]', space=smem, size = 0x4, offset = 0x4, fixed_abs, tag = 'smem constant byte address 0x4 - core index']
  #allocation1 [shape = 'u32[144,128]{1,0:T(1,128)}', space=vmem, size = 0x12000, scoped, tag = 'internal scratch']
  #allocation2 [shape = 'f32[100,128]{1,0:T(8,128)}', space=vmem, size = 0xd000, scoped, tag = 'scratch operand']
  #allocation3 [shape = 'f32[32,128]{1,0:T(8,128)}', space=vmem, size = 0x4000, scoped, tag = 'scratch operand']
  #allocation4 [shape = 'f32[24,128]{1,0:T(8,128)}', space=vmem, size = 0x3000, scoped, tag = 'scratch operand']
  #allocation5 [shape = 'f32[18,128]{1,0:T(8,128)}', space=vmem, size = 0x3000, scoped, tag = 'scratch operand']
  %s0 = inlined_call_operand.vmem [shape: f32[2,100,1024], index: 0, kind: input, shape index: {}]
  %s1 = inlined_call_operand.vmem [shape: f32[2,24,1024], index: 1, kind: input, shape index: {}]
  %s2 = inlined_call_operand.vmem [shape: bf16[1024,128], index: 2, kind: input, shape index: {}]
  %s3 = inlined_call_operand.vmem [shape: f32[1,128], index: 3, kind: input, shape index: {}]
  %s4 = inlined_call_operand.vmem [shape: bf16[896,128], index: 4, kind: input, shape index: {}]
  %s5 = inlined_call_operand.vmem [shape: f32[1,128], index: 5, kind: input, shape index: {}]
  %s6 = inlined_call_operand.vmem [shape: f32[1,128], index: 6, kind: input, shape index: {}]
  %s7 = inlined_call_operand.vmem [shape: f32[1,128], index: 7, kind: input, shape index: {}]
  %s8 = inlined_call_operand.vmem [shape: bf16[896,128], index: 8, kind: input, shape index: {}]
  %s9 = inlined_call_operand.vmem [shape: f32[1,128], index: 9, kind: input, shape index: {}]
  %s10 = inlined_call_operand.vmem [shape: bf16[1024,128], index: 10, kind: input, shape index: {}]
  %s11 = inlined_call_operand.vmem [shape: f32[1,128], index: 11, kind: input, shape index: {}]
  %s12 = inlined_call_operand.vmem [shape: bf16[896,128], index: 12, kind: input, shape index: {}]
  %s13 = inlined_call_operand.vmem [shape: f32[1,128], index: 13, kind: input, shape index: {}]
  %s14 = inlined_call_operand.vmem [shape: f32[1,128], index: 14, kind: input, shape index: {}]
  %s15 = inlined_call_operand.vmem [shape: f32[1,128], index: 15, kind: input, shape index: {}]
  %s16 = inlined_call_operand.vmem [shape: bf16[896,128], index: 16, kind: input, shape index: {}]
  %s17 = inlined_call_operand.vmem [shape: f32[1,128], index: 17, kind: input, shape index: {}]
  %s18 = inlined_call_operand.vmem [shape: f32[2,9,128], index: 18, kind: output, shape index: {0}]
  %s19 = inlined_call_operand.vmem [shape: f32[2,12,128], index: 19, kind: output, shape index: {1}]
  %20 = xla_tuple %s18, %s19
  %s21 = sld [smem:[#allocation0]]
  $region113: #{tpu_custom_call.1} parent=0
    _
  %s23 = ssub.s32 1, %s21
  %s24 = scalar_select 0, %s23, %s21
  loop: start=0, step=1, limit=4
  $region2: #{tpu_custom_call.1} parent=0 // loop_pre_header
    _
  $region3: #{tpu_custom_call.1} parent=0 // loop_header
    %s26 = sphi 0, %s30
    %p27 = scmp.ge.s32.totalorder %s26, 4
    %s36 = sphi 0, %s38
    %s39 = sphi 0, %s36
    %s40 = sphi 0, %s39
    %s56 = sphi 0, %s40
    %s62 = sphi 0, %s64
    %s65 = sphi 0, %s62
    %s66 = sphi 0, %s65
    %s82 = sphi 0, %s66
    %s86 = sphi 0, %s86
    %s88 = sphi 0, %s86
    %s89 = sphi 0, %s88
    %s103 = sphi 0, %s89
    %s107 = sphi 0, %s107
    %s109 = sphi 0, %s107
    %s110 = sphi 0, %s109
    %s124 = sphi 0, %s110
    %s128 = sphi 0, %s128
    %s130 = sphi 0, %s128
    %s131 = sphi 0, %s130
    %s145 = sphi 0, %s131
    %s149 = sphi 0, %s149
    %s151 = sphi 0, %s149
    %s152 = sphi 0, %s151
    %s166 = sphi 0, %s152
    %s170 = sphi 0, %s170
    %s172 = sphi 0, %s170
    %s173 = sphi 0, %s172
    %s187 = sphi 0, %s173
    %s191 = sphi 0, %s191
    %s193 = sphi 0, %s191
    %s194 = sphi 0, %s193
    %s208 = sphi 0, %s194
    %s212 = sphi 0, %s212
    %s214 = sphi 0, %s212
    %s215 = sphi 0, %s214
    %s229 = sphi 0, %s215
    %s233 = sphi 0, %s233
    %s235 = sphi 0, %s233
    %s236 = sphi 0, %s235
    %s250 = sphi 0, %s236
    %s254 = sphi 0, %s254
    %s256 = sphi 0, %s254
    %s257 = sphi 0, %s256
    %s271 = sphi 0, %s257
    %s275 = sphi 0, %s275
    %s277 = sphi 0, %s275
    %s278 = sphi 0, %s277
    %s292 = sphi 0, %s278
    %s296 = sphi 0, %s296
    %s298 = sphi 0, %s296
    %s299 = sphi 0, %s298
    %s313 = sphi 0, %s299
    %s317 = sphi 0, %s317
    %s319 = sphi 0, %s317
    %s320 = sphi 0, %s319
    %s334 = sphi 0, %s320
    %s338 = sphi 0, %s338
    %s340 = sphi 0, %s338
    %s341 = sphi 0, %s340
    %s355 = sphi 0, %s341
    %s359 = sphi 0, %s359
    %s361 = sphi 0, %s359
    %s362 = sphi 0, %s361
    %s376 = sphi 0, %s362
    %s380 = sphi 0, %s380
    %s382 = sphi 0, %s380
    %s383 = sphi 0, %s382
    %s397 = sphi 0, %s383
    %s401 = sphi 0, %s401
    %s403 = sphi 0, %s401
    %s404 = sphi 0, %s403
    %s418 = sphi 0, %s404
    %s424 = sphi 0, %s426
    %s427 = sphi 0, %s424
    %s428 = sphi 0, %s427
    %s444 = sphi 0, %s428
    %s450 = sphi 0, %s452
    %s453 = sphi 0, %s450
    %s454 = sphi 0, %s453
    %s470 = sphi 0, %s454
  $region4: #{tpu_custom_call.1} parent=0 // loop_header_branch
    %29 = sbr.rel (%p27) target = $region8
  $region5: #{tpu_custom_call.1} parent=0 // loop_body
    %s31 = ssub.s32 %s26, 1
    %s32 = ssub.s32 %s26, 2
    %s33 = sadd.s32 %s26, 1
    %s34 = ssub.s32 %s26, %s33
    %p35 = scmp.eq.s32.totalorder %s34, 0
    %s37 = sadd.s32 %s36, 1
    %s38 = scalar_select %p35, %s36, %s37
    %p41 = pneg %p35
    %p42 = scmp.eq.s32.totalorder %s26, 1
    %p43 = por %p41, %p42
    %p44 = scmp.ne.s32.totalorder %s36, %s39
    %p45 = scmp.eq.s32.totalorder %s26, 0
    %p46 = por %p44, %p45
    %p47 = scmp.ne.s32.totalorder %s36, %s39
    %p48 = scmp.eq.s32.totalorder %s31, 1
    %p49 = por %p47, %p48
    %p50 = scmp.ne.s32.totalorder %s39, %s40
    %p51 = scmp.eq.s32.totalorder %s31, 0
    %p52 = por %p50, %p51
    %p53 = scmp.ne.s32.totalorder %s39, %s40
    %p54 = scmp.eq.s32.totalorder %s32, 1
    %p55 = por %p53, %p54
    %p57 = scmp.ne.s32.totalorder %s40, %s56
    %p58 = scmp.eq.s32.totalorder %s32, 0
    %p59 = por %p57, %p58
    %s60 = ssub.s32 %s26, %s33
    %p61 = scmp.eq.s32.totalorder %s60, 0
    %s63 = sadd.s32 %s62, 1
    %s64 = scalar_select %p61, %s62, %s63
    %p67 = pneg %p61
    %p68 = scmp.eq.s32.totalorder %s26, 1
    %p69 = por %p67, %p68
    %p70 = scmp.ne.s32.totalorder %s62, %s65
    %p71 = scmp.eq.s32.totalorder %s26, 0
    %p72 = por %p70, %p71
    %p73 = scmp.ne.s32.totalorder %s62, %s65
    %p74 = scmp.eq.s32.totalorder %s31, 1
    %p75 = por %p73, %p74
    %p76 = scmp.ne.s32.totalorder %s65, %s66
    %p77 = scmp.eq.s32.totalorder %s31, 0
    %p78 = por %p76, %p77
    %p79 = scmp.ne.s32.totalorder %s65, %s66
    %p80 = scmp.eq.s32.totalorder %s32, 1
    %p81 = por %p79, %p80
    %p83 = scmp.ne.s32.totalorder %s66, %s82
    %p84 = scmp.eq.s32.totalorder %s32, 0
    %p85 = por %p83, %p84
    %s87 = sadd.s32 %s86, 1
    %p90 = scmp.eq.s32.totalorder %s26, 1
    %p91 = scmp.ne.s32.totalorder %s86, %s88
    %p92 = scmp.eq.s32.totalorder %s26, 0
    %p93 = por %p91, %p92
    %p94 = scmp.ne.s32.totalorder %s86, %s88
    %p95 = scmp.eq.s32.totalorder %s31, 1
    %p96 = por %p94, %p95
    %p97 = scmp.ne.s32.totalorder %s88, %s89
    %p98 = scmp.eq.s32.totalorder %s31, 0
    %p99 = por %p97, %p98
    %p100 = scmp.ne.s32.totalorder %s88, %s89
    %p101 = scmp.eq.s32.totalorder %s32, 1
    %p102 = por %p100, %p101
    %p104 = scmp.ne.s32.totalorder %s89, %s103
    %p105 = scmp.eq.s32.totalorder %s32, 0
    %p106 = por %p104, %p105
    %s108 = sadd.s32 %s107, 1
    %p111 = scmp.eq.s32.totalorder %s26, 1
    %p112 = scmp.ne.s32.totalorder %s107, %s109
    %p113 = scmp.eq.s32.totalorder %s26, 0
    %p114 = por %p112, %p113
    %p115 = scmp.ne.s32.totalorder %s107, %s109
    %p116 = scmp.eq.s32.totalorder %s31, 1
    %p117 = por %p115, %p116
    %p118 = scmp.ne.s32.totalorder %s109, %s110
    %p119 = scmp.eq.s32.totalorder %s31, 0
    %p120 = por %p118, %p119
    %p121 = scmp.ne.s32.totalorder %s109, %s110
    %p122 = scmp.eq.s32.totalorder %s32, 1
    %p123 = por %p121, %p122
    %p125 = scmp.ne.s32.totalorder %s110, %s124
    %p126 = scmp.eq.s32.totalorder %s32, 0
    %p127 = por %p125, %p126
    %s129 = sadd.s32 %s128, 1
    %p132 = scmp.eq.s32.totalorder %s26, 1
    %p133 = scmp.ne.s32.totalorder %s128, %s130
    %p134 = scmp.eq.s32.totalorder %s26, 0
    %p135 = por %p133, %p134
    %p136 = scmp.ne.s32.totalorder %s128, %s130
    %p137 = scmp.eq.s32.totalorder %s31, 1
    %p138 = por %p136, %p137
    %p139 = scmp.ne.s32.totalorder %s130, %s131
    %p140 = scmp.eq.s32.totalorder %s31, 0
    %p141 = por %p139, %p140
    %p142 = scmp.ne.s32.totalorder %s130, %s131
    %p143 = scmp.eq.s32.totalorder %s32, 1
    %p144 = por %p142, %p143
    %p146 = scmp.ne.s32.totalorder %s131, %s145
    %p147 = scmp.eq.s32.totalorder %s32, 0
    %p148 = por %p146, %p147
    %s150 = sadd.s32 %s149, 1
    %p153 = scmp.eq.s32.totalorder %s26, 1
    %p154 = scmp.ne.s32.totalorder %s149, %s151
    %p155 = scmp.eq.s32.totalorder %s26, 0
    %p156 = por %p154, %p155
    %p157 = scmp.ne.s32.totalorder %s149, %s151
    %p158 = scmp.eq.s32.totalorder %s31, 1
    %p159 = por %p157, %p158
    %p160 = scmp.ne.s32.totalorder %s151, %s152
    %p161 = scmp.eq.s32.totalorder %s31, 0
    %p162 = por %p160, %p161
    %p163 = scmp.ne.s32.totalorder %s151, %s152
    %p164 = scmp.eq.s32.totalorder %s32, 1
    %p165 = por %p163, %p164
    %p167 = scmp.ne.s32.totalorder %s152, %s166
    %p168 = scmp.eq.s32.totalorder %s32, 0
    %p169 = por %p167, %p168
    %s171 = sadd.s32 %s170, 1
    %p174 = scmp.eq.s32.totalorder %s26, 1
    %p175 = scmp.ne.s32.totalorder %s170, %s172
    %p176 = scmp.eq.s32.totalorder %s26, 0
    %p177 = por %p175, %p176
    %p178 = scmp.ne.s32.totalorder %s170, %s172
    %p179 = scmp.eq.s32.totalorder %s31, 1
    %p180 = por %p178, %p179
    %p181 = scmp.ne.s32.totalorder %s172, %s173
    %p182 = scmp.eq.s32.totalorder %s31, 0
    %p183 = por %p181, %p182
    %p184 = scmp.ne.s32.totalorder %s172, %s173
    %p185 = scmp.eq.s32.totalorder %s32, 1
    %p186 = por %p184, %p185
    %p188 = scmp.ne.s32.totalorder %s173, %s187
    %p189 = scmp.eq.s32.totalorder %s32, 0
    %p190 = por %p188, %p189
    %s192 = sadd.s32 %s191, 1
    %p195 = scmp.eq.s32.totalorder %s26, 1
    %p196 = scmp.ne.s32.totalorder %s191, %s193
    %p197 = scmp.eq.s32.totalorder %s26, 0
    %p198 = por %p196, %p197
    %p199 = scmp.ne.s32.totalorder %s191, %s193
    %p200 = scmp.eq.s32.totalorder %s31, 1
    %p201 = por %p199, %p200
    %p202 = scmp.ne.s32.totalorder %s193, %s194
    %p203 = scmp.eq.s32.totalorder %s31, 0
    %p204 = por %p202, %p203
    %p205 = scmp.ne.s32.totalorder %s193, %s194
    %p206 = scmp.eq.s32.totalorder %s32, 1
    %p207 = por %p205, %p206
    %p209 = scmp.ne.s32.totalorder %s194, %s208
    %p210 = scmp.eq.s32.totalorder %s32, 0
    %p211 = por %p209, %p210
    %s213 = sadd.s32 %s212, 1
    %p216 = scmp.eq.s32.totalorder %s26, 1
    %p217 = scmp.ne.s32.totalorder %s212, %s214
    %p218 = scmp.eq.s32.totalorder %s26, 0
    %p219 = por %p217, %p218
    %p220 = scmp.ne.s32.totalorder %s212, %s214
    %p221 = scmp.eq.s32.totalorder %s31, 1
    %p222 = por %p220, %p221
    %p223 = scmp.ne.s32.totalorder %s214, %s215
    %p224 = scmp.eq.s32.totalorder %s31, 0
    %p225 = por %p223, %p224
    %p226 = scmp.ne.s32.totalorder %s214, %s215
    %p227 = scmp.eq.s32.totalorder %s32, 1
    %p228 = por %p226, %p227
    %p230 = scmp.ne.s32.totalorder %s215, %s229
    %p231 = scmp.eq.s32.totalorder %s32, 0
    %p232 = por %p230, %p231
    %s234 = sadd.s32 %s233, 1
    %p237 = scmp.eq.s32.totalorder %s26, 1
    %p238 = scmp.ne.s32.totalorder %s233, %s235
    %p239 = scmp.eq.s32.totalorder %s26, 0
    %p240 = por %p238, %p239
    %p241 = scmp.ne.s32.totalorder %s233, %s235
    %p242 = scmp.eq.s32.totalorder %s31, 1
    %p243 = por %p241, %p242
    %p244 = scmp.ne.s32.totalorder %s235, %s236
    %p245 = scmp.eq.s32.totalorder %s31, 0
    %p246 = por %p244, %p245
    %p247 = scmp.ne.s32.totalorder %s235, %s236
    %p248 = scmp.eq.s32.totalorder %s32, 1
    %p249 = por %p247, %p248
    %p251 = scmp.ne.s32.totalorder %s236, %s250
    %p252 = scmp.eq.s32.totalorder %s32, 0
    %p253 = por %p251, %p252
    %s255 = sadd.s32 %s254, 1
    %p258 = scmp.eq.s32.totalorder %s26, 1
    %p259 = scmp.ne.s32.totalorder %s254, %s256
    %p260 = scmp.eq.s32.totalorder %s26, 0
    %p261 = por %p259, %p260
    %p262 = scmp.ne.s32.totalorder %s254, %s256
    %p263 = scmp.eq.s32.totalorder %s31, 1
    %p264 = por %p262, %p263
    %p265 = scmp.ne.s32.totalorder %s256, %s257
    %p266 = scmp.eq.s32.totalorder %s31, 0
    %p267 = por %p265, %p266
    %p268 = scmp.ne.s32.totalorder %s256, %s257
    %p269 = scmp.eq.s32.totalorder %s32, 1
    %p270 = por %p268, %p269
    %p272 = scmp.ne.s32.totalorder %s257, %s271
    %p273 = scmp.eq.s32.totalorder %s32, 0
    %p274 = por %p272, %p273
    %s276 = sadd.s32 %s275, 1
    %p279 = scmp.eq.s32.totalorder %s26, 1
    %p280 = scmp.ne.s32.totalorder %s275, %s277
    %p281 = scmp.eq.s32.totalorder %s26, 0
    %p282 = por %p280, %p281
    %p283 = scmp.ne.s32.totalorder %s275, %s277
    %p284 = scmp.eq.s32.totalorder %s31, 1
    %p285 = por %p283, %p284
    %p286 = scmp.ne.s32.totalorder %s277, %s278
    %p287 = scmp.eq.s32.totalorder %s31, 0
    %p288 = por %p286, %p287
    %p289 = scmp.ne.s32.totalorder %s277, %s278
    %p290 = scmp.eq.s32.totalorder %s32, 1
    %p291 = por %p289, %p290
    %p293 = scmp.ne.s32.totalorder %s278, %s292
    %p294 = scmp.eq.s32.totalorder %s32, 0
    %p295 = por %p293, %p294
    %s297 = sadd.s32 %s296, 1
    %p300 = scmp.eq.s32.totalorder %s26, 1
    %p301 = scmp.ne.s32.totalorder %s296, %s298
    %p302 = scmp.eq.s32.totalorder %s26, 0
    %p303 = por %p301, %p302
    %p304 = scmp.ne.s32.totalorder %s296, %s298
    %p305 = scmp.eq.s32.totalorder %s31, 1
    %p306 = por %p304, %p305
    %p307 = scmp.ne.s32.totalorder %s298, %s299
    %p308 = scmp.eq.s32.totalorder %s31, 0
    %p309 = por %p307, %p308
    %p310 = scmp.ne.s32.totalorder %s298, %s299
    %p311 = scmp.eq.s32.totalorder %s32, 1
    %p312 = por %p310, %p311
    %p314 = scmp.ne.s32.totalorder %s299, %s313
    %p315 = scmp.eq.s32.totalorder %s32, 0
    %p316 = por %p314, %p315
    %s318 = sadd.s32 %s317, 1
    %p321 = scmp.eq.s32.totalorder %s26, 1
    %p322 = scmp.ne.s32.totalorder %s317, %s319
    %p323 = scmp.eq.s32.totalorder %s26, 0
    %p324 = por %p322, %p323
    %p325 = scmp.ne.s32.totalorder %s317, %s319
    %p326 = scmp.eq.s32.totalorder %s31, 1
    %p327 = por %p325, %p326
    %p328 = scmp.ne.s32.totalorder %s319, %s320
    %p329 = scmp.eq.s32.totalorder %s31, 0
    %p330 = por %p328, %p329
    %p331 = scmp.ne.s32.totalorder %s319, %s320
    %p332 = scmp.eq.s32.totalorder %s32, 1
    %p333 = por %p331, %p332
    %p335 = scmp.ne.s32.totalorder %s320, %s334
    %p336 = scmp.eq.s32.totalorder %s32, 0
    %p337 = por %p335, %p336
    %s339 = sadd.s32 %s338, 1
    %p342 = scmp.eq.s32.totalorder %s26, 1
    %p343 = scmp.ne.s32.totalorder %s338, %s340
    %p344 = scmp.eq.s32.totalorder %s26, 0
    %p345 = por %p343, %p344
    %p346 = scmp.ne.s32.totalorder %s338, %s340
    %p347 = scmp.eq.s32.totalorder %s31, 1
    %p348 = por %p346, %p347
    %p349 = scmp.ne.s32.totalorder %s340, %s341
    %p350 = scmp.eq.s32.totalorder %s31, 0
    %p351 = por %p349, %p350
    %p352 = scmp.ne.s32.totalorder %s340, %s341
    %p353 = scmp.eq.s32.totalorder %s32, 1
    %p354 = por %p352, %p353
    %p356 = scmp.ne.s32.totalorder %s341, %s355
    %p357 = scmp.eq.s32.totalorder %s32, 0
    %p358 = por %p356, %p357
    %s360 = sadd.s32 %s359, 1
    %p363 = scmp.eq.s32.totalorder %s26, 1
    %p364 = scmp.ne.s32.totalorder %s359, %s361
    %p365 = scmp.eq.s32.totalorder %s26, 0
    %p366 = por %p364, %p365
    %p367 = scmp.ne.s32.totalorder %s359, %s361
    %p368 = scmp.eq.s32.totalorder %s31, 1
    %p369 = por %p367, %p368
    %p370 = scmp.ne.s32.totalorder %s361, %s362
    %p371 = scmp.eq.s32.totalorder %s31, 0
    %p372 = por %p370, %p371
    %p373 = scmp.ne.s32.totalorder %s361, %s362
    %p374 = scmp.eq.s32.totalorder %s32, 1
    %p375 = por %p373, %p374
    %p377 = scmp.ne.s32.totalorder %s362, %s376
    %p378 = scmp.eq.s32.totalorder %s32, 0
    %p379 = por %p377, %p378
    %s381 = sadd.s32 %s380, 1
    %p384 = scmp.eq.s32.totalorder %s26, 1
    %p385 = scmp.ne.s32.totalorder %s380, %s382
    %p386 = scmp.eq.s32.totalorder %s26, 0
    %p387 = por %p385, %p386
    %p388 = scmp.ne.s32.totalorder %s380, %s382
    %p389 = scmp.eq.s32.totalorder %s31, 1
    %p390 = por %p388, %p389
    %p391 = scmp.ne.s32.totalorder %s382, %s383
    %p392 = scmp.eq.s32.totalorder %s31, 0
    %p393 = por %p391, %p392
    %p394 = scmp.ne.s32.totalorder %s382, %s383
    %p395 = scmp.eq.s32.totalorder %s32, 1
    %p396 = por %p394, %p395
    %p398 = scmp.ne.s32.totalorder %s383, %s397
    %p399 = scmp.eq.s32.totalorder %s32, 0
    %p400 = por %p398, %p399
    %s402 = sadd.s32 %s401, 1
    %p405 = scmp.eq.s32.totalorder %s26, 1
    %p406 = scmp.ne.s32.totalorder %s401, %s403
    %p407 = scmp.eq.s32.totalorder %s26, 0
    %p408 = por %p406, %p407
    %p409 = scmp.ne.s32.totalorder %s401, %s403
    %p410 = scmp.eq.s32.totalorder %s31, 1
    %p411 = por %p409, %p410
    %p412 = scmp.ne.s32.totalorder %s403, %s404
    %p413 = scmp.eq.s32.totalorder %s31, 0
    %p414 = por %p412, %p413
    %p415 = scmp.ne.s32.totalorder %s403, %s404
    %p416 = scmp.eq.s32.totalorder %s32, 1
    %p417 = por %p415, %p416
    %p419 = scmp.ne.s32.totalorder %s404, %s418
    %p420 = scmp.eq.s32.totalorder %s32, 0
    %p421 = por %p419, %p420
    %s422 = ssub.s32 %s26, %s33
    %p423 = scmp.eq.s32.totalorder %s422, 0
    %s425 = sadd.s32 %s424, 1
    %s426 = scalar_select %p423, %s424, %s425
    %p429 = pneg %p423
    %p430 = scmp.eq.s32.totalorder %s26, 1
    %p431 = por %p429, %p430
    %p432 = scmp.ne.s32.totalorder %s424, %s427
    %p433 = scmp.eq.s32.totalorder %s26, 0
    %p434 = por %p432, %p433
    %p435 = scmp.ne.s32.totalorder %s424, %s427
    %p436 = scmp.eq.s32.totalorder %s31, 1
    %p437 = por %p435, %p436
    %p438 = scmp.ne.s32.totalorder %s427, %s428
    %p439 = scmp.eq.s32.totalorder %s31, 0
    %p440 = por %p438, %p439
    %p441 = scmp.ne.s32.totalorder %s427, %s428
    %p442 = scmp.eq.s32.totalorder %s32, 1
    %p443 = por %p441, %p442
    %p445 = scmp.ne.s32.totalorder %s428, %s444
    %p446 = scmp.eq.s32.totalorder %s32, 0
    %p447 = por %p445, %p446
    %s448 = ssub.s32 %s26, %s33
    %p449 = scmp.eq.s32.totalorder %s448, 0
    %s451 = sadd.s32 %s450, 1
    %s452 = scalar_select %p449, %s450, %s451
    %p455 = pneg %p449
    %p456 = scmp.eq.s32.totalorder %s26, 1
    %p457 = por %p455, %p456
    %p458 = scmp.ne.s32.totalorder %s450, %s453
    %p459 = scmp.eq.s32.totalorder %s26, 0
    %p460 = por %p458, %p459
    %p461 = scmp.ne.s32.totalorder %s450, %s453
    %p462 = scmp.eq.s32.totalorder %s31, 1
    %p463 = por %p461, %p462
    %p464 = scmp.ne.s32.totalorder %s453, %s454
    %p465 = scmp.eq.s32.totalorder %s31, 0
    %p466 = por %p464, %p465
    %p467 = scmp.ne.s32.totalorder %s453, %s454
    %p468 = scmp.eq.s32.totalorder %s32, 1
    %p469 = por %p467, %p468
    %p471 = scmp.ne.s32.totalorder %s454, %s470
    %p472 = scmp.eq.s32.totalorder %s32, 0
    %p473 = por %p471, %p472
    %p474 = scmp.le.s32.totalorder 1, %s26
    %p475 = scmp.lt.s32.totalorder %s26, 3
    %p476 = pnand %p474, %p475
    %p477 = pneg %p476
    // Predicated region
    $region9: #{tpu_custom_call.1} parent=5 // pred_check
      _
    $region10: #{tpu_custom_call.1} parent=5 // pred_check_branch
      %479 = sbr.rel (%p476) target = $region12
    $region11: #{tpu_custom_call.1} parent=5 // pred_region
      %s480 = ssub.s32 %s26, 1
      // Predicated region
      $region13: #{tpu_custom_call.1} parent=11 // pred_check
        %p481 = pneg %p99
      $region14: #{tpu_custom_call.1} parent=11 // pred_check_branch
        %483 = sbr.rel (%p481) target = $region16
      $region15: #{tpu_custom_call.1} parent=11 // pred_region
        _
      $region16: #{tpu_custom_call.1} parent=11 // pred_fallthru
        _
      // Predicated region
      $region17: #{tpu_custom_call.1} parent=11 // pred_check
        %p484 = pneg %p120
      $region18: #{tpu_custom_call.1} parent=11 // pred_check_branch
        %486 = sbr.rel (%p484) target = $region20
      $region19: #{tpu_custom_call.1} parent=11 // pred_region
        _
      $region20: #{tpu_custom_call.1} parent=11 // pred_fallthru
        _
      // Predicated region
      $region21: #{tpu_custom_call.1} parent=11 // pred_check
        %p487 = pneg %p141
      $region22: #{tpu_custom_call.1} parent=11 // pred_check_branch
        %489 = sbr.rel (%p487) target = $region24
      $region23: #{tpu_custom_call.1} parent=11 // pred_region
        _
      $region24: #{tpu_custom_call.1} parent=11 // pred_fallthru
        _
      // Predicated region
      $region25: #{tpu_custom_call.1} parent=11 // pred_check
        %p490 = pneg %p162
      $region26: #{tpu_custom_call.1} parent=11 // pred_check_branch
        %492 = sbr.rel (%p490) target = $region28
      $region27: #{tpu_custom_call.1} parent=11 // pred_region
        _
      $region28: #{tpu_custom_call.1} parent=11 // pred_fallthru
        _
      // Predicated region
      $region29: #{tpu_custom_call.1} parent=11 // pred_check
        %p493 = pneg %p183
      $region30: #{tpu_custom_call.1} parent=11 // pred_check_branch
        %495 = sbr.rel (%p493) target = $region32
      $region31: #{tpu_custom_call.1} parent=11 // pred_region
        _
      $region32: #{tpu_custom_call.1} parent=11 // pred_fallthru
        _
      // Predicated region
      $region33: #{tpu_custom_call.1} parent=11 // pred_check
        %p496 = pneg %p204
      $region34: #{tpu_custom_call.1} parent=11 // pred_check_branch
        %498 = sbr.rel (%p496) target = $region36
      $region35: #{tpu_custom_call.1} parent=11 // pred_region
        _
      $region36: #{tpu_custom_call.1} parent=11 // pred_fallthru
        _
      // Predicated region
      $region37: #{tpu_custom_call.1} parent=11 // pred_check
        %p499 = pneg %p225
      $region38: #{tpu_custom_call.1} parent=11 // pred_check_branch
        %501 = sbr.rel (%p499) target = $region40
      $region39: #{tpu_custom_call.1} parent=11 // pred_region
        _
      $region40: #{tpu_custom_call.1} parent=11 // pred_fallthru
        _
      // Predicated region
      $region41: #{tpu_custom_call.1} parent=11 // pred_check
        %p502 = pneg %p246
      $region42: #{tpu_custom_call.1} parent=11 // pred_check_branch
        %504 = sbr.rel (%p502) target = $region44
      $region43: #{tpu_custom_call.1} parent=11 // pred_region
        _
      $region44: #{tpu_custom_call.1} parent=11 // pred_fallthru
        _
      // Predicated region
      $region45: #{tpu_custom_call.1} parent=11 // pred_check
        %p505 = pneg %p267
      $region46: #{tpu_custom_call.1} parent=11 // pred_check_branch
        %507 = sbr.rel (%p505) target = $region48
      $region47: #{tpu_custom_call.1} parent=11 // pred_region
        _
      $region48: #{tpu_custom_call.1} parent=11 // pred_fallthru
        _
      // Predicated region
      $region49: #{tpu_custom_call.1} parent=11 // pred_check
        %p508 = pneg %p288
      $region50: #{tpu_custom_call.1} parent=11 // pred_check_branch
        %510 = sbr.rel (%p508) target = $region52
      $region51: #{tpu_custom_call.1} parent=11 // pred_region
        _
      $region52: #{tpu_custom_call.1} parent=11 // pred_fallthru
        _
      // Predicated region
      $region53: #{tpu_custom_call.1} parent=11 // pred_check
        %p511 = pneg %p309
      $region54: #{tpu_custom_call.1} parent=11 // pred_check_branch
        %513 = sbr.rel (%p511) target = $region56
      $region55: #{tpu_custom_call.1} parent=11 // pred_region
        _
      $region56: #{tpu_custom_call.1} parent=11 // pred_fallthru
        _
      // Predicated region
      $region57: #{tpu_custom_call.1} parent=11 // pred_check
        %p514 = pneg %p330
      $region58: #{tpu_custom_call.1} parent=11 // pred_check_branch
        %516 = sbr.rel (%p514) target = $region60
      $region59: #{tpu_custom_call.1} parent=11 // pred_region
        _
      $region60: #{tpu_custom_call.1} parent=11 // pred_fallthru
        _
      // Predicated region
      $region61: #{tpu_custom_call.1} parent=11 // pred_check
        %p517 = pneg %p351
      $region62: #{tpu_custom_call.1} parent=11 // pred_check_branch
        %519 = sbr.rel (%p517) target = $region64
      $region63: #{tpu_custom_call.1} parent=11 // pred_region
        _
      $region64: #{tpu_custom_call.1} parent=11 // pred_fallthru
        _
      // Predicated region
      $region65: #{tpu_custom_call.1} parent=11 // pred_check
        %p520 = pneg %p372
      $region66: #{tpu_custom_call.1} parent=11 // pred_check_branch
        %522 = sbr.rel (%p520) target = $region68
      $region67: #{tpu_custom_call.1} parent=11 // pred_region
        _
      $region68: #{tpu_custom_call.1} parent=11 // pred_fallthru
        _
      // Predicated region
      $region69: #{tpu_custom_call.1} parent=11 // pred_check
        %p523 = pneg %p393
      $region70: #{tpu_custom_call.1} parent=11 // pred_check_branch
        %525 = sbr.rel (%p523) target = $region72
      $region71: #{tpu_custom_call.1} parent=11 // pred_region
        _
      $region72: #{tpu_custom_call.1} parent=11 // pred_fallthru
        _
      // Predicated region
      $region73: #{tpu_custom_call.1} parent=11 // pred_check
        %p526 = pneg %p414
      $region74: #{tpu_custom_call.1} parent=11 // pred_check_branch
        %528 = sbr.rel (%p526) target = $region76
      $region75: #{tpu_custom_call.1} parent=11 // pred_region
        _
      $region76: #{tpu_custom_call.1} parent=11 // pred_fallthru
        _
    $region12: #{tpu_custom_call.1} parent=5 // pred_fallthru
      _
    %p529 = scmp.lt.s32.totalorder %s26, 2
    // Predicated region
    $region77: #{tpu_custom_call.1} parent=5 // pred_check
      %p530 = pneg %p529
    $region78: #{tpu_custom_call.1} parent=5 // pred_check_branch
      %532 = sbr.rel (%p530) target = $region80
    $region79: #{tpu_custom_call.1} parent=5 // pred_region
      // Predicated region
      $region81: #{tpu_custom_call.1} parent=79 // pred_check
        %p533 = pneg %p46
      $region82: #{tpu_custom_call.1} parent=79 // pred_check_branch
        %535 = sbr.rel (%p533) target = $region84
      $region83: #{tpu_custom_call.1} parent=79 // pred_region
        %p536 = scmp.lt.s32.totalorder %s26, 1
        %s537 = scalar_select %p536, %s26, 1
        %s538 = smul.addr %s537, 104
        %s539 = smul.addr %s538, 8
        %s540 = scalar_lea.vmem %s0, %s539
      $region84: #{tpu_custom_call.1} parent=79 // pred_fallthru
        _
      // Predicated region
      $region85: #{tpu_custom_call.1} parent=79 // pred_check
        %p541 = pneg %p72
      $region86: #{tpu_custom_call.1} parent=79 // pred_check_branch
        %543 = sbr.rel (%p541) target = $region88
      $region87: #{tpu_custom_call.1} parent=79 // pred_region
        %p544 = scmp.lt.s32.totalorder %s26, 1
        %s545 = scalar_select %p544, %s26, 1
        %s546 = smul.addr %s545, 24
        %s547 = smul.addr %s546, 8
        %s548 = scalar_lea.vmem %s1, %s547
      $region88: #{tpu_custom_call.1} parent=79 // pred_fallthru
        _
    $region80: #{tpu_custom_call.1} parent=5 // pred_fallthru
      _
    %p549 = scmp.le.s32.totalorder 1, %s26
    %p550 = scmp.lt.s32.totalorder %s26, 3
    %p551 = pnand %p549, %p550
    %p552 = pneg %p551
    // Predicated region
    $region89: #{tpu_custom_call.1} parent=5 // pred_check
      _
    $region90: #{tpu_custom_call.1} parent=5 // pred_check_branch
      %554 = sbr.rel (%p551) target = $region92
    $region91: #{tpu_custom_call.1} parent=5 // pred_region
      %s555 = ssub.s32 %s26, 1
      %p556 = scmp.lt.s32.totalorder %s31, 1
      %s557 = scalar_select %p556, %s31, 1
      %s558 = smul.addr %s557, 104
      %s559 = smul.addr %s558, 8
      %s560 = scalar_lea.vmem %s0, %s559
      %p561 = pneg %p52
      %p562 = pneg %p49
      %p563 = scmp.lt.s32.totalorder %s31, 1
      %s564 = scalar_select %p563, %s31, 1
      %s565 = smul.addr %s564, 24
      %s566 = smul.addr %s565, 8
      %s567 = scalar_lea.vmem %s1, %s566
      %p568 = pneg %p78
      %p569 = pneg %p75
      %p570 = pneg %p99
      %p571 = pneg %p96
      %p572 = pneg %p120
      %p573 = pneg %p117
      %p574 = pneg %p141
      %p575 = pneg %p138
      %p576 = pneg %p162
      %p577 = pneg %p159
      %p578 = pneg %p183
      %p579 = pneg %p180
      %p580 = pneg %p204
      %p581 = pneg %p201
      %p582 = pneg %p225
      %p583 = pneg %p222
      %p584 = pneg %p246
      %p585 = pneg %p243
      %p586 = pneg %p267
      %p587 = pneg %p264
      %p588 = pneg %p288
      %p589 = pneg %p285
      %p590 = pneg %p309
      %p591 = pneg %p306
      %p592 = pneg %p330
      %p593 = pneg %p327
      %p594 = pneg %p351
      %p595 = pneg %p348
      %p596 = pneg %p372
      %p597 = pneg %p369
      %p598 = pneg %p393
      %p599 = pneg %p390
      %p600 = pneg %p414
      %p601 = pneg %p411
      %p602 = pneg %p440
      %p603 = pneg %p437
      %p604 = scmp.lt.s32.totalorder %s31, 1
      %s605 = scalar_select %p604, %s31, 1
      %s606 = smul.addr %s605, 2
      %s607 = smul.addr %s606, 8
      %s608 = scalar_lea.vmem %s18, %s607
      %p609 = pneg %p466
      %p610 = pneg %p463
      %p611 = scmp.lt.s32.totalorder %s31, 1
      %s612 = scalar_select %p611, %s31, 1
      %s613 = smul.addr %s612, 2
      %s614 = smul.addr %s613, 8
      %s615 = scalar_lea.vmem %s19, %s614
      %p616 = scmp.lt.s32.totalorder %s31, 1
      %s617 = scalar_select %p616, %s31, 1
      %s618 = smul.addr %s617, 104
      %s619 = smul.addr %s618, 8
      %s620 = scalar_lea.vmem %s0, %s619
      %p621 = scmp.lt.s32.totalorder %s31, 1
      %s622 = scalar_select %p621, %s31, 1
      %s623 = smul.addr %s622, 24
      %s624 = smul.addr %s623, 8
      %s625 = scalar_lea.vmem %s1, %s624
      %p626 = scmp.lt.s32.totalorder %s31, 1
      %s627 = scalar_select %p626, %s31, 1
      %s628 = smul.addr %s627, 2
      %s629 = smul.addr %s628, 8
      %s630 = scalar_lea.vmem %s18, %s629
      %p631 = scmp.lt.s32.totalorder %s31, 1
      %s632 = scalar_select %p631, %s31, 1
      %s633 = smul.addr %s632, 2
      %s634 = smul.addr %s633, 8
      %s635 = scalar_lea.vmem %s19, %s634
      %v637 = vld [vmem:[%s620] sm:$0xff]
      %v638 = vld [vmem:[%s620 + $0x8] sm:$0xff]
      %v639 = vld [vmem:[%s620 + $0x10] sm:$0xff]
      %v640 = vld [vmem:[%s620 + $0x18] sm:$0xff]
      %v641 = vld [vmem:[%s620 + $0x20] sm:$0xff]
      %v642 = vld [vmem:[%s620 + $0x28] sm:$0xff]
      %v643 = vld [vmem:[%s620 + $0x30] sm:$0xff]
      %v644 = vld [vmem:[%s620 + $0x38] sm:$0xff]
      %v645 = vld [vmem:[%s620 + $0x40] sm:$0xff]
      %v646 = vld [vmem:[%s620 + $0x48] sm:$0xff]
      %v647 = vld [vmem:[%s620 + $0x50] sm:$0xff]
      %v648 = vld [vmem:[%s620 + $0x58] sm:$0xff]
      %v649 = vld [vmem:[%s620 + $0x60] sm:$0xff]
      %v650 = vld [vmem:[%s620 + $0x68] sm:$0xff]
      %v651 = vld [vmem:[%s620 + $0x70] sm:$0xff]
      %v652 = vld [vmem:[%s620 + $0x78] sm:$0xff]
      %v653 = vld [vmem:[%s620 + $0x80] sm:$0xff]
      %v654 = vld [vmem:[%s620 + $0x88] sm:$0xff]
      %v655 = vld [vmem:[%s620 + $0x90] sm:$0xff]
      %v656 = vld [vmem:[%s620 + $0x98] sm:$0xff]
      %v657 = vld [vmem:[%s620 + $0xa0] sm:$0xff]
      %v658 = vld [vmem:[%s620 + $0xa8] sm:$0xff]
      %v659 = vld [vmem:[%s620 + $0xb0] sm:$0xff]
      %v660 = vld [vmem:[%s620 + $0xb8] sm:$0xff]
      %v661 = vld [vmem:[%s620 + $0xc0] sm:$0xff]
      %v662 = vld [vmem:[%s620 + $0xc8] sm:$0xff]
      %v663 = vld [vmem:[%s620 + $0xd0] sm:$0xff]
      %v664 = vld [vmem:[%s620 + $0xd8] sm:$0xff]
      %v665 = vld [vmem:[%s620 + $0xe0] sm:$0xff]
      %v666 = vld [vmem:[%s620 + $0xe8] sm:$0xff]
      %v667 = vld [vmem:[%s620 + $0xf0] sm:$0xff]
      %v668 = vld [vmem:[%s620 + $0xf8] sm:$0xff]
      %v669 = vld [vmem:[%s620 + $0x100] sm:$0xff]
      %v670 = vld [vmem:[%s620 + $0x108] sm:$0xff]
      %v671 = vld [vmem:[%s620 + $0x110] sm:$0xff]
      %v672 = vld [vmem:[%s620 + $0x118] sm:$0xff]
      %v673 = vld [vmem:[%s620 + $0x120] sm:$0xff]
      %v674 = vld [vmem:[%s620 + $0x128] sm:$0xff]
      %v675 = vld [vmem:[%s620 + $0x130] sm:$0xff]
      %v676 = vld [vmem:[%s620 + $0x138] sm:$0xff]
      %v677 = vld [vmem:[%s620 + $0x140] sm:$0xff]
      %v678 = vld [vmem:[%s620 + $0x148] sm:$0xff]
      %v679 = vld [vmem:[%s620 + $0x150] sm:$0xff]
      %v680 = vld [vmem:[%s620 + $0x158] sm:$0xff]
      %v681 = vld [vmem:[%s620 + $0x160] sm:$0xff]
      %v682 = vld [vmem:[%s620 + $0x168] sm:$0xff]
      %v683 = vld [vmem:[%s620 + $0x170] sm:$0xff]
      %v684 = vld [vmem:[%s620 + $0x178] sm:$0xff]
      %v685 = vld [vmem:[%s620 + $0x180] sm:$0xff]
      %v686 = vld [vmem:[%s620 + $0x188] sm:$0xff]
      %v687 = vld [vmem:[%s620 + $0x190] sm:$0xff]
      %v688 = vld [vmem:[%s620 + $0x198] sm:$0xff]
      %v689 = vld [vmem:[%s620 + $0x1a0] sm:$0xff]
      %v690 = vld [vmem:[%s620 + $0x1a8] sm:$0xff]
      %v691 = vld [vmem:[%s620 + $0x1b0] sm:$0xff]
      %v692 = vld [vmem:[%s620 + $0x1b8] sm:$0xff]
      %v693 = vld [vmem:[%s620 + $0x1c0] sm:$0xff]
      %v694 = vld [vmem:[%s620 + $0x1c8] sm:$0xff]
      %v695 = vld [vmem:[%s620 + $0x1d0] sm:$0xff]
      %v696 = vld [vmem:[%s620 + $0x1d8] sm:$0xff]
      %v697 = vld [vmem:[%s620 + $0x1e0] sm:$0xff]
      %v698 = vld [vmem:[%s620 + $0x1e8] sm:$0xff]
      %v699 = vld [vmem:[%s620 + $0x1f0] sm:$0xff]
      %v700 = vld [vmem:[%s620 + $0x1f8] sm:$0xff]
      %v701 = vld [vmem:[%s620 + $0x200] sm:$0xff]
      %v702 = vld [vmem:[%s620 + $0x208] sm:$0xff]
      %v703 = vld [vmem:[%s620 + $0x210] sm:$0xff]
      %v704 = vld [vmem:[%s620 + $0x218] sm:$0xff]
      %v705 = vld [vmem:[%s620 + $0x220] sm:$0xff]
      %v706 = vld [vmem:[%s620 + $0x228] sm:$0xff]
      %v707 = vld [vmem:[%s620 + $0x230] sm:$0xff]
      %v708 = vld [vmem:[%s620 + $0x238] sm:$0xff]
      %v709 = vld [vmem:[%s620 + $0x240] sm:$0xff]
      %v710 = vld [vmem:[%s620 + $0x248] sm:$0xff]
      %v711 = vld [vmem:[%s620 + $0x250] sm:$0xff]
      %v712 = vld [vmem:[%s620 + $0x258] sm:$0xff]
      %v713 = vld [vmem:[%s620 + $0x260] sm:$0xff]
      %v714 = vld [vmem:[%s620 + $0x268] sm:$0xff]
      %v715 = vld [vmem:[%s620 + $0x270] sm:$0xff]
      %v716 = vld [vmem:[%s620 + $0x278] sm:$0xff]
      %v717 = vld [vmem:[%s620 + $0x280] sm:$0xff]
      %v718 = vld [vmem:[%s620 + $0x288] sm:$0xff]
      %v719 = vld [vmem:[%s620 + $0x290] sm:$0xff]
      %v720 = vld [vmem:[%s620 + $0x298] sm:$0xff]
      %v721 = vld [vmem:[%s620 + $0x2a0] sm:$0xff]
      %v722 = vld [vmem:[%s620 + $0x2a8] sm:$0xff]
      %v723 = vld [vmem:[%s620 + $0x2b0] sm:$0xff]
      %v724 = vld [vmem:[%s620 + $0x2b8] sm:$0xff]
      %v725 = vld [vmem:[%s620 + $0x2c0] sm:$0xff]
      %v726 = vld [vmem:[%s620 + $0x2c8] sm:$0xff]
      %v727 = vld [vmem:[%s620 + $0x2d0] sm:$0xff]
      %v728 = vld [vmem:[%s620 + $0x2d8] sm:$0xff]
      %v729 = vld [vmem:[%s620 + $0x2e0] sm:$0xff]
      %v730 = vld [vmem:[%s620 + $0x2e8] sm:$0xff]
      %v731 = vld [vmem:[%s620 + $0x2f0] sm:$0xff]
      %v732 = vld [vmem:[%s620 + $0x2f8] sm:$0xff]
      %v733 = vld [vmem:[%s620 + $0x300] sm:$0xf]
      %v734 = vld [vmem:[%s620 + $0x308] sm:$0xf]
      %v735 = vld [vmem:[%s620 + $0x310] sm:$0xf]
      %v736 = vld [vmem:[%s620 + $0x318] sm:$0xf]
      %v737 = vld [vmem:[%s620 + $0x320] sm:$0xf]
      %v738 = vld [vmem:[%s620 + $0x328] sm:$0xf]
      %v739 = vld [vmem:[%s620 + $0x330] sm:$0xf]
      %v740 = vld [vmem:[%s620 + $0x338] sm:$0xf]
      %v741 = vpack.c.bf16 %v645, %v637
      %v742 = vpack.c.bf16 %v646, %v638
      %v743 = vpack.c.bf16 %v647, %v639
      %v744 = vpack.c.bf16 %v648, %v640
      %v745 = vpack.c.bf16 %v649, %v641
      %v746 = vpack.c.bf16 %v650, %v642
      %v747 = vpack.c.bf16 %v651, %v643
      %v748 = vpack.c.bf16 %v652, %v644
      %v749 = vpack.c.bf16 %v661, %v653
      %v750 = vpack.c.bf16 %v662, %v654
      %v751 = vpack.c.bf16 %v663, %v655
      %v752 = vpack.c.bf16 %v664, %v656
      %v753 = vpack.c.bf16 %v665, %v657
      %v754 = vpack.c.bf16 %v666, %v658
      %v755 = vpack.c.bf16 %v667, %v659
      %v756 = vpack.c.bf16 %v668, %v660
      %v757 = vpack.c.bf16 %v677, %v669
      %v758 = vpack.c.bf16 %v678, %v670
      %v759 = vpack.c.bf16 %v679, %v671
      %v760 = vpack.c.bf16 %v680, %v672
      %v761 = vpack.c.bf16 %v681, %v673
      %v762 = vpack.c.bf16 %v682, %v674
      %v763 = vpack.c.bf16 %v683, %v675
      %v764 = vpack.c.bf16 %v684, %v676
      %v765 = vpack.c.bf16 %v693, %v685
      %v766 = vpack.c.bf16 %v694, %v686
      %v767 = vpack.c.bf16 %v695, %v687
      %v768 = vpack.c.bf16 %v696, %v688
      %v769 = vpack.c.bf16 %v697, %v689
      %v770 = vpack.c.bf16 %v698, %v690
      %v771 = vpack.c.bf16 %v699, %v691
      %v772 = vpack.c.bf16 %v700, %v692
      %v773 = vpack.c.bf16 %v709, %v701
      %v774 = vpack.c.bf16 %v710, %v702
      %v775 = vpack.c.bf16 %v711, %v703
      %v776 = vpack.c.bf16 %v712, %v704
      %v777 = vpack.c.bf16 %v713, %v705
      %v778 = vpack.c.bf16 %v714, %v706
      %v779 = vpack.c.bf16 %v715, %v707
      %v780 = vpack.c.bf16 %v716, %v708
      %v781 = vpack.c.bf16 %v725, %v717
      %v782 = vpack.c.bf16 %v726, %v718
      %v783 = vpack.c.bf16 %v727, %v719
      %v784 = vpack.c.bf16 %v728, %v720
      %v785 = vpack.c.bf16 %v729, %v721
      %v786 = vpack.c.bf16 %v730, %v722
      %v787 = vpack.c.bf16 %v731, %v723
      %v788 = vpack.c.bf16 %v732, %v724
      %v789 = vpack.c.bf16 %v733, %v733
      %v790 = vpack.c.bf16 %v734, %v734
      %v791 = vpack.c.bf16 %v735, %v735
      %v792 = vpack.c.bf16 %v736, %v736
      %v793 = vpack.c.bf16 %v737, %v737
      %v794 = vpack.c.bf16 %v738, %v738
      %v795 = vpack.c.bf16 %v739, %v739
      %v796 = vpack.c.bf16 %v740, %v740
      %v797 = vld [vmem:[%s2] sm:$0xf]
      %v798 = vld [vmem:[%s2 + $0x4] sm:$0xf]
      %v799 = vld [vmem:[%s2 + $0x8] sm:$0xf]
      %v800 = vld [vmem:[%s2 + $0xc] sm:$0xf]
      %v801 = vld [vmem:[%s2 + $0x10] sm:$0xf]
      %v802 = vld [vmem:[%s2 + $0x14] sm:$0xf]
      %v803 = vld [vmem:[%s2 + $0x18] sm:$0xf]
      %v804 = vld [vmem:[%s2 + $0x1c] sm:$0xf]
      %v805 = vld [vmem:[%s2 + $0x20] sm:$0xf]
      %v806 = vld [vmem:[%s2 + $0x24] sm:$0xf]
      %v807 = vld [vmem:[%s2 + $0x28] sm:$0xf]
      %v808 = vld [vmem:[%s2 + $0x2c] sm:$0xf]
      %v809 = vld [vmem:[%s2 + $0x30] sm:$0xf]
      %v810 = vld [vmem:[%s2 + $0x34] sm:$0xf]
      %v811 = vld [vmem:[%s2 + $0x38] sm:$0xf]
      %v812 = vld [vmem:[%s2 + $0x3c] sm:$0xf]
      %v813 = vld [vmem:[%s2 + $0x40] sm:$0xf]
      %v814 = vld [vmem:[%s2 + $0x44] sm:$0xf]
      %v815 = vld [vmem:[%s2 + $0x48] sm:$0xf]
      %v816 = vld [vmem:[%s2 + $0x4c] sm:$0xf]
      %v817 = vld [vmem:[%s2 + $0x50] sm:$0xf]
      %v818 = vld [vmem:[%s2 + $0x54] sm:$0xf]
      %v819 = vld [vmem:[%s2 + $0x58] sm:$0xf]
      %v820 = vld [vmem:[%s2 + $0x5c] sm:$0xf]
      %v821 = vld [vmem:[%s2 + $0x60] sm:$0xf]
      %v822 = vld [vmem:[%s2 + $0x64] sm:$0xf]
      %v823 = vld [vmem:[%s2 + $0x68] sm:$0xf]
      %v824 = vld [vmem:[%s2 + $0x6c] sm:$0xf]
      %v825 = vld [vmem:[%s2 + $0x70] sm:$0xf]
      %v826 = vld [vmem:[%s2 + $0x74] sm:$0xf]
      %v827 = vld [vmem:[%s2 + $0x78] sm:$0xf]
      %v828 = vld [vmem:[%s2 + $0x7c] sm:$0xf]
      %v829 = vld [vmem:[%s2 + $0x80] sm:$0xf]
      %v830 = vld [vmem:[%s2 + $0x84] sm:$0xf]
      %v831 = vld [vmem:[%s2 + $0x88] sm:$0xf]
      %v832 = vld [vmem:[%s2 + $0x8c] sm:$0xf]
      %v833 = vld [vmem:[%s2 + $0x90] sm:$0xf]
      %v834 = vld [vmem:[%s2 + $0x94] sm:$0xf]
      %v835 = vld [vmem:[%s2 + $0x98] sm:$0xf]
      %v836 = vld [vmem:[%s2 + $0x9c] sm:$0xf]
      %v837 = vld [vmem:[%s2 + $0xa0] sm:$0xf]
      %v838 = vld [vmem:[%s2 + $0xa4] sm:$0xf]
      %v839 = vld [vmem:[%s2 + $0xa8] sm:$0xf]
      %v840 = vld [vmem:[%s2 + $0xac] sm:$0xf]
      %v841 = vld [vmem:[%s2 + $0xb0] sm:$0xf]
      %v842 = vld [vmem:[%s2 + $0xb4] sm:$0xf]
      %v843 = vld [vmem:[%s2 + $0xb8] sm:$0xf]
      %v844 = vld [vmem:[%s2 + $0xbc] sm:$0xf]
      %v845 = vld [vmem:[%s2 + $0xc0] sm:$0xf]
      %v846 = vld [vmem:[%s2 + $0xc4] sm:$0xf]
      %v847 = vld [vmem:[%s2 + $0xc8] sm:$0xf]
      %v848 = vld [vmem:[%s2 + $0xcc] sm:$0xf]
      %v849 = vld [vmem:[%s2 + $0xd0] sm:$0xf]
      %v850 = vld [vmem:[%s2 + $0xd4] sm:$0xf]
      %v851 = vld [vmem:[%s2 + $0xd8] sm:$0xf]
      %v852 = vld [vmem:[%s2 + $0xdc] sm:$0xf]
      %v853 = vld [vmem:[%s2 + $0xe0] sm:$0xf]
      %v854 = vld [vmem:[%s2 + $0xe4] sm:$0xf]
      %v855 = vld [vmem:[%s2 + $0xe8] sm:$0xf]
      %v856 = vld [vmem:[%s2 + $0xec] sm:$0xf]
      %v857 = vld [vmem:[%s2 + $0xf0] sm:$0xf]
      %v858 = vld [vmem:[%s2 + $0xf4] sm:$0xf]
      %v859 = vld [vmem:[%s2 + $0xf8] sm:$0xf]
      %v860 = vld [vmem:[%s2 + $0xfc] sm:$0xf]
      %v861 = vld [vmem:[%s2 + $0x100] sm:$0xf]
      %v862 = vld [vmem:[%s2 + $0x104] sm:$0xf]
      %v863 = vld [vmem:[%s2 + $0x108] sm:$0xf]
      %v864 = vld [vmem:[%s2 + $0x10c] sm:$0xf]
      %v865 = vld [vmem:[%s2 + $0x110] sm:$0xf]
      %v866 = vld [vmem:[%s2 + $0x114] sm:$0xf]
      %v867 = vld [vmem:[%s2 + $0x118] sm:$0xf]
      %v868 = vld [vmem:[%s2 + $0x11c] sm:$0xf]
      %v869 = vld [vmem:[%s2 + $0x120] sm:$0xf]
      %v870 = vld [vmem:[%s2 + $0x124] sm:$0xf]
      %v871 = vld [vmem:[%s2 + $0x128] sm:$0xf]
      %v872 = vld [vmem:[%s2 + $0x12c] sm:$0xf]
      %v873 = vld [vmem:[%s2 + $0x130] sm:$0xf]
      %v874 = vld [vmem:[%s2 + $0x134] sm:$0xf]
      %v875 = vld [vmem:[%s2 + $0x138] sm:$0xf]
      %v876 = vld [vmem:[%s2 + $0x13c] sm:$0xf]
      %v877 = vld [vmem:[%s2 + $0x140] sm:$0xf]
      %v878 = vld [vmem:[%s2 + $0x144] sm:$0xf]
      %v879 = vld [vmem:[%s2 + $0x148] sm:$0xf]
      %v880 = vld [vmem:[%s2 + $0x14c] sm:$0xf]
      %v881 = vld [vmem:[%s2 + $0x150] sm:$0xf]
      %v882 = vld [vmem:[%s2 + $0x154] sm:$0xf]
      %v883 = vld [vmem:[%s2 + $0x158] sm:$0xf]
      %v884 = vld [vmem:[%s2 + $0x15c] sm:$0xf]
      %v885 = vld [vmem:[%s2 + $0x160] sm:$0xf]
      %v886 = vld [vmem:[%s2 + $0x164] sm:$0xf]
      %v887 = vld [vmem:[%s2 + $0x168] sm:$0xf]
      %v888 = vld [vmem:[%s2 + $0x16c] sm:$0xf]
      %v889 = vld [vmem:[%s2 + $0x170] sm:$0xf]
      %v890 = vld [vmem:[%s2 + $0x174] sm:$0xf]
      %v891 = vld [vmem:[%s2 + $0x178] sm:$0xf]
      %v892 = vld [vmem:[%s2 + $0x17c] sm:$0xf]
      %v893 = vld [vmem:[%s2 + $0x180] sm:$0xf]
      %v894 = vld [vmem:[%s2 + $0x184] sm:$0xf]
      %v895 = vld [vmem:[%s2 + $0x188] sm:$0xf]
      %v896 = vld [vmem:[%s2 + $0x18c] sm:$0xf]
      %v897 = vld [vmem:[%s2 + $0x190] sm:$0xf]
      %v898 = vld [vmem:[%s2 + $0x194] sm:$0xf]
      %v899 = vld [vmem:[%s2 + $0x198] sm:$0xf]
      %v900 = vld [vmem:[%s2 + $0x19c] sm:$0xf]
      %v901 = vld [vmem:[%s2 + $0x1a0] sm:$0xf]
      %v902 = vld [vmem:[%s2 + $0x1a4] sm:$0xf]
      %v903 = vld [vmem:[%s2 + $0x1a8] sm:$0xf]
      %v904 = vld [vmem:[%s2 + $0x1ac] sm:$0xf]
      %v905 = vld [vmem:[%s2 + $0x1b0] sm:$0xf]
      %v906 = vld [vmem:[%s2 + $0x1b4] sm:$0xf]
      %v907 = vld [vmem:[%s2 + $0x1b8] sm:$0xf]
      %v908 = vld [vmem:[%s2 + $0x1bc] sm:$0xf]
      %v909 = vld [vmem:[%s2 + $0x1c0] sm:$0xf]
      %v910 = vld [vmem:[%s2 + $0x1c4] sm:$0xf]
      %v911 = vld [vmem:[%s2 + $0x1c8] sm:$0xf]
      %v912 = vld [vmem:[%s2 + $0x1cc] sm:$0xf]
      %v913 = vld [vmem:[%s2 + $0x1d0] sm:$0xf]
      %v914 = vld [vmem:[%s2 + $0x1d4] sm:$0xf]
      %v915 = vld [vmem:[%s2 + $0x1d8] sm:$0xf]
      %v916 = vld [vmem:[%s2 + $0x1dc] sm:$0xf]
      %v917 = vld [vmem:[%s2 + $0x1e0] sm:$0xf]
      %v918 = vld [vmem:[%s2 + $0x1e4] sm:$0xf]
      %v919 = vld [vmem:[%s2 + $0x1e8] sm:$0xf]
      %v920 = vld [vmem:[%s2 + $0x1ec] sm:$0xf]
      %v921 = vld [vmem:[%s2 + $0x1f0] sm:$0xf]
      %v922 = vld [vmem:[%s2 + $0x1f4] sm:$0xf]
      %v923 = vld [vmem:[%s2 + $0x1f8] sm:$0xf]
      %v924 = vld [vmem:[%s2 + $0x1fc] sm:$0xf]
      %v925 = vld [vmem:[%s3] sm:$0x1]
      %v927 = vlaneseq
      %v928 = vshrl.u32 %v927, 7
      %v929 = vsub.s32 0, %v928
      %v930 = vrot.slane %v925, %v929
      %v1060 = vunpack.c.l.b16 %v797
      %v1061 = vunpack.c.l.b16 %v798
      %v1062 = vunpack.c.l.b16 %v799
      %v1063 = vunpack.c.l.b16 %v800
      %v1064 = vunpack.c.l.b16 %v801
      %v1065 = vunpack.c.l.b16 %v802
      %v1066 = vunpack.c.l.b16 %v803
      %v1067 = vunpack.c.l.b16 %v804
      %v1068 = vunpack.c.l.b16 %v805
      %v1069 = vunpack.c.l.b16 %v806
      %v1070 = vunpack.c.l.b16 %v807
      %v1071 = vunpack.c.l.b16 %v808
      %v1072 = vunpack.c.l.b16 %v809
      %v1073 = vunpack.c.l.b16 %v810
      %v1074 = vunpack.c.l.b16 %v811
      %v1075 = vunpack.c.l.b16 %v812
      %v1076 = vunpack.c.l.b16 %v813
      %v1077 = vunpack.c.l.b16 %v814
      %v1078 = vunpack.c.l.b16 %v815
      %v1079 = vunpack.c.l.b16 %v816
      %v1080 = vunpack.c.l.b16 %v817
      %v1081 = vunpack.c.l.b16 %v818
      %v1082 = vunpack.c.l.b16 %v819
      %v1083 = vunpack.c.l.b16 %v820
      %v1084 = vunpack.c.l.b16 %v821
      %v1085 = vunpack.c.l.b16 %v822
      %v1086 = vunpack.c.l.b16 %v823
      %v1087 = vunpack.c.l.b16 %v824
      %v1088 = vunpack.c.l.b16 %v825
      %v1089 = vunpack.c.l.b16 %v826
      %v1090 = vunpack.c.l.b16 %v827
      %v1091 = vunpack.c.l.b16 %v828
      %v1092 = vunpack.c.l.b16 %v829
      %v1093 = vunpack.c.l.b16 %v830
      %v1094 = vunpack.c.l.b16 %v831
      %v1095 = vunpack.c.l.b16 %v832
      %v1096 = vunpack.c.l.b16 %v833
      %v1097 = vunpack.c.l.b16 %v834
      %v1098 = vunpack.c.l.b16 %v835
      %v1099 = vunpack.c.l.b16 %v836
      %v1100 = vunpack.c.l.b16 %v837
      %v1101 = vunpack.c.l.b16 %v838
      %v1102 = vunpack.c.l.b16 %v839
      %v1103 = vunpack.c.l.b16 %v840
      %v1104 = vunpack.c.l.b16 %v841
      %v1105 = vunpack.c.l.b16 %v842
      %v1106 = vunpack.c.l.b16 %v843
      %v1107 = vunpack.c.l.b16 %v844
      %v1108 = vunpack.c.l.b16 %v845
      %v1109 = vunpack.c.l.b16 %v846
      %v1110 = vunpack.c.l.b16 %v847
      %v1111 = vunpack.c.l.b16 %v848
      %v1112 = vunpack.c.l.b16 %v849
      %v1113 = vunpack.c.l.b16 %v850
      %v1114 = vunpack.c.l.b16 %v851
      %v1115 = vunpack.c.l.b16 %v852
      %v1116 = vunpack.c.l.b16 %v853
      %v1117 = vunpack.c.l.b16 %v854
      %v1118 = vunpack.c.l.b16 %v855
      %v1119 = vunpack.c.l.b16 %v856
      %v1120 = vunpack.c.l.b16 %v857
      %v1121 = vunpack.c.l.b16 %v858
      %v1122 = vunpack.c.l.b16 %v859
      %v1123 = vunpack.c.l.b16 %v860
      %v1124 = vunpack.c.l.b16 %v861
      %v1125 = vunpack.c.l.b16 %v862
      %v1126 = vunpack.c.l.b16 %v863
      %v1127 = vunpack.c.l.b16 %v864
      %v1128 = vunpack.c.l.b16 %v865
      %v1129 = vunpack.c.l.b16 %v866
      %v1130 = vunpack.c.l.b16 %v867
      %v1131 = vunpack.c.l.b16 %v868
      %v1132 = vunpack.c.l.b16 %v869
      %v1133 = vunpack.c.l.b16 %v870
      %v1134 = vunpack.c.l.b16 %v871
      %v1135 = vunpack.c.l.b16 %v872
      %v1136 = vunpack.c.l.b16 %v873
      %v1137 = vunpack.c.l.b16 %v874
      %v1138 = vunpack.c.l.b16 %v875
      %v1139 = vunpack.c.l.b16 %v876
      %v1140 = vunpack.c.l.b16 %v877
      %v1141 = vunpack.c.l.b16 %v878
      %v1142 = vunpack.c.l.b16 %v879
      %v1143 = vunpack.c.l.b16 %v880
      %v1144 = vunpack.c.l.b16 %v881
      %v1145 = vunpack.c.l.b16 %v882
      %v1146 = vunpack.c.l.b16 %v883
      %v1147 = vunpack.c.l.b16 %v884
      %v1148 = vunpack.c.l.b16 %v885
      %v1149 = vunpack.c.l.b16 %v886
      %v1150 = vunpack.c.l.b16 %v887
      %v1151 = vunpack.c.l.b16 %v888
      %v1152 = vunpack.c.l.b16 %v889
      %v1153 = vunpack.c.l.b16 %v890
      %v1154 = vunpack.c.l.b16 %v891
      %v1155 = vunpack.c.l.b16 %v892
      %v1156 = vunpack.c.l.b16 %v893
      %v1157 = vunpack.c.l.b16 %v894
      %v1158 = vunpack.c.l.b16 %v895
      %v1159 = vunpack.c.l.b16 %v896
      %v1160 = vunpack.c.l.b16 %v897
      %v1161 = vunpack.c.l.b16 %v898
      %v1162 = vunpack.c.l.b16 %v899
      %v1163 = vunpack.c.l.b16 %v900
      %v1164 = vunpack.c.l.b16 %v901
      %v1165 = vunpack.c.l.b16 %v902
      %v1166 = vunpack.c.l.b16 %v903
      %v1167 = vunpack.c.l.b16 %v904
      %v1168 = vunpack.c.l.b16 %v905
      %v1169 = vunpack.c.l.b16 %v906
      %v1170 = vunpack.c.l.b16 %v907
      %v1171 = vunpack.c.l.b16 %v908
      %v1172 = vunpack.c.l.b16 %v909
      %v1173 = vunpack.c.l.b16 %v910
      %v1174 = vunpack.c.l.b16 %v911
      %v1175 = vunpack.c.l.b16 %v912
      %v1176 = vunpack.c.l.b16 %v913
      %v1177 = vunpack.c.l.b16 %v914
      %v1178 = vunpack.c.l.b16 %v915
      %v1179 = vunpack.c.l.b16 %v916
      %v1180 = vunpack.c.l.b16 %v917
      %v1181 = vunpack.c.l.b16 %v918
      %v1182 = vunpack.c.l.b16 %v919
      %v1183 = vunpack.c.l.b16 %v920
      %v1184 = vunpack.c.l.b16 %v921
      %v1185 = vunpack.c.l.b16 %v922
      %v1186 = vunpack.c.l.b16 %v923
      %v1187 = vunpack.c.l.b16 %v924
      %v1188 = vpack.c.b16 %v1061, %v1060
      %v1189 = vpack.c.b16 %v1063, %v1062
      %v1190 = vpack.c.b16 %v1065, %v1064
      %v1191 = vpack.c.b16 %v1067, %v1066
      %v1192 = vpack.c.b16 %v1069, %v1068
      %v1193 = vpack.c.b16 %v1071, %v1070
      %v1194 = vpack.c.b16 %v1073, %v1072
      %v1195 = vpack.c.b16 %v1075, %v1074
      %v1196 = vpack.c.b16 %v1077, %v1076
      %v1197 = vpack.c.b16 %v1079, %v1078
      %v1198 = vpack.c.b16 %v1081, %v1080
      %v1199 = vpack.c.b16 %v1083, %v1082
      %v1200 = vpack.c.b16 %v1085, %v1084
      %v1201 = vpack.c.b16 %v1087, %v1086
      %v1202 = vpack.c.b16 %v1089, %v1088
      %v1203 = vpack.c.b16 %v1091, %v1090
      %v1204 = vpack.c.b16 %v1093, %v1092
      %v1205 = vpack.c.b16 %v1095, %v1094
      %v1206 = vpack.c.b16 %v1097, %v1096
      %v1207 = vpack.c.b16 %v1099, %v1098
      %v1208 = vpack.c.b16 %v1101, %v1100
      %v1209 = vpack.c.b16 %v1103, %v1102
      %v1210 = vpack.c.b16 %v1105, %v1104
      %v1211 = vpack.c.b16 %v1107, %v1106
      %v1212 = vpack.c.b16 %v1109, %v1108
      %v1213 = vpack.c.b16 %v1111, %v1110
      %v1214 = vpack.c.b16 %v1113, %v1112
      %v1215 = vpack.c.b16 %v1115, %v1114
      %v1216 = vpack.c.b16 %v1117, %v1116
      %v1217 = vpack.c.b16 %v1119, %v1118
      %v1218 = vpack.c.b16 %v1121, %v1120
      %v1219 = vpack.c.b16 %v1123, %v1122
      %v1220 = vpack.c.b16 %v1125, %v1124
      %v1221 = vpack.c.b16 %v1127, %v1126
      %v1222 = vpack.c.b16 %v1129, %v1128
      %v1223 = vpack.c.b16 %v1131, %v1130
      %v1224 = vpack.c.b16 %v1133, %v1132
      %v1225 = vpack.c.b16 %v1135, %v1134
      %v1226 = vpack.c.b16 %v1137, %v1136
      %v1227 = vpack.c.b16 %v1139, %v1138
      %v1228 = vpack.c.b16 %v1141, %v1140
      %v1229 = vpack.c.b16 %v1143, %v1142
      %v1230 = vpack.c.b16 %v1145, %v1144
      %v1231 = vpack.c.b16 %v1147, %v1146
      %v1232 = vpack.c.b16 %v1149, %v1148
      %v1233 = vpack.c.b16 %v1151, %v1150
      %v1234 = vpack.c.b16 %v1153, %v1152
      %v1235 = vpack.c.b16 %v1155, %v1154
      %v1236 = vpack.c.b16 %v1157, %v1156
      %v1237 = vpack.c.b16 %v1159, %v1158
      %v1238 = vpack.c.b16 %v1161, %v1160
      %v1239 = vpack.c.b16 %v1163, %v1162
      %v1240 = vpack.c.b16 %v1165, %v1164
      %v1241 = vpack.c.b16 %v1167, %v1166
      %v1242 = vpack.c.b16 %v1169, %v1168
      %v1243 = vpack.c.b16 %v1171, %v1170
      %v1244 = vpack.c.b16 %v1173, %v1172
      %v1245 = vpack.c.b16 %v1175, %v1174
      %v1246 = vpack.c.b16 %v1177, %v1176
      %v1247 = vpack.c.b16 %v1179, %v1178
      %v1248 = vpack.c.b16 %v1181, %v1180
      %v1249 = vpack.c.b16 %v1183, %v1182
      %v1250 = vpack.c.b16 %v1185, %v1184
      %v1251 = vpack.c.b16 %v1187, %v1186
      %1316 = vmatprep.subr.bf16.mxu0 0
      %1317 = vmatpush1.bf16.msra.mxu0 %v1188
      %1318 = vmatprep.subr.bf16.mxu0 0
      %1319 = vmatpush1.bf16.msra.mxu0 %v1189
      %1320 = vmatprep.subr.bf16.mxu0 0
      %1321 = vmatpush1.bf16.msra.mxu0 %v1190
      %1322 = vmatprep.subr.bf16.mxu0 0
      %1323 = vmatpush1.bf16.msra.mxu0 %v1191
      %1324 = vmatprep.subr.bf16.mxu0 0
      %1325 = vmatpush1.bf16.msra.mxu0 %v1192
      %1326 = vmatprep.subr.bf16.mxu0 0
      %1327 = vmatpush1.bf16.msra.mxu0 %v1193
      %1328 = vmatprep.subr.bf16.mxu0 0
      %1329 = vmatpush1.bf16.msra.mxu0 %v1194
      %1330 = vmatprep.subr.bf16.mxu0 0
      %1331 = vmatpush1.bf16.msra.mxu0 %v1195
      %1332 = vmatprep.subr.bf16.mxu0 0
      %1333 = vmatpush1.bf16.msra.mxu0 %v1196
      %1334 = vmatprep.subr.bf16.mxu0 0
      %1335 = vmatpush1.bf16.msra.mxu0 %v1197
      %1336 = vmatprep.subr.bf16.mxu0 0
      %1337 = vmatpush1.bf16.msra.mxu0 %v1198
      %1338 = vmatprep.subr.bf16.mxu0 0
      %1339 = vmatpush1.bf16.msra.mxu0 %v1199
      %1340 = vmatprep.subr.bf16.mxu0 0
      %1341 = vmatpush1.bf16.msra.mxu0 %v1200
      %1342 = vmatprep.subr.bf16.mxu0 0
      %1343 = vmatpush1.bf16.msra.mxu0 %v1201
      %1344 = vmatprep.subr.bf16.mxu0 0
      %1345 = vmatpush1.bf16.msra.mxu0 %v1202
      %1346 = vmatprep.subr.bf16.mxu0 0
      %1347 = vmatpush1.bf16.msra.mxu0 %v1203
      %1348 = vmatprep.mubr.bf16.mxu0 %v742
      %1349 = vmatmul.mubr.bf16.gmra.mrb[0].mxu0 %v741
      %v1350 = vpop.f32.mrb[0].mxu0
      %v1351 = vadd.f32 %v930, %v1350
      %v1352 = vpop.f32.mrb[0].mxu0
      %v1353 = vpop.f32.mrb[0].mxu0
      %v1354 = vadd.f32 %v930, %v1353
      %v1355 = vpop.f32.mrb[0].mxu0
      %1356 = vmatprep.mubr.bf16.mxu0 %v750
      %1357 = vmatmul.mubr.bf16.gmra.mrb[0].mxu0 %v749
      %v1358 = vpop.f32.mrb[0].mxu0
      %v1359 = vadd.f32 %v930, %v1358
      %v1360 = vpop.f32.mrb[0].mxu0
      %v1361 = vpop.f32.mrb[0].mxu0
      %v1362 = vadd.f32 %v930, %v1361
      %v1363 = vpop.f32.mrb[0].mxu0
      %1364 = vmatprep.mubr.bf16.mxu0 %v758
      %1365 = vmatmul.mubr.bf16.gmra.mrb[0].mxu0 %v757
      %v1366 = vpop.f32.mrb[0].mxu0
      %v1367 = vadd.f32 %v930, %v1366
      %v1368 = vpop.f32.mrb[0].mxu0
      %v1369 = vpop.f32.mrb[0].mxu0
      %v1370 = vadd.f32 %v930, %v1369
      %v1371 = vpop.f32.mrb[0].mxu0
      %1372 = vmatprep.mubr.bf16.mxu0 %v766
      %1373 = vmatmul.mubr.bf16.gmra.mrb[0].mxu0 %v765
      %v1374 = vpop.f32.mrb[0].mxu0
      %v1375 = vadd.f32 %v930, %v1374
      %v1376 = vpop.f32.mrb[0].mxu0
      %v1377 = vpop.f32.mrb[0].mxu0
      %v1378 = vadd.f32 %v930, %v1377
      %v1379 = vpop.f32.mrb[0].mxu0
      %1380 = vmatprep.mubr.bf16.mxu0 %v774
      %1381 = vmatmul.mubr.bf16.gmra.mrb[0].mxu0 %v773
      %v1382 = vpop.f32.mrb[0].mxu0
      %v1383 = vadd.f32 %v930, %v1382
      %v1384 = vpop.f32.mrb[0].mxu0
      %v1385 = vpop.f32.mrb[0].mxu0
      %v1386 = vadd.f32 %v930, %v1385
      %v1387 = vpop.f32.mrb[0].mxu0
      %1388 = vmatprep.mubr.bf16.mxu0 %v782
      %1389 = vmatmul.mubr.bf16.gmra.mrb[0].mxu0 %v781
      %v1390 = vpop.f32.mrb[0].mxu0
      %v1391 = vadd.f32 %v930, %v1390
      %v1392 = vpop.f32.mrb[0].mxu0
      %v1393 = vpop.f32.mrb[0].mxu0
      %v1394 = vadd.f32 %v930, %v1393
      %v1395 = vpop.f32.mrb[0].mxu0
      %1396 = vmatprep.mubr.bf16.mxu0 %v790
      %1397 = vmatmul.mubr.bf16.gmra.mrb[0].mxu0 %v789
      %v1398 = vpop.f32.mrb[0].mxu0
      %v1399 = vadd.f32 %v930, %v1398
      %v1400 = vpop.f32.mrb[0].mxu0
      %v1401 = vpop.f32.mrb[0].mxu0
      %v1402 = vpop.f32.mrb[0].mxu0
      %1403 = vdwg.mxu0
      %1404 = vmatprep.subr.bf16.mxu0 0
      %1405 = vmatpush1.bf16.msra.mxu0 %v1204
      %1406 = vmatprep.subr.bf16.mxu0 0
      %1407 = vmatpush1.bf16.msra.mxu0 %v1205
      %1408 = vmatprep.subr.bf16.mxu0 0
      %1409 = vmatpush1.bf16.msra.mxu0 %v1206
      %1410 = vmatprep.subr.bf16.mxu0 0
      %1411 = vmatpush1.bf16.msra.mxu0 %v1207
      %1412 = vmatprep.subr.bf16.mxu0 0
      %1413 = vmatpush1.bf16.msra.mxu0 %v1208
      %1414 = vmatprep.subr.bf16.mxu0 0
      %1415 = vmatpush1.bf16.msra.mxu0 %v1209
      %1416 = vmatprep.subr.bf16.mxu0 0
      %1417 = vmatpush1.bf16.msra.mxu0 %v1210
      %1418 = vmatprep.subr.bf16.mxu0 0
      %1419 = vmatpush1.bf16.msra.mxu0 %v1211
      %1420 = vmatprep.subr.bf16.mxu0 0
      %1421 = vmatpush1.bf16.msra.mxu0 %v1212
      %1422 = vmatprep.subr.bf16.mxu0 0
      %1423 = vmatpush1.bf16.msra.mxu0 %v1213
      %1424 = vmatprep.subr.bf16.mxu0 0
      %1425 = vmatpush1.bf16.msra.mxu0 %v1214
      %1426 = vmatprep.subr.bf16.mxu0 0
      %1427 = vmatpush1.bf16.msra.mxu0 %v1215
      %1428 = vmatprep.subr.bf16.mxu0 0
      %1429 = vmatpush1.bf16.msra.mxu0 %v1216
      %1430 = vmatprep.subr.bf16.mxu0 0
      %1431 = vmatpush1.bf16.msra.mxu0 %v1217
      %1432 = vmatprep.subr.bf16.mxu0 0
      %1433 = vmatpush1.bf16.msra.mxu0 %v1218
      %1434 = vmatprep.subr.bf16.mxu0 0
      %1435 = vmatpush1.bf16.msra.mxu0 %v1219
      %1436 = vmatprep.mubr.bf16.mxu0 %v744
      %1437 = vmatmul.mubr.bf16.gmra.mrb[0].mxu0 %v743
      %v1438 = vpop.f32.mrb[0].mxu0
      %v1439 = vadd.f32 %v1351, %v1438
      %v1440 = vpop.f32.mrb[0].mxu0
      %v1441 = vpop.f32.mrb[0].mxu0
      %v1442 = vadd.f32 %v1354, %v1441
      %v1443 = vpop.f32.mrb[0].mxu0
      %1444 = vmatprep.mubr.bf16.mxu0 %v752
      %1445 = vmatmul.mubr.bf16.gmra.mrb[0].mxu0 %v751
      %v1446 = vpop.f32.mrb[0].mxu0
      %v1447 = vadd.f32 %v1359, %v1446
      %v1448 = vpop.f32.mrb[0].mxu0
      %v1449 = vpop.f32.mrb[0].mxu0
      %v1450 = vadd.f32 %v1362, %v1449
      %v1451 = vpop.f32.mrb[0].mxu0
      %1452 = vmatprep.mubr.bf16.mxu0 %v760
      %1453 = vmatmul.mubr.bf16.gmra.mrb[0].mxu0 %v759
      %v1454 = vpop.f32.mrb[0].mxu0
      %v1455 = vadd.f32 %v1367, %v1454
      %v1456 = vpop.f32.mrb[0].mxu0
      %v1457 = vpop.f32.mrb[0].mxu0
      %v1458 = vadd.f32 %v1370, %v1457
      %v1459 = vpop.f32.mrb[0].mxu0
      %1460 = vmatprep.mubr.bf16.mxu0 %v768
      %1461 = vmatmul.mubr.bf16.gmra.mrb[0].mxu0 %v767
      %v1462 = vpop.f32.mrb[0].mxu0
      %v1463 = vadd.f32 %v1375, %v1462
      %v1464 = vpop.f32.mrb[0].mxu0
      %v1465 = vpop.f32.mrb[0].mxu0
      %v1466 = vadd.f32 %v1378, %v1465
      %v1467 = vpop.f32.mrb[0].mxu0
      %1468 = vmatprep.mubr.bf16.mxu0 %v776
      %1469 = vmatmul.mubr.bf16.gmra.mrb[0].mxu0 %v775
      %v1470 = vpop.f32.mrb[0].mxu0
      %v1471 = vadd.f32 %v1383, %v1470
      %v1472 = vpop.f32.mrb[0].mxu0
      %v1473 = vpop.f32.mrb[0].mxu0
      %v1474 = vadd.f32 %v1386, %v1473
      %v1475 = vpop.f32.mrb[0].mxu0
      %1476 = vmatprep.mubr.bf16.mxu0 %v784
      %1477 = vmatmul.mubr.bf16.gmra.mrb[0].mxu0 %v783
      %v1478 = vpop.f32.mrb[0].mxu0
      %v1479 = vadd.f32 %v1391, %v1478
      %v1480 = vpop.f32.mrb[0].mxu0
      %v1481 = vpop.f32.mrb[0].mxu0
      %v1482 = vadd.f32 %v1394, %v1481
      %v1483 = vpop.f32.mrb[0].mxu0
      %1484 = vmatprep.mubr.bf16.mxu0 %v792
      %1485 = vmatmul.mubr.bf16.gmra.mrb[0].mxu0 %v791
      %v1486 = vpop.f32.mrb[0].mxu0
      %v1487 = vadd.f32 %v1399, %v1486
      %v1488 = vpop.f32.mrb[0].mxu0
      %v1489 = vpop.f32.mrb[0].mxu0
      %v1490 = vpop.f32.mrb[0].mxu0
      %1491 = vdwg.mxu0
      %1492 = vmatprep.subr.bf16.mxu0 0
      %1493 = vmatpush1.bf16.msra.mxu0 %v1220
      %1494 = vmatprep.subr.bf16.mxu0 0
      %1495 = vmatpush1.bf16.msra.mxu0 %v1221
      %1496 = vmatprep.subr.bf16.mxu0 0
      %1497 = vmatpush1.bf16.msra.mxu0 %v1222
      %1498 = vmatprep.subr.bf16.mxu0 0
      %1499 = vmatpush1.bf16.msra.mxu0 %v1223
      %1500 = vmatprep.subr.bf16.mxu0 0
      %1501 = vmatpush1.bf16.msra.mxu0 %v1224
      %1502 = vmatprep.subr.bf16.mxu0 0
      %1503 = vmatpush1.bf16.msra.mxu0 %v1225
      %1504 = vmatprep.subr.bf16.mxu0 0
      %1505 = vmatpush1.bf16.msra.mxu0 %v1226
      %1506 = vmatprep.subr.bf16.mxu0 0
      %1507 = vmatpush1.bf16.msra.mxu0 %v1227
      %1508 = vmatprep.subr.bf16.mxu0 0
      %1509 = vmatpush1.bf16.msra.mxu0 %v1228
      %1510 = vmatprep.subr.bf16.mxu0 0
      %1511 = vmatpush1.bf16.msra.mxu0 %v1229
      %1512 = vmatprep.subr.bf16.mxu0 0
      %1513 = vmatpush1.bf16.msra.mxu0 %v1230
      %1514 = vmatprep.subr.bf16.mxu0 0
      %1515 = vmatpush1.bf16.msra.mxu0 %v1231
      %1516 = vmatprep.subr.bf16.mxu0 0
      %1517 = vmatpush1.bf16.msra.mxu0 %v1232
      %1518 = vmatprep.subr.bf16.mxu0 0
      %1519 = vmatpush1.bf16.msra.mxu0 %v1233
      %1520 = vmatprep.subr.bf16.mxu0 0
      %1521 = vmatpush1.bf16.msra.mxu0 %v1234
      %1522 = vmatprep.subr.bf16.mxu0 0
      %1523 = vmatpush1.bf16.msra.mxu0 %v1235
      %1524 = vmatprep.mubr.bf16.mxu0 %v746
      %1525 = vmatmul.mubr.bf16.gmra.mrb[0].mxu0 %v745
      %v1526 = vpop.f32.mrb[0].mxu0
      %v1527 = vadd.f32 %v1439, %v1526
      %v1528 = vpop.f32.mrb[0].mxu0
      %v1529 = vpop.f32.mrb[0].mxu0
      %v1530 = vadd.f32 %v1442, %v1529
      %v1531 = vpop.f32.mrb[0].mxu0
      %1532 = vmatprep.mubr.bf16.mxu0 %v754
      %1533 = vmatmul.mubr.bf16.gmra.mrb[0].mxu0 %v753
      %v1534 = vpop.f32.mrb[0].mxu0
      %v1535 = vadd.f32 %v1447, %v1534
      %v1536 = vpop.f32.mrb[0].mxu0
      %v1537 = vpop.f32.mrb[0].mxu0
      %v1538 = vadd.f32 %v1450, %v1537
      %v1539 = vpop.f32.mrb[0].mxu0
      %1540 = vmatprep.mubr.bf16.mxu0 %v762
      %1541 = vmatmul.mubr.bf16.gmra.mrb[0].mxu0 %v761
      %v1542 = vpop.f32.mrb[0].mxu0
      %v1543 = vadd.f32 %v1455, %v1542
      %v1544 = vpop.f32.mrb[0].mxu0
      %v1545 = vpop.f32.mrb[0].mxu0
      %v1546 = vadd.f32 %v1458, %v1545
      %v1547 = vpop.f32.mrb[0].mxu0
      %1548 = vmatprep.mubr.bf16.mxu0 %v770
      %1549 = vmatmul.mubr.bf16.gmra.mrb[0].mxu0 %v769
      %v1550 = vpop.f32.mrb[0].mxu0
      %v1551 = vadd.f32 %v1463, %v1550
      %v1552 = vpop.f32.mrb[0].mxu0
      %v1553 = vpop.f32.mrb[0].mxu0
      %v1554 = vadd.f32 %v1466, %v1553
      %v1555 = vpop.f32.mrb[0].mxu0
      %1556 = vmatprep.mubr.bf16.mxu0 %v778
      %1557 = vmatmul.mubr.bf16.gmra.mrb[0].mxu0 %v777
      %v1558 = vpop.f32.mrb[0].mxu0
      %v1559 = vadd.f32 %v1471, %v1558
      %v1560 = vpop.f32.mrb[0].mxu0
      %v1561 = vpop.f32.mrb[0].mxu0
      %v1562 = vadd.f32 %v1474, %v1561
      %v1563 = vpop.f32.mrb[0].mxu0
      %1564 = vmatprep.mubr.bf16.mxu0 %v786
      %1565 = vmatmul.mubr.bf16.gmra.mrb[0].mxu0 %v785
      %v1566 = vpop.f32.mrb[0].mxu0
      %v1567 = vadd.f32 %v1479, %v1566
      %v1568 = vpop.f32.mrb[0].mxu0
      %v1569 = vpop.f32.mrb[0].mxu0
      %v1570 = vadd.f32 %v1482, %v1569
      %v1571 = vpop.f32.mrb[0].mxu0
      %1572 = vmatprep.mubr.bf16.mxu0 %v794
      %1573 = vmatmul.mubr.bf16.gmra.mrb[0].mxu0 %v793
      %v1574 = vpop.f32.mrb[0].mxu0
      %v1575 = vadd.f32 %v1487, %v1574
      %v1576 = vpop.f32.mrb[0].mxu0
      %v1577 = vpop.f32.mrb[0].mxu0
      %v1578 = vpop.f32.mrb[0].mxu0
      %1579 = vdwg.mxu0
      %1580 = vmatprep.subr.bf16.mxu0 0
      %1581 = vmatpush1.bf16.msra.mxu0 %v1236
      %1582 = vmatprep.subr.bf16.mxu0 0
      %1583 = vmatpush1.bf16.msra.mxu0 %v1237
      %1584 = vmatprep.subr.bf16.mxu0 0
      %1585 = vmatpush1.bf16.msra.mxu0 %v1238
      %1586 = vmatprep.subr.bf16.mxu0 0
      %1587 = vmatpush1.bf16.msra.mxu0 %v1239
      %1588 = vmatprep.subr.bf16.mxu0 0
      %1589 = vmatpush1.bf16.msra.mxu0 %v1240
      %1590 = vmatprep.subr.bf16.mxu0 0
      %1591 = vmatpush1.bf16.msra.mxu0 %v1241
      %1592 = vmatprep.subr.bf16.mxu0 0
      %1593 = vmatpush1.bf16.msra.mxu0 %v1242
      %1594 = vmatprep.subr.bf16.mxu0 0
      %1595 = vmatpush1.bf16.msra.mxu0 %v1243
      %1596 = vmatprep.subr.bf16.mxu0 0
      %1597 = vmatpush1.bf16.msra.mxu0 %v1244
      %1598 = vmatprep.subr.bf16.mxu0 0
      %1599 = vmatpush1.bf16.msra.mxu0 %v1245
      %1600 = vmatprep.subr.bf16.mxu0 0
      %1601 = vmatpush1.bf16.msra.mxu0 %v1246
      %1602 = vmatprep.subr.bf16.mxu0 0
      %1603 = vmatpush1.bf16.msra.mxu0 %v1247
      %1604 = vmatprep.subr.bf16.mxu0 0
      %1605 = vmatpush1.bf16.msra.mxu0 %v1248
      %1606 = vmatprep.subr.bf16.mxu0 0
      %1607 = vmatpush1.bf16.msra.mxu0 %v1249
      %1608 = vmatprep.subr.bf16.mxu0 0
      %1609 = vmatpush1.bf16.msra.mxu0 %v1250
      %1610 = vmatprep.subr.bf16.mxu0 0
      %1611 = vmatpush1.bf16.msra.mxu0 %v1251
      %1612 = vmatprep.mubr.bf16.mxu0 %v748
      %1613 = vmatmul.mubr.bf16.gmra.mrb[0].mxu0 %v747
      %v1614 = vpop.f32.mrb[0].mxu0
      %v1615 = vadd.f32 %v1527, %v1614
      %v1616 = vpop.f32.mrb[0].mxu0
      %v1617 = vpop.f32.mrb[0].mxu0
      %v1618 = vadd.f32 %v1530, %v1617
      %v1619 = vpop.f32.mrb[0].mxu0
      %1620 = vmatprep.mubr.bf16.mxu0 %v756
      %1621 = vmatmul.mubr.bf16.gmra.mrb[0].mxu0 %v755
      %v1622 = vpop.f32.mrb[0].mxu0
      %v1623 = vadd.f32 %v1535, %v1622
      %v1624 = vpop.f32.mrb[0].mxu0
      %v1625 = vpop.f32.mrb[0].mxu0
      %v1626 = vadd.f32 %v1538, %v1625
      %v1627 = vpop.f32.mrb[0].mxu0
      %1628 = vmatprep.mubr.bf16.mxu0 %v764
      %1629 = vmatmul.mubr.bf16.gmra.mrb[0].mxu0 %v763
      %v1630 = vpop.f32.mrb[0].mxu0
      %v1631 = vadd.f32 %v1543, %v1630
      %v1632 = vpop.f32.mrb[0].mxu0
      %v1633 = vpop.f32.mrb[0].mxu0
      %v1634 = vadd.f32 %v1546, %v1633
      %v1635 = vpop.f32.mrb[0].mxu0
      %1636 = vmatprep.mubr.bf16.mxu0 %v772
      %1637 = vmatmul.mubr.bf16.gmra.mrb[0].mxu0 %v771
      %v1638 = vpop.f32.mrb[0].mxu0
      %v1639 = vadd.f32 %v1551, %v1638
      %v1640 = vpop.f32.mrb[0].mxu0
      %v1641 = vpop.f32.mrb[0].mxu0
      %v1642 = vadd.f32 %v1554, %v1641
      %v1643 = vpop.f32.mrb[0].mxu0
      %1644 = vmatprep.mubr.bf16.mxu0 %v780
      %1645 = vmatmul.mubr.bf16.gmra.mrb[0].mxu0 %v779
      %v1646 = vpop.f32.mrb[0].mxu0
      %v1647 = vadd.f32 %v1559, %v1646
      %v1648 = vpop.f32.mrb[0].mxu0
      %v1649 = vpop.f32.mrb[0].mxu0
      %v1650 = vadd.f32 %v1562, %v1649
      %v1651 = vpop.f32.mrb[0].mxu0
      %1652 = vmatprep.mubr.bf16.mxu0 %v788
      %1653 = vmatmul.mubr.bf16.gmra.mrb[0].mxu0 %v787
      %v1654 = vpop.f32.mrb[0].mxu0
      %v1655 = vadd.f32 %v1567, %v1654
      %v1656 = vpop.f32.mrb[0].mxu0
      %v1657 = vpop.f32.mrb[0].mxu0
      %v1658 = vadd.f32 %v1570, %v1657
      %v1659 = vpop.f32.mrb[0].mxu0
      %1660 = vmatprep.mubr.bf16.mxu0 %v796
      %1661 = vmatmul.mubr.bf16.gmra.mrb[0].mxu0 %v795
      %v1662 = vpop.f32.mrb[0].mxu0
      %v1663 = vadd.f32 %v1575, %v1662
      %v1664 = vpop.f32.mrb[0].mxu0
      %v1665 = vpop.f32.mrb[0].mxu0
      %v1666 = vpop.f32.mrb[0].mxu0
      %1667 = vdwg.mxu0
      %v1668 = vmul.f32 %v1615, 0.5
      %v1669 = vmul.f32 %v1618, 0.5
      %v1670 = vmul.f32 %v1623, 0.5
      %v1671 = vmul.f32 %v1626, 0.5
      %v1672 = vmul.f32 %v1631, 0.5
      %v1673 = vmul.f32 %v1634, 0.5
      %v1674 = vmul.f32 %v1639, 0.5
      %v1675 = vmul.f32 %v1642, 0.5
      %v1676 = vmul.f32 %v1647, 0.5
      %v1677 = vmul.f32 %v1650, 0.5
      %v1678 = vmul.f32 %v1655, 0.5
      %v1679 = vmul.f32 %v1658, 0.5
      %v1680 = vmul.f32 %v1663, 0.5
      %v1681 = vmul.f32 %v1615, 0.044715
      %v1682 = vmul.f32 %v1618, 0.044715
      %v1683 = vmul.f32 %v1623, 0.044715
      %v1684 = vmul.f32 %v1626, 0.044715
      %v1685 = vmul.f32 %v1631, 0.044715
      %v1686 = vmul.f32 %v1634, 0.044715
      %v1687 = vmul.f32 %v1639, 0.044715
      %v1688 = vmul.f32 %v1642, 0.044715
      %v1689 = vmul.f32 %v1647, 0.044715
      %v1690 = vmul.f32 %v1650, 0.044715
      %v1691 = vmul.f32 %v1655, 0.044715
      %v1692 = vmul.f32 %v1658, 0.044715
      %v1693 = vmul.f32 %v1663, 0.044715
      %v1694 = vmul.f32 %v1681, %v1615
      %v1695 = vmul.f32 %v1682, %v1618
      %v1696 = vmul.f32 %v1683, %v1623
      %v1697 = vmul.f32 %v1684, %v1626
      %v1698 = vmul.f32 %v1685, %v1631
      %v1699 = vmul.f32 %v1686, %v1634
      %v1700 = vmul.f32 %v1687, %v1639
      %v1701 = vmul.f32 %v1688, %v1642
      %v1702 = vmul.f32 %v1689, %v1647
      %v1703 = vmul.f32 %v1690, %v1650
      %v1704 = vmul.f32 %v1691, %v1655
      %v1705 = vmul.f32 %v1692, %v1658
      %v1706 = vmul.f32 %v1693, %v1663
      %v1707 = vmul.f32 %v1694, %v1615
      %v1708 = vmul.f32 %v1695, %v1618
      %v1709 = vmul.f32 %v1696, %v1623
      %v1710 = vmul.f32 %v1697, %v1626
      %v1711 = vmul.f32 %v1698, %v1631
      %v1712 = vmul.f32 %v1699, %v1634
      %v1713 = vmul.f32 %v1700, %v1639
      %v1714 = vmul.f32 %v1701, %v1642
      %v1715 = vmul.f32 %v1702, %v1647
      %v1716 = vmul.f32 %v1703, %v1650
      %v1717 = vmul.f32 %v1704, %v1655
      %v1718 = vmul.f32 %v1705, %v1658
      %v1719 = vmul.f32 %v1706, %v1663
      %v1720 = vadd.f32 %v1615, %v1707
      %v1721 = vadd.f32 %v1618, %v1708
      %v1722 = vadd.f32 %v1623, %v1709
      %v1723 = vadd.f32 %v1626, %v1710
      %v1724 = vadd.f32 %v1631, %v1711
      %v1725 = vadd.f32 %v1634, %v1712
      %v1726 = vadd.f32 %v1639, %v1713
      %v1727 = vadd.f32 %v1642, %v1714
      %v1728 = vadd.f32 %v1647, %v1715
      %v1729 = vadd.f32 %v1650, %v1716
      %v1730 = vadd.f32 %v1655, %v1717
      %v1731 = vadd.f32 %v1658, %v1718
      %v1732 = vadd.f32 %v1663, %v1719
      %v1733 = vmul.f32 %v1720, 0.7978846
      %v1734 = vmul.f32 %v1721, 0.7978846
      %v1735 = vmul.f32 %v1722, 0.7978846
      %v1736 = vmul.f32 %v1723, 0.7978846
      %v1737 = vmul.f32 %v1724, 0.7978846
      %v1738 = vmul.f32 %v1725, 0.7978846
      %v1739 = vmul.f32 %v1726, 0.7978846
      %v1740 = vmul.f32 %v1727, 0.7978846
      %v1741 = vmul.f32 %v1728, 0.7978846
      %v1742 = vmul.f32 %v1729, 0.7978846
      %v1743 = vmul.f32 %v1730, 0.7978846
      %v1744 = vmul.f32 %v1731, 0.7978846
      %v1745 = vmul.f32 %v1732, 0.7978846
      %v1746 = vtanh.pop %v1733
      %v1747 = vtanh.pop %v1734
      %v1748 = vtanh.pop %v1735
      %v1749 = vtanh.pop %v1736
      %v1750 = vtanh.pop %v1737
      %v1751 = vtanh.pop %v1738
      %v1752 = vtanh.pop %v1739
      %v1753 = vtanh.pop %v1740
      %v1754 = vtanh.pop %v1741
      %v1755 = vtanh.pop %v1742
      %v1756 = vtanh.pop %v1743
      %v1757 = vtanh.pop %v1744
      %v1758 = vtanh.pop %v1745
      %v1759 = vadd.f32 %v1746, 1.0
      %v1760 = vadd.f32 %v1747, 1.0
      %v1761 = vadd.f32 %v1748, 1.0
      %v1762 = vadd.f32 %v1749, 1.0
      %v1763 = vadd.f32 %v1750, 1.0
      %v1764 = vadd.f32 %v1751, 1.0
      %v1765 = vadd.f32 %v1752, 1.0
      %v1766 = vadd.f32 %v1753, 1.0
      %v1767 = vadd.f32 %v1754, 1.0
      %v1768 = vadd.f32 %v1755, 1.0
      %v1769 = vadd.f32 %v1756, 1.0
      %v1770 = vadd.f32 %v1757, 1.0
      %v1771 = vadd.f32 %v1758, 1.0
      %v1772 = vmul.f32 %v1668, %v1759
      %v1773 = vmul.f32 %v1669, %v1760
      %v1774 = vmul.f32 %v1670, %v1761
      %v1775 = vmul.f32 %v1671, %v1762
      %v1776 = vmul.f32 %v1672, %v1763
      %v1777 = vmul.f32 %v1673, %v1764
      %v1778 = vmul.f32 %v1674, %v1765
      %v1779 = vmul.f32 %v1675, %v1766
      %v1780 = vmul.f32 %v1676, %v1767
      %v1781 = vmul.f32 %v1677, %v1768
      %v1782 = vmul.f32 %v1678, %v1769
      %v1783 = vmul.f32 %v1679, %v1770
      %v1784 = vmul.f32 %v1680, %v1771
      %1785 = vst [vmem:[#allocation2] sm:$0xff] %v1772
      %1786 = vst [vmem:[#allocation2 + $0x8] sm:$0xff] %v1773
      %1787 = vst [vmem:[#allocation2 + $0x10] sm:$0xff] %v1774
      %1788 = vst [vmem:[#allocation2 + $0x18] sm:$0xff] %v1775
      %1789 = vst [vmem:[#allocation2 + $0x20] sm:$0xff] %v1776
      %1790 = vst [vmem:[#allocation2 + $0x28] sm:$0xff] %v1777
      %1791 = vst [vmem:[#allocation2 + $0x30] sm:$0xff] %v1778
      %1792 = vst [vmem:[#allocation2 + $0x38] sm:$0xff] %v1779
      %1793 = vst [vmem:[#allocation2 + $0x40] sm:$0xff] %v1780
      %1794 = vst [vmem:[#allocation2 + $0x48] sm:$0xff] %v1781
      %1795 = vst [vmem:[#allocation2 + $0x50] sm:$0xff] %v1782
      %1796 = vst [vmem:[#allocation2 + $0x58] sm:$0xff] %v1783
      %1797 = vst [vmem:[#allocation2 + $0x60] sm:$0xf] %v1784
      %v1798 = vld [vmem:[#allocation2] ss:$3 sm:$0xff]
      %s1799 = scalar_lea.vmem [#allocation2], 24
      %v1800 = vld [vmem:[%s1799] ss:$3 sm:$0xff]
      %s1801 = scalar_lea.vmem [#allocation2], 48
      %v1802 = vld [vmem:[%s1801] ss:$3 sm:$0xff]
      %s1803 = scalar_lea.vmem [#allocation2], 72
      %v1804 = vld [vmem:[%s1803] ss:$3 sm:$0xff]
      %s1805 = scalar_lea.vmem [#allocation2], 1
      %v1806 = vld [vmem:[%s1805] ss:$3 sm:$0xff]
      %s1807 = scalar_lea.vmem [#allocation2], 25
      %v1808 = vld [vmem:[%s1807] ss:$3 sm:$0xff]
      %s1809 = scalar_lea.vmem [#allocation2], 49
      %v1810 = vld [vmem:[%s1809] ss:$3 sm:$0xff]
      %s1811 = scalar_lea.vmem [#allocation2], 73
      %v1812 = vld [vmem:[%s1811] ss:$3 sm:$0xff]
      %s1813 = scalar_lea.vmem [#allocation2], 2
      %v1814 = vld [vmem:[%s1813] ss:$3 sm:$0xff]
      %s1815 = scalar_lea.vmem [#allocation2], 26
      %v1816 = vld [vmem:[%s1815] ss:$3 sm:$0xff]
      %s1817 = scalar_lea.vmem [#allocation2], 50
      %v1818 = vld [vmem:[%s1817] ss:$3 sm:$0xff]
      %s1819 = scalar_lea.vmem [#allocation2], 74
      %v1820 = vld [vmem:[%s1819] ss:$3 sm:$0xff]
      %s1821 = scalar_lea.vmem [#allocation2], 3
      %v1822 = vld [vmem:[%s1821] ss:$3 sm:$0xff]
      %s1823 = scalar_lea.vmem [#allocation2], 27
      %v1824 = vld [vmem:[%s1823] ss:$3 sm:$0xff]
      %s1825 = scalar_lea.vmem [#allocation2], 51
      %v1826 = vld [vmem:[%s1825] ss:$3 sm:$0xff]
      %s1827 = scalar_lea.vmem [#allocation2], 75
      %v1828 = vld [vmem:[%s1827] ss:$3 sm:$0xff]
      %s1829 = scalar_lea.vmem [#allocation2], 4
      %v1830 = vld [vmem:[%s1829] ss:$3 sm:$0xff]
      %s1831 = scalar_lea.vmem [#allocation2], 28
      %v1832 = vld [vmem:[%s1831] ss:$3 sm:$0xff]
      %s1833 = scalar_lea.vmem [#allocation2], 52
      %v1834 = vld [vmem:[%s1833] ss:$3 sm:$0xff]
      %s1835 = scalar_lea.vmem [#allocation2], 76
      %v1836 = vld [vmem:[%s1835] ss:$3 sm:$0xff]
      %s1837 = scalar_lea.vmem [#allocation2], 5
      %v1838 = vld [vmem:[%s1837] ss:$3 sm:$0xff]
      %s1839 = scalar_lea.vmem [#allocation2], 29
      %v1840 = vld [vmem:[%s1839] ss:$3 sm:$0xff]
      %s1841 = scalar_lea.vmem [#allocation2], 53
      %v1842 = vld [vmem:[%s1841] ss:$3 sm:$0xff]
      %s1843 = scalar_lea.vmem [#allocation2], 77
      %v1844 = vld [vmem:[%s1843] ss:$3 sm:$0xff]
      %s1845 = scalar_lea.vmem [#allocation2], 6
      %v1846 = vld [vmem:[%s1845] ss:$3 sm:$0xff]
      %s1847 = scalar_lea.vmem [#allocation2], 30
      %v1848 = vld [vmem:[%s1847] ss:$3 sm:$0xff]
      %s1849 = scalar_lea.vmem [#allocation2], 54
      %v1850 = vld [vmem:[%s1849] ss:$3 sm:$0xff]
      %s1851 = scalar_lea.vmem [#allocation2], 78
      %v1852 = vld [vmem:[%s1851] ss:$3 sm:$0xff]
      %v1853 = vpack.c.bf16 %v1800, %v1798
      %v1854 = vpack.c.bf16 %v1808, %v1806
      %v1855 = vpack.c.bf16 %v1816, %v1814
      %v1856 = vpack.c.bf16 %v1824, %v1822
      %v1857 = vpack.c.bf16 %v1832, %v1830
      %v1858 = vpack.c.bf16 %v1840, %v1838
      %v1859 = vpack.c.bf16 %v1848, %v1846
      %v1860 = vpack.c.bf16 %v1804, %v1802
      %v1861 = vpack.c.bf16 %v1812, %v1810
      %v1862 = vpack.c.bf16 %v1820, %v1818
      %v1863 = vpack.c.bf16 %v1828, %v1826
      %v1864 = vpack.c.bf16 %v1836, %v1834
      %v1865 = vpack.c.bf16 %v1844, %v1842
      %v1866 = vpack.c.bf16 %v1852, %v1850
      %v1867 = vld [vmem:[%s4] sm:$0xf]
      %v1868 = vld [vmem:[%s4 + $0x4] sm:$0xf]
      %v1869 = vld [vmem:[%s4 + $0x8] sm:$0xf]
      %v1870 = vld [vmem:[%s4 + $0xc] sm:$0xf]
      %v1871 = vld [vmem:[%s4 + $0x10] sm:$0xf]
      %v1872 = vld [vmem:[%s4 + $0x14] sm:$0xf]
      %v1873 = vld [vmem:[%s4 + $0x18] sm:$0xf]
      %v1874 = vld [vmem:[%s4 + $0x1c] sm:$0xf]
      %v1875 = vld [vmem:[%s4 + $0x20] sm:$0xf]
      %v1876 = vld [vmem:[%s4 + $0x24] sm:$0xf]
      %v1877 = vld [vmem:[%s4 + $0x28] sm:$0xf]
      %v1878 = vld [vmem:[%s4 + $0x2c] sm:$0xf]
      %v1879 = vld [vmem:[%s4 + $0x30] sm:$0xf]
      %v1880 = vld [vmem:[%s4 + $0x34] sm:$0xf]
      %v1881 = vld [vmem:[%s4 + $0x38] sm:$0xf]
      %v1882 = vld [vmem:[%s4 + $0x3c] sm:$0xf]
      %v1883 = vld [vmem:[%s4 + $0x40] sm:$0xf]
      %v1884 = vld [vmem:[%s4 + $0x44] sm:$0xf]
      %v1885 = vld [vmem:[%s4 + $0x48] sm:$0xf]
      %v1886 = vld [vmem:[%s4 + $0x4c] sm:$0xf]
      %v1887 = vld [vmem:[%s4 + $0x50] sm:$0xf]
      %v1888 = vld [vmem:[%s4 + $0x54] sm:$0xf]
      %v1889 = vld [vmem:[%s4 + $0x58] sm:$0xf]
      %v1890 = vld [vmem:[%s4 + $0x5c] sm:$0xf]
      %v1891 = vld [vmem:[%s4 + $0x60] sm:$0xf]
      %v1892 = vld [vmem:[%s4 + $0x64] sm:$0xf]
      %v1893 = vld [vmem:[%s4 + $0x68] sm:$0xf]
      %v1894 = vld [vmem:[%s4 + $0x6c] sm:$0xf]
      %v1895 = vld [vmem:[%s4 + $0x70] sm:$0xf]
      %v1896 = vld [vmem:[%s4 + $0x74] sm:$0xf]
      %v1897 = vld [vmem:[%s4 + $0x78] sm:$0xf]
      %v1898 = vld [vmem:[%s4 + $0x7c] sm:$0xf]
      %v1899 = vld [vmem:[%s4 + $0x80] sm:$0xf]
      %v1900 = vld [vmem:[%s4 + $0x84] sm:$0xf]
      %v1901 = vld [vmem:[%s4 + $0x88] sm:$0xf]
      %v1902 = vld [vmem:[%s4 + $0x8c] sm:$0xf]
      %v1903 = vld [vmem:[%s4 + $0x90] sm:$0xf]
      %v1904 = vld [vmem:[%s4 + $0x94] sm:$0xf]
      %v1905 = vld [vmem:[%s4 + $0x98] sm:$0xf]
      %v1906 = vld [vmem:[%s4 + $0x9c] sm:$0xf]
      %v1907 = vld [vmem:[%s4 + $0xa0] sm:$0xf]
      %v1908 = vld [vmem:[%s4 + $0xa4] sm:$0xf]
      %v1909 = vld [vmem:[%s4 + $0xa8] sm:$0xf]
      %v1910 = vld [vmem:[%s4 + $0xac] sm:$0xf]
      %v1911 = vld [vmem:[%s4 + $0xb0] sm:$0xf]
      %v1912 = vld [vmem:[%s4 + $0xb4] sm:$0xf]
      %v1913 = vld [vmem:[%s4 + $0xb8] sm:$0xf]
      %v1914 = vld [vmem:[%s4 + $0xbc] sm:$0xf]
      %v1915 = vld [vmem:[%s4 + $0xc0] sm:$0xf]
      %v1916 = vld [vmem:[%s4 + $0xc4] sm:$0xf]
      %v1917 = vld [vmem:[%s4 + $0xc8] sm:$0xf]
      %v1918 = vld [vmem:[%s4 + $0xcc] sm:$0xf]
      %v1919 = vld [vmem:[%s4 + $0xd0] sm:$0xf]
      %v1920 = vld [vmem:[%s4 + $0xd4] sm:$0xf]
      %v1921 = vld [vmem:[%s4 + $0xd8] sm:$0xf]
      %v1922 = vld [vmem:[%s4 + $0xdc] sm:$0xf]
      %v1923 = vld [vmem:[%s4 + $0xe0] sm:$0xf]
      %v1924 = vld [vmem:[%s4 + $0xe4] sm:$0xf]
      %v1925 = vld [vmem:[%s4 + $0xe8] sm:$0xf]
      %v1926 = vld [vmem:[%s4 + $0xec] sm:$0xf]
      %v1927 = vld [vmem:[%s4 + $0xf0] sm:$0xf]
      %v1928 = vld [vmem:[%s4 + $0xf4] sm:$0xf]
      %v1929 = vld [vmem:[%s4 + $0xf8] sm:$0xf]
      %v1930 = vld [vmem:[%s4 + $0xfc] sm:$0xf]
      %v1931 = vld [vmem:[%s4 + $0x100] sm:$0xf]
      %v1932 = vld [vmem:[%s4 + $0x104] sm:$0xf]
      %v1933 = vld [vmem:[%s4 + $0x108] sm:$0xf]
      %v1934 = vld [vmem:[%s4 + $0x10c] sm:$0xf]
      %v1935 = vld [vmem:[%s4 + $0x110] sm:$0xf]
      %v1936 = vld [vmem:[%s4 + $0x114] sm:$0xf]
      %v1937 = vld [vmem:[%s4 + $0x118] sm:$0xf]
      %v1938 = vld [vmem:[%s4 + $0x11c] sm:$0xf]
      %v1939 = vld [vmem:[%s4 + $0x120] sm:$0xf]
      %v1940 = vld [vmem:[%s4 + $0x124] sm:$0xf]
      %v1941 = vld [vmem:[%s4 + $0x128] sm:$0xf]
      %v1942 = vld [vmem:[%s4 + $0x12c] sm:$0xf]
      %v1943 = vld [vmem:[%s4 + $0x130] sm:$0xf]
      %v1944 = vld [vmem:[%s4 + $0x134] sm:$0xf]
      %v1945 = vld [vmem:[%s4 + $0x138] sm:$0xf]
      %v1946 = vld [vmem:[%s4 + $0x13c] sm:$0xf]
      %v1947 = vld [vmem:[%s4 + $0x140] sm:$0xf]
      %v1948 = vld [vmem:[%s4 + $0x144] sm:$0xf]
      %v1949 = vld [vmem:[%s4 + $0x148] sm:$0xf]
      %v1950 = vld [vmem:[%s4 + $0x14c] sm:$0xf]
      %v1951 = vld [vmem:[%s4 + $0x150] sm:$0xf]
      %v1952 = vld [vmem:[%s4 + $0x154] sm:$0xf]
      %v1953 = vld [vmem:[%s4 + $0x158] sm:$0xf]
      %v1954 = vld [vmem:[%s4 + $0x15c] sm:$0xf]
      %v1955 = vld [vmem:[%s4 + $0x160] sm:$0xf]
      %v1956 = vld [vmem:[%s4 + $0x164] sm:$0xf]
      %v1957 = vld [vmem:[%s4 + $0x168] sm:$0xf]
      %v1958 = vld [vmem:[%s4 + $0x16c] sm:$0xf]
      %v1959 = vld [vmem:[%s4 + $0x170] sm:$0xf]
      %v1960 = vld [vmem:[%s4 + $0x174] sm:$0xf]
      %v1961 = vld [vmem:[%s4 + $0x178] sm:$0xf]
      %v1962 = vld [vmem:[%s4 + $0x17c] sm:$0xf]
      %v1963 = vld [vmem:[%s4 + $0x180] sm:$0xf]
      %v1964 = vld [vmem:[%s4 + $0x184] sm:$0xf]
      %v1965 = vld [vmem:[%s4 + $0x188] sm:$0xf]
      %v1966 = vld [vmem:[%s4 + $0x18c] sm:$0xf]
      %v1967 = vld [vmem:[%s4 + $0x190] sm:$0xf]
      %v1968 = vld [vmem:[%s4 + $0x194] sm:$0xf]
      %v1969 = vld [vmem:[%s4 + $0x198] sm:$0xf]
      %v1970 = vld [vmem:[%s4 + $0x19c] sm:$0xf]
      %v1971 = vld [vmem:[%s4 + $0x1a0] sm:$0xf]
      %v1972 = vld [vmem:[%s4 + $0x1a4] sm:$0xf]
      %v1973 = vld [vmem:[%s4 + $0x1a8] sm:$0xf]
      %v1974 = vld [vmem:[%s4 + $0x1ac] sm:$0xf]
      %v1975 = vld [vmem:[%s4 + $0x1b0] sm:$0xf]
      %v1976 = vld [vmem:[%s4 + $0x1b4] sm:$0xf]
      %v1977 = vld [vmem:[%s4 + $0x1b8] sm:$0xf]
      %v1978 = vld [vmem:[%s4 + $0x1bc] sm:$0xf]
      %v1979 = vld [vmem:[%s5] sm:$0x1]
      %v1981 = vlaneseq
      %v1982 = vshrl.u32 %v1981, 7
      %v1983 = vsub.s32 0, %v1982
      %v1984 = vrot.slane %v1979, %v1983
      %v2098 = vunpack.c.l.b16 %v1867
      %v2099 = vunpack.c.l.b16 %v1868
      %v2100 = vunpack.c.l.b16 %v1869
      %v2101 = vunpack.c.l.b16 %v1870
      %v2102 = vunpack.c.l.b16 %v1871
      %v2103 = vunpack.c.l.b16 %v1872
      %v2104 = vunpack.c.l.b16 %v1873
      %v2105 = vunpack.c.l.b16 %v1874
      %v2106 = vunpack.c.l.b16 %v1875
      %v2107 = vunpack.c.l.b16 %v1876
      %v2108 = vunpack.c.l.b16 %v1877
      %v2109 = vunpack.c.l.b16 %v1878
      %v2110 = vunpack.c.l.b16 %v1879
      %v2111 = vunpack.c.l.b16 %v1880
      %v2112 = vunpack.c.l.b16 %v1881
      %v2113 = vunpack.c.l.b16 %v1882
      %v2114 = vunpack.c.l.b16 %v1883
      %v2115 = vunpack.c.l.b16 %v1884
      %v2116 = vunpack.c.l.b16 %v1885
      %v2117 = vunpack.c.l.b16 %v1886
      %v2118 = vunpack.c.l.b16 %v1887
      %v2119 = vunpack.c.l.b16 %v1888
      %v2120 = vunpack.c.l.b16 %v1889
      %v2121 = vunpack.c.l.b16 %v1890
      %v2122 = vunpack.c.l.b16 %v1891
      %v2123 = vunpack.c.l.b16 %v1892
      %v2124 = vunpack.c.l.b16 %v1893
      %v2125 = vunpack.c.l.b16 %v1894
      %v2126 = vunpack.c.l.b16 %v1895
      %v2127 = vunpack.c.l.b16 %v1896
      %v2128 = vunpack.c.l.b16 %v1897
      %v2129 = vunpack.c.l.b16 %v1898
      %v2130 = vunpack.c.l.b16 %v1899
      %v2131 = vunpack.c.l.b16 %v1900
      %v2132 = vunpack.c.l.b16 %v1901
      %v2133 = vunpack.c.l.b16 %v1902
      %v2134 = vunpack.c.l.b16 %v1903
      %v2135 = vunpack.c.l.b16 %v1904
      %v2136 = vunpack.c.l.b16 %v1905
      %v2137 = vunpack.c.l.b16 %v1906
      %v2138 = vunpack.c.l.b16 %v1907
      %v2139 = vunpack.c.l.b16 %v1908
      %v2140 = vunpack.c.l.b16 %v1909
      %v2141 = vunpack.c.l.b16 %v1910
      %v2142 = vunpack.c.l.b16 %v1911
      %v2143 = vunpack.c.l.b16 %v1912
      %v2144 = vunpack.c.l.b16 %v1913
      %v2145 = vunpack.c.l.b16 %v1914
      %v2146 = vunpack.c.l.b16 %v1915
      %v2147 = vunpack.c.l.b16 %v1916
      %v2148 = vunpack.c.l.b16 %v1917
      %v2149 = vunpack.c.l.b16 %v1918
      %v2150 = vunpack.c.l.b16 %v1919
      %v2151 = vunpack.c.l.b16 %v1920
      %v2152 = vunpack.c.l.b16 %v1921
      %v2153 = vunpack.c.l.b16 %v1922
      %v2154 = vunpack.c.l.b16 %v1923
      %v2155 = vunpack.c.l.b16 %v1924
      %v2156 = vunpack.c.l.b16 %v1925
      %v2157 = vunpack.c.l.b16 %v1926
      %v2158 = vunpack.c.l.b16 %v1927
      %v2159 = vunpack.c.l.b16 %v1928
      %v2160 = vunpack.c.l.b16 %v1929
      %v2161 = vunpack.c.l.b16 %v1930
      %v2162 = vunpack.c.l.b16 %v1931
      %v2163 = vunpack.c.l.b16 %v1932
      %v2164 = vunpack.c.l.b16 %v1933
      %v2165 = vunpack.c.l.b16 %v1934
      %v2166 = vunpack.c.l.b16 %v1935
      %v2167 = vunpack.c.l.b16 %v1936
      %v2168 = vunpack.c.l.b16 %v1937
      %v2169 = vunpack.c.l.b16 %v1938
      %v2170 = vunpack.c.l.b16 %v1939
      %v2171 = vunpack.c.l.b16 %v1940
      %v2172 = vunpack.c.l.b16 %v1941
      %v2173 = vunpack.c.l.b16 %v1942
      %v2174 = vunpack.c.l.b16 %v1943
      %v2175 = vunpack.c.l.b16 %v1944
      %v2176 = vunpack.c.l.b16 %v1945
      %v2177 = vunpack.c.l.b16 %v1946
      %v2178 = vunpack.c.l.b16 %v1947
      %v2179 = vunpack.c.l.b16 %v1948
      %v2180 = vunpack.c.l.b16 %v1949
      %v2181 = vunpack.c.l.b16 %v1950
      %v2182 = vunpack.c.l.b16 %v1951
      %v2183 = vunpack.c.l.b16 %v1952
      %v2184 = vunpack.c.l.b16 %v1953
      %v2185 = vunpack.c.l.b16 %v1954
      %v2186 = vunpack.c.l.b16 %v1955
      %v2187 = vunpack.c.l.b16 %v1956
      %v2188 = vunpack.c.l.b16 %v1957
      %v2189 = vunpack.c.l.b16 %v1958
      %v2190 = vunpack.c.l.b16 %v1959
      %v2191 = vunpack.c.l.b16 %v1960
      %v2192 = vunpack.c.l.b16 %v1961
      %v2193 = vunpack.c.l.b16 %v1962
      %v2194 = vunpack.c.l.b16 %v1963
      %v2195 = vunpack.c.l.b16 %v1964
      %v2196 = vunpack.c.l.b16 %v1965
      %v2197 = vunpack.c.l.b16 %v1966
      %v2198 = vunpack.c.l.b16 %v1967
      %v2199 = vunpack.c.l.b16 %v1968
      %v2200 = vunpack.c.l.b16 %v1969
      %v2201 = vunpack.c.l.b16 %v1970
      %v2202 = vunpack.c.l.b16 %v1971
      %v2203 = vunpack.c.l.b16 %v1972
      %v2204 = vunpack.c.l.b16 %v1973
      %v2205 = vunpack.c.l.b16 %v1974
      %v2206 = vunpack.c.l.b16 %v1975
      %v2207 = vunpack.c.l.b16 %v1976
      %v2208 = vunpack.c.l.b16 %v1977
      %v2209 = vunpack.c.l.b16 %v1978
      %v2210 = vpack.c.b16 %v2099, %v2098
      %v2211 = vpack.c.b16 %v2101, %v2100
      %v2212 = vpack.c.b16 %v2103, %v2102
      %v2213 = vpack.c.b16 %v2105, %v2104
      %v2214 = vpack.c.b16 %v2107, %v2106
      %v2215 = vpack.c.b16 %v2109, %v2108
      %v2216 = vpack.c.b16 %v2111, %v2110
      %v2217 = vpack.c.b16 %v2113, %v2112
      %v2218 = vpack.c.b16 %v2115, %v2114
      %v2219 = vpack.c.b16 %v2117, %v2116
      %v2220 = vpack.c.b16 %v2119, %v2118
      %v2221 = vpack.c.b16 %v2121, %v2120
      %v2222 = vpack.c.b16 %v2123, %v2122
      %v2223 = vpack.c.b16 %v2125, %v2124
      %v2224 = vpack.c.b16 %v2127, %v2126
      %v2225 = vpack.c.b16 %v2129, %v2128
      %v2226 = vpack.c.b16 %v2131, %v2130
      %v2227 = vpack.c.b16 %v2133, %v2132
      %v2228 = vpack.c.b16 %v2135, %v2134
      %v2229 = vpack.c.b16 %v2137, %v2136
      %v2230 = vpack.c.b16 %v2139, %v2138
      %v2231 = vpack.c.b16 %v2141, %v2140
      %v2232 = vpack.c.b16 %v2143, %v2142
      %v2233 = vpack.c.b16 %v2145, %v2144
      %v2234 = vpack.c.b16 %v2147, %v2146
      %v2235 = vpack.c.b16 %v2149, %v2148
      %v2236 = vpack.c.b16 %v2151, %v2150
      %v2237 = vpack.c.b16 %v2153, %v2152
      %v2238 = vpack.c.b16 %v2155, %v2154
      %v2239 = vpack.c.b16 %v2157, %v2156
      %v2240 = vpack.c.b16 %v2159, %v2158
      %v2241 = vpack.c.b16 %v2161, %v2160
      %v2242 = vpack.c.b16 %v2163, %v2162
      %v2243 = vpack.c.b16 %v2165, %v2164
      %v2244 = vpack.c.b16 %v2167, %v2166
      %v2245 = vpack.c.b16 %v2169, %v2168
      %v2246 = vpack.c.b16 %v2171, %v2170
      %v2247 = vpack.c.b16 %v2173, %v2172
      %v2248 = vpack.c.b16 %v2175, %v2174
      %v2249 = vpack.c.b16 %v2177, %v2176
      %v2250 = vpack.c.b16 %v2179, %v2178
      %v2251 = vpack.c.b16 %v2181, %v2180
      %v2252 = vpack.c.b16 %v2183, %v2182
      %v2253 = vpack.c.b16 %v2185, %v2184
      %v2254 = vpack.c.b16 %v2187, %v2186
      %v2255 = vpack.c.b16 %v2189, %v2188
      %v2256 = vpack.c.b16 %v2191, %v2190
      %v2257 = vpack.c.b16 %v2193, %v2192
      %v2258 = vpack.c.b16 %v2195, %v2194
      %v2259 = vpack.c.b16 %v2197, %v2196
      %v2260 = vpack.c.b16 %v2199, %v2198
      %v2261 = vpack.c.b16 %v2201, %v2200
      %v2262 = vpack.c.b16 %v2203, %v2202
      %v2263 = vpack.c.b16 %v2205, %v2204
      %v2264 = vpack.c.b16 %v2207, %v2206
      %v2265 = vpack.c.b16 %v2209, %v2208
      %2322 = vmatprep.subr.bf16.mxu0 0
      %2323 = vmatpush1.bf16.msra.mxu0 %v2210
      %2324 = vmatprep.subr.bf16.mxu0 0
      %2325 = vmatpush1.bf16.msra.mxu0 %v2211
      %2326 = vmatprep.subr.bf16.mxu0 0
      %2327 = vmatpush1.bf16.msra.mxu0 %v2212
      %2328 = vmatprep.subr.bf16.mxu0 0
      %2329 = vmatpush1.bf16.msra.mxu0 %v2213
      %2330 = vmatprep.subr.bf16.mxu0 0
      %2331 = vmatpush1.bf16.msra.mxu0 %v2214
      %2332 = vmatprep.subr.bf16.mxu0 0
      %2333 = vmatpush1.bf16.msra.mxu0 %v2215
      %2334 = vmatprep.subr.bf16.mxu0 0
      %2335 = vmatpush1.bf16.msra.mxu0 %v2216
      %2336 = vmatprep.subr.bf16.mxu0 0
      %2337 = vmatpush1.bf16.msra.mxu0 %v2217
      %2338 = vmatprep.subr.bf16.mxu0 0
      %2339 = vmatpush1.bf16.msra.mxu0 %v2218
      %2340 = vmatprep.subr.bf16.mxu0 0
      %2341 = vmatpush1.bf16.msra.mxu0 %v2219
      %2342 = vmatprep.subr.bf16.mxu0 0
      %2343 = vmatpush1.bf16.msra.mxu0 %v2220
      %2344 = vmatprep.subr.bf16.mxu0 0
      %2345 = vmatpush1.bf16.msra.mxu0 %v2221
      %2346 = vmatprep.subr.bf16.mxu0 0
      %2347 = vmatpush1.bf16.msra.mxu0 %v2222
      %2348 = vmatprep.subr.bf16.mxu0 0
      %2349 = vmatpush1.bf16.msra.mxu0 %v2223
      %2350 = vmatprep.subr.bf16.mxu0 0
      %2351 = vmatpush1.bf16.msra.mxu0 %v2224
      %2352 = vmatprep.subr.bf16.mxu0 0
      %2353 = vmatpush1.bf16.msra.mxu0 %v2225
      %2354 = vmatprep.mubr.bf16.mxu0 %v1854
      %2355 = vmatmul.mubr.bf16.gmra.mrb[0].mxu0 %v1853
      %v2356 = vpop.f32.mrb[0].mxu0
      %v2357 = vadd.f32 %v1984, %v2356
      %v2358 = vpop.f32.mrb[0].mxu0
      %v2359 = vpop.f32.mrb[0].mxu0
      %v2360 = vadd.f32 %v1984, %v2359
      %v2361 = vpop.f32.mrb[0].mxu0
      %2362 = vmatprep.mubr.bf16.mxu0 %v1861
      %2363 = vmatmul.mubr.bf16.gmra.mrb[0].mxu0 %v1860
      %v2364 = vpop.f32.mrb[0].mxu0
      %v2365 = vadd.f32 %v1984, %v2364
      %v2366 = vpop.f32.mrb[0].mxu0
      %v2367 = vpop.f32.mrb[0].mxu0
      %v2368 = vadd.f32 %v1984, %v2367
      %v2369 = vpop.f32.mrb[0].mxu0
      %2370 = vdwg.mxu0
      %2371 = vmatprep.subr.bf16.mxu0 0
      %2372 = vmatpush1.bf16.msra.mxu0 %v2226
      %2373 = vmatprep.subr.bf16.mxu0 0
      %2374 = vmatpush1.bf16.msra.mxu0 %v2227
      %2375 = vmatprep.subr.bf16.mxu0 0
      %2376 = vmatpush1.bf16.msra.mxu0 %v2228
      %2377 = vmatprep.subr.bf16.mxu0 0
      %2378 = vmatpush1.bf16.msra.mxu0 %v2229
      %2379 = vmatprep.subr.bf16.mxu0 0
      %2380 = vmatpush1.bf16.msra.mxu0 %v2230
      %2381 = vmatprep.subr.bf16.mxu0 0
      %2382 = vmatpush1.bf16.msra.mxu0 %v2231
      %2383 = vmatprep.subr.bf16.mxu0 0
      %2384 = vmatpush1.bf16.msra.mxu0 %v2232
      %2385 = vmatprep.subr.bf16.mxu0 0
      %2386 = vmatpush1.bf16.msra.mxu0 %v2233
      %2387 = vmatprep.subr.bf16.mxu0 0
      %2388 = vmatpush1.bf16.msra.mxu0 %v2234
      %2389 = vmatprep.subr.bf16.mxu0 0
      %2390 = vmatpush1.bf16.msra.mxu0 %v2235
      %2391 = vmatprep.subr.bf16.mxu0 0
      %2392 = vmatpush1.bf16.msra.mxu0 %v2236
      %2393 = vmatprep.subr.bf16.mxu0 0
      %2394 = vmatpush1.bf16.msra.mxu0 %v2237
      %2395 = vmatprep.subr.bf16.mxu0 0
      %2396 = vmatpush1.bf16.msra.mxu0 %v2238
      %2397 = vmatprep.subr.bf16.mxu0 0
      %2398 = vmatpush1.bf16.msra.mxu0 %v2239
      %2399 = vmatprep.subr.bf16.mxu0 0
      %2400 = vmatpush1.bf16.msra.mxu0 %v2240
      %2401 = vmatprep.subr.bf16.mxu0 0
      %2402 = vmatpush1.bf16.msra.mxu0 %v2241
      %2403 = vmatprep.mubr.bf16.mxu0 %v1856
      %2404 = vmatmul.mubr.bf16.gmra.mrb[0].mxu0 %v1855
      %v2405 = vpop.f32.mrb[0].mxu0
      %v2406 = vadd.f32 %v2357, %v2405
      %v2407 = vpop.f32.mrb[0].mxu0
      %v2408 = vpop.f32.mrb[0].mxu0
      %v2409 = vadd.f32 %v2360, %v2408
      %v2410 = vpop.f32.mrb[0].mxu0
      %2411 = vmatprep.mubr.bf16.mxu0 %v1863
      %2412 = vmatmul.mubr.bf16.gmra.mrb[0].mxu0 %v1862
      %v2413 = vpop.f32.mrb[0].mxu0
      %v2414 = vadd.f32 %v2365, %v2413
      %v2415 = vpop.f32.mrb[0].mxu0
      %v2416 = vpop.f32.mrb[0].mxu0
      %v2417 = vadd.f32 %v2368, %v2416
      %v2418 = vpop.f32.mrb[0].mxu0
      %2419 = vdwg.mxu0
      %2420 = vmatprep.subr.bf16.mxu0 0
      %2421 = vmatpush1.bf16.msra.mxu0 %v2242
      %2422 = vmatprep.subr.bf16.mxu0 0
      %2423 = vmatpush1.bf16.msra.mxu0 %v2243
      %2424 = vmatprep.subr.bf16.mxu0 0
      %2425 = vmatpush1.bf16.msra.mxu0 %v2244
      %2426 = vmatprep.subr.bf16.mxu0 0
      %2427 = vmatpush1.bf16.msra.mxu0 %v2245
      %2428 = vmatprep.subr.bf16.mxu0 0
      %2429 = vmatpush1.bf16.msra.mxu0 %v2246
      %2430 = vmatprep.subr.bf16.mxu0 0
      %2431 = vmatpush1.bf16.msra.mxu0 %v2247
      %2432 = vmatprep.subr.bf16.mxu0 0
      %2433 = vmatpush1.bf16.msra.mxu0 %v2248
      %2434 = vmatprep.subr.bf16.mxu0 0
      %2435 = vmatpush1.bf16.msra.mxu0 %v2249
      %2436 = vmatprep.subr.bf16.mxu0 0
      %2437 = vmatpush1.bf16.msra.mxu0 %v2250
      %2438 = vmatprep.subr.bf16.mxu0 0
      %2439 = vmatpush1.bf16.msra.mxu0 %v2251
      %2440 = vmatprep.subr.bf16.mxu0 0
      %2441 = vmatpush1.bf16.msra.mxu0 %v2252
      %2442 = vmatprep.subr.bf16.mxu0 0
      %2443 = vmatpush1.bf16.msra.mxu0 %v2253
      %2444 = vmatprep.subr.bf16.mxu0 0
      %2445 = vmatpush1.bf16.msra.mxu0 %v2254
      %2446 = vmatprep.subr.bf16.mxu0 0
      %2447 = vmatpush1.bf16.msra.mxu0 %v2255
      %2448 = vmatprep.subr.bf16.mxu0 0
      %2449 = vmatpush1.bf16.msra.mxu0 %v2256
      %2450 = vmatprep.subr.bf16.mxu0 0
      %2451 = vmatpush1.bf16.msra.mxu0 %v2257
      %2452 = vmatprep.mubr.bf16.mxu0 %v1858
      %2453 = vmatmul.mubr.bf16.gmra.mrb[0].mxu0 %v1857
      %v2454 = vpop.f32.mrb[0].mxu0
      %v2455 = vadd.f32 %v2406, %v2454
      %v2456 = vpop.f32.mrb[0].mxu0
      %v2457 = vpop.f32.mrb[0].mxu0
      %v2458 = vadd.f32 %v2409, %v2457
      %v2459 = vpop.f32.mrb[0].mxu0
      %2460 = vmatprep.mubr.bf16.mxu0 %v1865
      %2461 = vmatmul.mubr.bf16.gmra.mrb[0].mxu0 %v1864
      %v2462 = vpop.f32.mrb[0].mxu0
      %v2463 = vadd.f32 %v2414, %v2462
      %v2464 = vpop.f32.mrb[0].mxu0
      %v2465 = vpop.f32.mrb[0].mxu0
      %v2466 = vadd.f32 %v2417, %v2465
      %v2467 = vpop.f32.mrb[0].mxu0
      %2468 = vdwg.mxu0
      %2469 = vmatprep.subr.bf16.mxu0 0
      %2470 = vmatpush1.bf16.msra.mxu0 %v2258
      %2471 = vmatprep.subr.bf16.mxu0 0
      %2472 = vmatpush1.bf16.msra.mxu0 %v2259
      %2473 = vmatprep.subr.bf16.mxu0 0
      %2474 = vmatpush1.bf16.msra.mxu0 %v2260
      %2475 = vmatprep.subr.bf16.mxu0 0
      %2476 = vmatpush1.bf16.msra.mxu0 %v2261
      %2477 = vmatprep.subr.bf16.mxu0 0
      %2478 = vmatpush1.bf16.msra.mxu0 %v2262
      %2479 = vmatprep.subr.bf16.mxu0 0
      %2480 = vmatpush1.bf16.msra.mxu0 %v2263
      %2481 = vmatprep.subr.bf16.mxu0 0
      %2482 = vmatpush1.bf16.msra.mxu0 %v2264
      %2483 = vmatprep.subr.bf16.mxu0 0
      %2484 = vmatpush1.bf16.msra.mxu0 %v2265
      %2485 = vmatprep.subr.bf16.mxu0 0
      %2486 = vmatpush1.bf16.msra.mxu0 0
      %2487 = vmatprep.subr.bf16.mxu0 0
      %2488 = vmatpush1.bf16.msra.mxu0 0
      %2489 = vmatprep.subr.bf16.mxu0 0
      %2490 = vmatpush1.bf16.msra.mxu0 0
      %2491 = vmatprep.subr.bf16.mxu0 0
      %2492 = vmatpush1.bf16.msra.mxu0 0
      %2493 = vmatprep.subr.bf16.mxu0 0
      %2494 = vmatpush1.bf16.msra.mxu0 0
      %2495 = vmatprep.subr.bf16.mxu0 0
      %2496 = vmatpush1.bf16.msra.mxu0 0
      %2497 = vmatprep.subr.bf16.mxu0 0
      %2498 = vmatpush1.bf16.msra.mxu0 0
      %2499 = vmatprep.subr.bf16.mxu0 0
      %2500 = vmatpush1.bf16.msra.mxu0 0
      %2501 = vmatprep.mubr.bf16.mxu0 0
      %2502 = vmatmul.mubr.bf16.gmra.mrb[0].mxu0 %v1859
      %v2503 = vpop.f32.mrb[0].mxu0
      %v2504 = vadd.f32 %v2455, %v2503
      %v2505 = vpop.f32.mrb[0].mxu0
      %v2506 = vpop.f32.mrb[0].mxu0
      %v2507 = vadd.f32 %v2458, %v2506
      %v2508 = vpop.f32.mrb[0].mxu0
      %2509 = vmatprep.mubr.bf16.mxu0 0
      %2510 = vmatmul.mubr.bf16.gmra.mrb[0].mxu0 %v1866
      %v2511 = vpop.f32.mrb[0].mxu0
      %v2512 = vadd.f32 %v2463, %v2511
      %v2513 = vpop.f32.mrb[0].mxu0
      %v2514 = vpop.f32.mrb[0].mxu0
      %v2515 = vadd.f32 %v2466, %v2514
      %v2516 = vpop.f32.mrb[0].mxu0
      %2517 = vdwg.mxu0
      %v2518 = vadd.f32 %v2504, %v2507
      %v2519 = vadd.f32 %v2518, %v2512
      %v2520 = vadd.f32 %v2519, %v2515
      %v2521 = vrot.slane %v2520, 4
      %v2522 = vadd.f32 %v2520, %v2521
      %v2523 = vrot.slane %v2522, 2
      %v2524 = vadd.f32 %v2522, %v2523
      %v2525 = vrot.slane %v2524, 1
      %v2526 = vadd.f32 %v2524, %v2525
      %v2527 = vrcp.pop 32.0
      %v2528 = vmul.f32 %v2526, %v2527
      %v2529 = vmul.f32 %v2504, %v2504
      %v2530 = vmul.f32 %v2507, %v2507
      %v2531 = vmul.f32 %v2512, %v2512
      %v2532 = vmul.f32 %v2515, %v2515
      %v2533 = vadd.f32 %v2529, %v2530
      %v2534 = vadd.f32 %v2533, %v2531
      %v2535 = vadd.f32 %v2534, %v2532
      %v2536 = vrot.slane %v2535, 4
      %v2537 = vadd.f32 %v2535, %v2536
      %v2538 = vrot.slane %v2537, 2
      %v2539 = vadd.f32 %v2537, %v2538
      %v2540 = vrot.slane %v2539, 1
      %v2541 = vadd.f32 %v2539, %v2540
      %v2542 = vmul.f32 %v2541, %v2527
      %v2543 = vmul.f32 %v2528, %v2528
      %v2544 = vsub.f32 %v2542, %v2543
      %v2545 = vsub.f32 %v2504, %v2528
      %v2546 = vsub.f32 %v2507, %v2528
      %v2547 = vsub.f32 %v2512, %v2528
      %v2548 = vsub.f32 %v2515, %v2528
      %v2549 = vadd.f32 %v2544, 1e-05
      %v2550 = vrsqrt.pop %v2549
      %v2551 = vmul.f32 %v2545, %v2550
      %v2552 = vmul.f32 %v2546, %v2550
      %v2553 = vmul.f32 %v2547, %v2550
      %v2554 = vmul.f32 %v2548, %v2550
      %v2555 = vld [vmem:[%s6] sm:$0x1]
      %v2557 = vlaneseq
      %v2558 = vshrl.u32 %v2557, 7
      %v2559 = vsub.s32 0, %v2558
      %v2560 = vrot.slane %v2555, %v2559
      %v2562 = vmul.f32 %v2551, %v2560
      %v2563 = vmul.f32 %v2552, %v2560
      %v2564 = vmul.f32 %v2553, %v2560
      %v2565 = vmul.f32 %v2554, %v2560
      %v2566 = vld [vmem:[%s7] sm:$0x1]
      %v2568 = vlaneseq
      %v2569 = vshrl.u32 %v2568, 7
      %v2570 = vsub.s32 0, %v2569
      %v2571 = vrot.slane %v2566, %v2570
      %v2573 = vadd.f32 %v2562, %v2571
      %v2574 = vadd.f32 %v2563, %v2571
      %v2575 = vadd.f32 %v2564, %v2571
      %v2576 = vadd.f32 %v2565, %v2571
      %v2577 = vmul.f32 %v2573, 0.5
      %v2578 = vmul.f32 %v2574, 0.5
      %v2579 = vmul.f32 %v2575, 0.5
      %v2580 = vmul.f32 %v2576, 0.5
      %v2581 = vmul.f32 %v2573, 0.044715
      %v2582 = vmul.f32 %v2574, 0.044715
      %v2583 = vmul.f32 %v2575, 0.044715
      %v2584 = vmul.f32 %v2576, 0.044715
      %v2585 = vmul.f32 %v2581, %v2573
      %v2586 = vmul.f32 %v2582, %v2574
      %v2587 = vmul.f32 %v2583, %v2575
      %v2588 = vmul.f32 %v2584, %v2576
      %v2589 = vmul.f32 %v2585, %v2573
      %v2590 = vmul.f32 %v2586, %v2574
      %v2591 = vmul.f32 %v2587, %v2575
      %v2592 = vmul.f32 %v2588, %v2576
      %v2593 = vadd.f32 %v2573, %v2589
      %v2594 = vadd.f32 %v2574, %v2590
      %v2595 = vadd.f32 %v2575, %v2591
      %v2596 = vadd.f32 %v2576, %v2592
      %v2597 = vmul.f32 %v2593, 0.7978846
      %v2598 = vmul.f32 %v2594, 0.7978846
      %v2599 = vmul.f32 %v2595, 0.7978846
      %v2600 = vmul.f32 %v2596, 0.7978846
      %v2601 = vtanh.pop %v2597
      %v2602 = vtanh.pop %v2598
      %v2603 = vtanh.pop %v2599
      %v2604 = vtanh.pop %v2600
      %v2605 = vadd.f32 %v2601, 1.0
      %v2606 = vadd.f32 %v2602, 1.0
      %v2607 = vadd.f32 %v2603, 1.0
      %v2608 = vadd.f32 %v2604, 1.0
      %v2609 = vmul.f32 %v2577, %v2605
      %v2610 = vmul.f32 %v2578, %v2606
      %v2611 = vmul.f32 %v2579, %v2607
      %v2612 = vmul.f32 %v2580, %v2608
      %2613 = vst [vmem:[#allocation3] sm:$0xff] %v2609
      %2614 = vst [vmem:[#allocation3 + $0x8] sm:$0xff] %v2610
      %2615 = vst [vmem:[#allocation3 + $0x10] sm:$0xff] %v2611
      %2616 = vst [vmem:[#allocation3 + $0x18] sm:$0xff] %v2612
      %v2617 = vld [vmem:[#allocation3] ss:$3 sm:$0xff]
      %s2618 = scalar_lea.vmem [#allocation3], 24
      %v2619 = vld [vmem:[%s2618] ss:$3 sm:$0x1]
      %s2620 = scalar_lea.vmem [#allocation3], 1
      %v2621 = vld [vmem:[%s2620] ss:$3 sm:$0xff]
      %s2622 = scalar_lea.vmem [#allocation3], 25
      %v2623 = vld [vmem:[%s2622] ss:$3 sm:$0x1]
      %s2624 = scalar_lea.vmem [#allocation3], 2
      %v2625 = vld [vmem:[%s2624] ss:$3 sm:$0xff]
      %s2626 = scalar_lea.vmem [#allocation3], 26
      %v2627 = vld [vmem:[%s2626] ss:$3 sm:$0x1]
      %s2628 = scalar_lea.vmem [#allocation3], 3
      %v2629 = vld [vmem:[%s2628] ss:$3 sm:$0xff]
      %s2630 = scalar_lea.vmem [#allocation3], 27
      %v2631 = vld [vmem:[%s2630] ss:$3 sm:$0x1]
      %s2632 = scalar_lea.vmem [#allocation3], 4
      %v2633 = vld [vmem:[%s2632] ss:$3 sm:$0xff]
      %s2634 = scalar_lea.vmem [#allocation3], 28
      %v2635 = vld [vmem:[%s2634] ss:$3 sm:$0x1]
      %s2636 = scalar_lea.vmem [#allocation3], 5
      %v2637 = vld [vmem:[%s2636] ss:$3 sm:$0xff]
      %s2638 = scalar_lea.vmem [#allocation3], 29
      %v2639 = vld [vmem:[%s2638] ss:$3 sm:$0x1]
      %s2640 = scalar_lea.vmem [#allocation3], 6
      %v2641 = vld [vmem:[%s2640] ss:$3 sm:$0xff]
      %s2642 = scalar_lea.vmem [#allocation3], 30
      %v2643 = vld [vmem:[%s2642] ss:$3 sm:$0x1]
      %v2644 = vpack.c.bf16 %v2619, %v2617
      %v2645 = vpack.c.bf16 %v2623, %v2621
      %v2646 = vpack.c.bf16 %v2627, %v2625
      %v2647 = vpack.c.bf16 %v2631, %v2629
      %v2648 = vpack.c.bf16 %v2635, %v2633
      %v2649 = vpack.c.bf16 %v2639, %v2637
      %v2650 = vpack.c.bf16 %v2643, %v2641
      %v2651 = vld [vmem:[%s8] sm:$0xf]
      %v2652 = vld [vmem:[%s8 + $0x4] sm:$0xf]
      %v2653 = vld [vmem:[%s8 + $0x8] sm:$0xf]
      %v2654 = vld [vmem:[%s8 + $0xc] sm:$0xf]
      %v2655 = vld [vmem:[%s8 + $0x10] sm:$0xf]
      %v2656 = vld [vmem:[%s8 + $0x14] sm:$0xf]
      %v2657 = vld [vmem:[%s8 + $0x18] sm:$0xf]
      %v2658 = vld [vmem:[%s8 + $0x1c] sm:$0xf]
      %v2659 = vld [vmem:[%s8 + $0x20] sm:$0xf]
      %v2660 = vld [vmem:[%s8 + $0x24] sm:$0xf]
      %v2661 = vld [vmem:[%s8 + $0x28] sm:$0xf]
      %v2662 = vld [vmem:[%s8 + $0x2c] sm:$0xf]
      %v2663 = vld [vmem:[%s8 + $0x30] sm:$0xf]
      %v2664 = vld [vmem:[%s8 + $0x34] sm:$0xf]
      %v2665 = vld [vmem:[%s8 + $0x38] sm:$0xf]
      %v2666 = vld [vmem:[%s8 + $0x3c] sm:$0xf]
      %v2667 = vld [vmem:[%s8 + $0x40] sm:$0xf]
      %v2668 = vld [vmem:[%s8 + $0x44] sm:$0xf]
      %v2669 = vld [vmem:[%s8 + $0x48] sm:$0xf]
      %v2670 = vld [vmem:[%s8 + $0x4c] sm:$0xf]
      %v2671 = vld [vmem:[%s8 + $0x50] sm:$0xf]
      %v2672 = vld [vmem:[%s8 + $0x54] sm:$0xf]
      %v2673 = vld [vmem:[%s8 + $0x58] sm:$0xf]
      %v2674 = vld [vmem:[%s8 + $0x5c] sm:$0xf]
      %v2675 = vld [vmem:[%s8 + $0x60] sm:$0xf]
      %v2676 = vld [vmem:[%s8 + $0x64] sm:$0xf]
      %v2677 = vld [vmem:[%s8 + $0x68] sm:$0xf]
      %v2678 = vld [vmem:[%s8 + $0x6c] sm:$0xf]
      %v2679 = vld [vmem:[%s8 + $0x70] sm:$0xf]
      %v2680 = vld [vmem:[%s8 + $0x74] sm:$0xf]
      %v2681 = vld [vmem:[%s8 + $0x78] sm:$0xf]
      %v2682 = vld [vmem:[%s8 + $0x7c] sm:$0xf]
      %v2683 = vld [vmem:[%s8 + $0x80] sm:$0xf]
      %v2684 = vld [vmem:[%s8 + $0x84] sm:$0xf]
      %v2685 = vld [vmem:[%s8 + $0x88] sm:$0xf]
      %v2686 = vld [vmem:[%s8 + $0x8c] sm:$0xf]
      %v2687 = vld [vmem:[%s8 + $0x90] sm:$0xf]
      %v2688 = vld [vmem:[%s8 + $0x94] sm:$0xf]
      %v2689 = vld [vmem:[%s8 + $0x98] sm:$0xf]
      %v2690 = vld [vmem:[%s8 + $0x9c] sm:$0xf]
      %v2691 = vld [vmem:[%s8 + $0xa0] sm:$0xf]
      %v2692 = vld [vmem:[%s8 + $0xa4] sm:$0xf]
      %v2693 = vld [vmem:[%s8 + $0xa8] sm:$0xf]
      %v2694 = vld [vmem:[%s8 + $0xac] sm:$0xf]
      %v2695 = vld [vmem:[%s8 + $0xb0] sm:$0xf]
      %v2696 = vld [vmem:[%s8 + $0xb4] sm:$0xf]
      %v2697 = vld [vmem:[%s8 + $0xb8] sm:$0xf]
      %v2698 = vld [vmem:[%s8 + $0xbc] sm:$0xf]
      %v2699 = vld [vmem:[%s8 + $0xc0] sm:$0xf]
      %v2700 = vld [vmem:[%s8 + $0xc4] sm:$0xf]
      %v2701 = vld [vmem:[%s8 + $0xc8] sm:$0xf]
      %v2702 = vld [vmem:[%s8 + $0xcc] sm:$0xf]
      %v2703 = vld [vmem:[%s8 + $0xd0] sm:$0xf]
      %v2704 = vld [vmem:[%s8 + $0xd4] sm:$0xf]
      %v2705 = vld [vmem:[%s8 + $0xd8] sm:$0xf]
      %v2706 = vld [vmem:[%s8 + $0xdc] sm:$0xf]
      %v2707 = vld [vmem:[%s8 + $0xe0] sm:$0xf]
      %v2708 = vld [vmem:[%s8 + $0xe4] sm:$0xf]
      %v2709 = vld [vmem:[%s8 + $0xe8] sm:$0xf]
      %v2710 = vld [vmem:[%s8 + $0xec] sm:$0xf]
      %v2711 = vld [vmem:[%s8 + $0xf0] sm:$0xf]
      %v2712 = vld [vmem:[%s8 + $0xf4] sm:$0xf]
      %v2713 = vld [vmem:[%s8 + $0xf8] sm:$0xf]
      %v2714 = vld [vmem:[%s8 + $0xfc] sm:$0xf]
      %v2715 = vld [vmem:[%s8 + $0x100] sm:$0xf]
      %v2716 = vld [vmem:[%s8 + $0x104] sm:$0xf]
      %v2717 = vld [vmem:[%s8 + $0x108] sm:$0xf]
      %v2718 = vld [vmem:[%s8 + $0x10c] sm:$0xf]
      %v2719 = vld [vmem:[%s8 + $0x110] sm:$0xf]
      %v2720 = vld [vmem:[%s8 + $0x114] sm:$0xf]
      %v2721 = vld [vmem:[%s8 + $0x118] sm:$0xf]
      %v2722 = vld [vmem:[%s8 + $0x11c] sm:$0xf]
      %v2723 = vld [vmem:[%s8 + $0x120] sm:$0xf]
      %v2724 = vld [vmem:[%s8 + $0x124] sm:$0xf]
      %v2725 = vld [vmem:[%s8 + $0x128] sm:$0xf]
      %v2726 = vld [vmem:[%s8 + $0x12c] sm:$0xf]
      %v2727 = vld [vmem:[%s8 + $0x130] sm:$0xf]
      %v2728 = vld [vmem:[%s8 + $0x134] sm:$0xf]
      %v2729 = vld [vmem:[%s8 + $0x138] sm:$0xf]
      %v2730 = vld [vmem:[%s8 + $0x13c] sm:$0xf]
      %v2731 = vld [vmem:[%s8 + $0x140] sm:$0xf]
      %v2732 = vld [vmem:[%s8 + $0x144] sm:$0xf]
      %v2733 = vld [vmem:[%s8 + $0x148] sm:$0xf]
      %v2734 = vld [vmem:[%s8 + $0x14c] sm:$0xf]
      %v2735 = vld [vmem:[%s8 + $0x150] sm:$0xf]
      %v2736 = vld [vmem:[%s8 + $0x154] sm:$0xf]
      %v2737 = vld [vmem:[%s8 + $0x158] sm:$0xf]
      %v2738 = vld [vmem:[%s8 + $0x15c] sm:$0xf]
      %v2739 = vld [vmem:[%s8 + $0x160] sm:$0xf]
      %v2740 = vld [vmem:[%s8 + $0x164] sm:$0xf]
      %v2741 = vld [vmem:[%s8 + $0x168] sm:$0xf]
      %v2742 = vld [vmem:[%s8 + $0x16c] sm:$0xf]
      %v2743 = vld [vmem:[%s8 + $0x170] sm:$0xf]
      %v2744 = vld [vmem:[%s8 + $0x174] sm:$0xf]
      %v2745 = vld [vmem:[%s8 + $0x178] sm:$0xf]
      %v2746 = vld [vmem:[%s8 + $0x17c] sm:$0xf]
      %v2747 = vld [vmem:[%s8 + $0x180] sm:$0xf]
      %v2748 = vld [vmem:[%s8 + $0x184] sm:$0xf]
      %v2749 = vld [vmem:[%s8 + $0x188] sm:$0xf]
      %v2750 = vld [vmem:[%s8 + $0x18c] sm:$0xf]
      %v2751 = vld [vmem:[%s8 + $0x190] sm:$0xf]
      %v2752 = vld [vmem:[%s8 + $0x194] sm:$0xf]
      %v2753 = vld [vmem:[%s8 + $0x198] sm:$0xf]
      %v2754 = vld [vmem:[%s8 + $0x19c] sm:$0xf]
      %v2755 = vld [vmem:[%s8 + $0x1a0] sm:$0xf]
      %v2756 = vld [vmem:[%s8 + $0x1a4] sm:$0xf]
      %v2757 = vld [vmem:[%s8 + $0x1a8] sm:$0xf]
      %v2758 = vld [vmem:[%s8 + $0x1ac] sm:$0xf]
      %v2759 = vld [vmem:[%s8 + $0x1b0] sm:$0xf]
      %v2760 = vld [vmem:[%s8 + $0x1b4] sm:$0xf]
      %v2761 = vld [vmem:[%s8 + $0x1b8] sm:$0xf]
      %v2762 = vld [vmem:[%s8 + $0x1bc] sm:$0xf]
      %v2763 = vld [vmem:[%s9] sm:$0x1]
      %v2765 = vlaneseq
      %v2766 = vshrl.u32 %v2765, 7
      %v2767 = vsub.s32 0, %v2766
      %v2768 = vrot.slane %v2763, %v2767
      %v2882 = vunpack.c.l.b16 %v2651
      %v2883 = vunpack.c.l.b16 %v2652
      %v2884 = vunpack.c.l.b16 %v2653
      %v2885 = vunpack.c.l.b16 %v2654
      %v2886 = vunpack.c.l.b16 %v2655
      %v2887 = vunpack.c.l.b16 %v2656
      %v2888 = vunpack.c.l.b16 %v2657
      %v2889 = vunpack.c.l.b16 %v2658
      %v2890 = vunpack.c.l.b16 %v2659
      %v2891 = vunpack.c.l.b16 %v2660
      %v2892 = vunpack.c.l.b16 %v2661
      %v2893 = vunpack.c.l.b16 %v2662
      %v2894 = vunpack.c.l.b16 %v2663
      %v2895 = vunpack.c.l.b16 %v2664
      %v2896 = vunpack.c.l.b16 %v2665
      %v2897 = vunpack.c.l.b16 %v2666
      %v2898 = vunpack.c.l.b16 %v2667
      %v2899 = vunpack.c.l.b16 %v2668
      %v2900 = vunpack.c.l.b16 %v2669
      %v2901 = vunpack.c.l.b16 %v2670
      %v2902 = vunpack.c.l.b16 %v2671
      %v2903 = vunpack.c.l.b16 %v2672
      %v2904 = vunpack.c.l.b16 %v2673
      %v2905 = vunpack.c.l.b16 %v2674
      %v2906 = vunpack.c.l.b16 %v2675
      %v2907 = vunpack.c.l.b16 %v2676
      %v2908 = vunpack.c.l.b16 %v2677
      %v2909 = vunpack.c.l.b16 %v2678
      %v2910 = vunpack.c.l.b16 %v2679
      %v2911 = vunpack.c.l.b16 %v2680
      %v2912 = vunpack.c.l.b16 %v2681
      %v2913 = vunpack.c.l.b16 %v2682
      %v2914 = vunpack.c.l.b16 %v2683
      %v2915 = vunpack.c.l.b16 %v2684
      %v2916 = vunpack.c.l.b16 %v2685
      %v2917 = vunpack.c.l.b16 %v2686
      %v2918 = vunpack.c.l.b16 %v2687
      %v2919 = vunpack.c.l.b16 %v2688
      %v2920 = vunpack.c.l.b16 %v2689
      %v2921 = vunpack.c.l.b16 %v2690
      %v2922 = vunpack.c.l.b16 %v2691
      %v2923 = vunpack.c.l.b16 %v2692
      %v2924 = vunpack.c.l.b16 %v2693
      %v2925 = vunpack.c.l.b16 %v2694
      %v2926 = vunpack.c.l.b16 %v2695
      %v2927 = vunpack.c.l.b16 %v2696
      %v2928 = vunpack.c.l.b16 %v2697
      %v2929 = vunpack.c.l.b16 %v2698
      %v2930 = vunpack.c.l.b16 %v2699
      %v2931 = vunpack.c.l.b16 %v2700
      %v2932 = vunpack.c.l.b16 %v2701
      %v2933 = vunpack.c.l.b16 %v2702
      %v2934 = vunpack.c.l.b16 %v2703
      %v2935 = vunpack.c.l.b16 %v2704
      %v2936 = vunpack.c.l.b16 %v2705
      %v2937 = vunpack.c.l.b16 %v2706
      %v2938 = vunpack.c.l.b16 %v2707
      %v2939 = vunpack.c.l.b16 %v2708
      %v2940 = vunpack.c.l.b16 %v2709
      %v2941 = vunpack.c.l.b16 %v2710
      %v2942 = vunpack.c.l.b16 %v2711
      %v2943 = vunpack.c.l.b16 %v2712
      %v2944 = vunpack.c.l.b16 %v2713
      %v2945 = vunpack.c.l.b16 %v2714
      %v2946 = vunpack.c.l.b16 %v2715
      %v2947 = vunpack.c.l.b16 %v2716
      %v2948 = vunpack.c.l.b16 %v2717
      %v2949 = vunpack.c.l.b16 %v2718
      %v2950 = vunpack.c.l.b16 %v2719
      %v2951 = vunpack.c.l.b16 %v2720
      %v2952 = vunpack.c.l.b16 %v2721
      %v2953 = vunpack.c.l.b16 %v2722
      %v2954 = vunpack.c.l.b16 %v2723
      %v2955 = vunpack.c.l.b16 %v2724
      %v2956 = vunpack.c.l.b16 %v2725
      %v2957 = vunpack.c.l.b16 %v2726
      %v2958 = vunpack.c.l.b16 %v2727
      %v2959 = vunpack.c.l.b16 %v2728
      %v2960 = vunpack.c.l.b16 %v2729
      %v2961 = vunpack.c.l.b16 %v2730
      %v2962 = vunpack.c.l.b16 %v2731
      %v2963 = vunpack.c.l.b16 %v2732
      %v2964 = vunpack.c.l.b16 %v2733
      %v2965 = vunpack.c.l.b16 %v2734
      %v2966 = vunpack.c.l.b16 %v2735
      %v2967 = vunpack.c.l.b16 %v2736
      %v2968 = vunpack.c.l.b16 %v2737
      %v2969 = vunpack.c.l.b16 %v2738
      %v2970 = vunpack.c.l.b16 %v2739
      %v2971 = vunpack.c.l.b16 %v2740
      %v2972 = vunpack.c.l.b16 %v2741
      %v2973 = vunpack.c.l.b16 %v2742
      %v2974 = vunpack.c.l.b16 %v2743
      %v2975 = vunpack.c.l.b16 %v2744
      %v2976 = vunpack.c.l.b16 %v2745
      %v2977 = vunpack.c.l.b16 %v2746
      %v2978 = vunpack.c.l.b16 %v2747
      %v2979 = vunpack.c.l.b16 %v2748
      %v2980 = vunpack.c.l.b16 %v2749
      %v2981 = vunpack.c.l.b16 %v2750
      %v2982 = vunpack.c.l.b16 %v2751
      %v2983 = vunpack.c.l.b16 %v2752
      %v2984 = vunpack.c.l.b16 %v2753
      %v2985 = vunpack.c.l.b16 %v2754
      %v2986 = vunpack.c.l.b16 %v2755
      %v2987 = vunpack.c.l.b16 %v2756
      %v2988 = vunpack.c.l.b16 %v2757
      %v2989 = vunpack.c.l.b16 %v2758
      %v2990 = vunpack.c.l.b16 %v2759
      %v2991 = vunpack.c.l.b16 %v2760
      %v2992 = vunpack.c.l.b16 %v2761
      %v2993 = vunpack.c.l.b16 %v2762
      %v2994 = vpack.c.b16 %v2883, %v2882
      %v2995 = vpack.c.b16 %v2885, %v2884
      %v2996 = vpack.c.b16 %v2887, %v2886
      %v2997 = vpack.c.b16 %v2889, %v2888
      %v2998 = vpack.c.b16 %v2891, %v2890
      %v2999 = vpack.c.b16 %v2893, %v2892
      %v3000 = vpack.c.b16 %v2895, %v2894
      %v3001 = vpack.c.b16 %v2897, %v2896
      %v3002 = vpack.c.b16 %v2899, %v2898
      %v3003 = vpack.c.b16 %v2901, %v2900
      %v3004 = vpack.c.b16 %v2903, %v2902
      %v3005 = vpack.c.b16 %v2905, %v2904
      %v3006 = vpack.c.b16 %v2907, %v2906
      %v3007 = vpack.c.b16 %v2909, %v2908
      %v3008 = vpack.c.b16 %v2911, %v2910
      %v3009 = vpack.c.b16 %v2913, %v2912
      %v3010 = vpack.c.b16 %v2915, %v2914
      %v3011 = vpack.c.b16 %v2917, %v2916
      %v3012 = vpack.c.b16 %v2919, %v2918
      %v3013 = vpack.c.b16 %v2921, %v2920
      %v3014 = vpack.c.b16 %v2923, %v2922
      %v3015 = vpack.c.b16 %v2925, %v2924
      %v3016 = vpack.c.b16 %v2927, %v2926
      %v3017 = vpack.c.b16 %v2929, %v2928
      %v3018 = vpack.c.b16 %v2931, %v2930
      %v3019 = vpack.c.b16 %v2933, %v2932
      %v3020 = vpack.c.b16 %v2935, %v2934
      %v3021 = vpack.c.b16 %v2937, %v2936
      %v3022 = vpack.c.b16 %v2939, %v2938
      %v3023 = vpack.c.b16 %v2941, %v2940
      %v3024 = vpack.c.b16 %v2943, %v2942
      %v3025 = vpack.c.b16 %v2945, %v2944
      %v3026 = vpack.c.b16 %v2947, %v2946
      %v3027 = vpack.c.b16 %v2949, %v2948
      %v3028 = vpack.c.b16 %v2951, %v2950
      %v3029 = vpack.c.b16 %v2953, %v2952
      %v3030 = vpack.c.b16 %v2955, %v2954
      %v3031 = vpack.c.b16 %v2957, %v2956
      %v3032 = vpack.c.b16 %v2959, %v2958
      %v3033 = vpack.c.b16 %v2961, %v2960
      %v3034 = vpack.c.b16 %v2963, %v2962
      %v3035 = vpack.c.b16 %v2965, %v2964
      %v3036 = vpack.c.b16 %v2967, %v2966
      %v3037 = vpack.c.b16 %v2969, %v2968
      %v3038 = vpack.c.b16 %v2971, %v2970
      %v3039 = vpack.c.b16 %v2973, %v2972
      %v3040 = vpack.c.b16 %v2975, %v2974
      %v3041 = vpack.c.b16 %v2977, %v2976
      %v3042 = vpack.c.b16 %v2979, %v2978
      %v3043 = vpack.c.b16 %v2981, %v2980
      %v3044 = vpack.c.b16 %v2983, %v2982
      %v3045 = vpack.c.b16 %v2985, %v2984
      %v3046 = vpack.c.b16 %v2987, %v2986
      %v3047 = vpack.c.b16 %v2989, %v2988
      %v3048 = vpack.c.b16 %v2991, %v2990
      %v3049 = vpack.c.b16 %v2993, %v2992
      %3106 = vmatprep.subr.bf16.mxu0 0
      %3107 = vmatpush1.bf16.msra.mxu0 %v2994
      %3108 = vmatprep.subr.bf16.mxu0 0
      %3109 = vmatpush1.bf16.msra.mxu0 %v2995
      %3110 = vmatprep.subr.bf16.mxu0 0
      %3111 = vmatpush1.bf16.msra.mxu0 %v2996
      %3112 = vmatprep.subr.bf16.mxu0 0
      %3113 = vmatpush1.bf16.msra.mxu0 %v2997
      %3114 = vmatprep.subr.bf16.mxu0 0
      %3115 = vmatpush1.bf16.msra.mxu0 %v2998
      %3116 = vmatprep.subr.bf16.mxu0 0
      %3117 = vmatpush1.bf16.msra.mxu0 %v2999
      %3118 = vmatprep.subr.bf16.mxu0 0
      %3119 = vmatpush1.bf16.msra.mxu0 %v3000
      %3120 = vmatprep.subr.bf16.mxu0 0
      %3121 = vmatpush1.bf16.msra.mxu0 %v3001
      %3122 = vmatprep.subr.bf16.mxu0 0
      %3123 = vmatpush1.bf16.msra.mxu0 %v3002
      %3124 = vmatprep.subr.bf16.mxu0 0
      %3125 = vmatpush1.bf16.msra.mxu0 %v3003
      %3126 = vmatprep.subr.bf16.mxu0 0
      %3127 = vmatpush1.bf16.msra.mxu0 %v3004
      %3128 = vmatprep.subr.bf16.mxu0 0
      %3129 = vmatpush1.bf16.msra.mxu0 %v3005
      %3130 = vmatprep.subr.bf16.mxu0 0
      %3131 = vmatpush1.bf16.msra.mxu0 %v3006
      %3132 = vmatprep.subr.bf16.mxu0 0
      %3133 = vmatpush1.bf16.msra.mxu0 %v3007
      %3134 = vmatprep.subr.bf16.mxu0 0
      %3135 = vmatpush1.bf16.msra.mxu0 %v3008
      %3136 = vmatprep.subr.bf16.mxu0 0
      %3137 = vmatpush1.bf16.msra.mxu0 %v3009
      %3138 = vmatprep.mubr.bf16.mxu0 %v2645
      %3139 = vmatmul.mubr.bf16.gmra.mrb[0].mxu0 %v2644
      %v3140 = vpop.f32.mrb[0].mxu0
      %v3141 = vadd.f32 %v2768, %v3140
      %v3142 = vpop.f32.mrb[0].mxu0
      %v3143 = vpop.f32.mrb[0].mxu0
      %v3144 = vadd.f32 %v2768, %v3143
      %v3145 = vpop.f32.mrb[0].mxu0
      %3146 = vdwg.mxu0
      %3147 = vmatprep.subr.bf16.mxu0 0
      %3148 = vmatpush1.bf16.msra.mxu0 %v3010
      %3149 = vmatprep.subr.bf16.mxu0 0
      %3150 = vmatpush1.bf16.msra.mxu0 %v3011
      %3151 = vmatprep.subr.bf16.mxu0 0
      %3152 = vmatpush1.bf16.msra.mxu0 %v3012
      %3153 = vmatprep.subr.bf16.mxu0 0
      %3154 = vmatpush1.bf16.msra.mxu0 %v3013
      %3155 = vmatprep.subr.bf16.mxu0 0
      %3156 = vmatpush1.bf16.msra.mxu0 %v3014
      %3157 = vmatprep.subr.bf16.mxu0 0
      %3158 = vmatpush1.bf16.msra.mxu0 %v3015
      %3159 = vmatprep.subr.bf16.mxu0 0
      %3160 = vmatpush1.bf16.msra.mxu0 %v3016
      %3161 = vmatprep.subr.bf16.mxu0 0
      %3162 = vmatpush1.bf16.msra.mxu0 %v3017
      %3163 = vmatprep.subr.bf16.mxu0 0
      %3164 = vmatpush1.bf16.msra.mxu0 %v3018
      %3165 = vmatprep.subr.bf16.mxu0 0
      %3166 = vmatpush1.bf16.msra.mxu0 %v3019
      %3167 = vmatprep.subr.bf16.mxu0 0
      %3168 = vmatpush1.bf16.msra.mxu0 %v3020
      %3169 = vmatprep.subr.bf16.mxu0 0
      %3170 = vmatpush1.bf16.msra.mxu0 %v3021
      %3171 = vmatprep.subr.bf16.mxu0 0
      %3172 = vmatpush1.bf16.msra.mxu0 %v3022
      %3173 = vmatprep.subr.bf16.mxu0 0
      %3174 = vmatpush1.bf16.msra.mxu0 %v3023
      %3175 = vmatprep.subr.bf16.mxu0 0
      %3176 = vmatpush1.bf16.msra.mxu0 %v3024
      %3177 = vmatprep.subr.bf16.mxu0 0
      %3178 = vmatpush1.bf16.msra.mxu0 %v3025
      %3179 = vmatprep.mubr.bf16.mxu0 %v2647
      %3180 = vmatmul.mubr.bf16.gmra.mrb[0].mxu0 %v2646
      %v3181 = vpop.f32.mrb[0].mxu0
      %v3182 = vadd.f32 %v3141, %v3181
      %v3183 = vpop.f32.mrb[0].mxu0
      %v3184 = vpop.f32.mrb[0].mxu0
      %v3185 = vadd.f32 %v3144, %v3184
      %v3186 = vpop.f32.mrb[0].mxu0
      %3187 = vdwg.mxu0
      %3188 = vmatprep.subr.bf16.mxu0 0
      %3189 = vmatpush1.bf16.msra.mxu0 %v3026
      %3190 = vmatprep.subr.bf16.mxu0 0
      %3191 = vmatpush1.bf16.msra.mxu0 %v3027
      %3192 = vmatprep.subr.bf16.mxu0 0
      %3193 = vmatpush1.bf16.msra.mxu0 %v3028
      %3194 = vmatprep.subr.bf16.mxu0 0
      %3195 = vmatpush1.bf16.msra.mxu0 %v3029
      %3196 = vmatprep.subr.bf16.mxu0 0
      %3197 = vmatpush1.bf16.msra.mxu0 %v3030
      %3198 = vmatprep.subr.bf16.mxu0 0
      %3199 = vmatpush1.bf16.msra.mxu0 %v3031
      %3200 = vmatprep.subr.bf16.mxu0 0
      %3201 = vmatpush1.bf16.msra.mxu0 %v3032
      %3202 = vmatprep.subr.bf16.mxu0 0
      %3203 = vmatpush1.bf16.msra.mxu0 %v3033
      %3204 = vmatprep.subr.bf16.mxu0 0
      %3205 = vmatpush1.bf16.msra.mxu0 %v3034
      %3206 = vmatprep.subr.bf16.mxu0 0
      %3207 = vmatpush1.bf16.msra.mxu0 %v3035
      %3208 = vmatprep.subr.bf16.mxu0 0
      %3209 = vmatpush1.bf16.msra.mxu0 %v3036
      %3210 = vmatprep.subr.bf16.mxu0 0
      %3211 = vmatpush1.bf16.msra.mxu0 %v3037
      %3212 = vmatprep.subr.bf16.mxu0 0
      %3213 = vmatpush1.bf16.msra.mxu0 %v3038
      %3214 = vmatprep.subr.bf16.mxu0 0
      %3215 = vmatpush1.bf16.msra.mxu0 %v3039
      %3216 = vmatprep.subr.bf16.mxu0 0
      %3217 = vmatpush1.bf16.msra.mxu0 %v3040
      %3218 = vmatprep.subr.bf16.mxu0 0
      %3219 = vmatpush1.bf16.msra.mxu0 %v3041
      %3220 = vmatprep.mubr.bf16.mxu0 %v2649
      %3221 = vmatmul.mubr.bf16.gmra.mrb[0].mxu0 %v2648
      %v3222 = vpop.f32.mrb[0].mxu0
      %v3223 = vadd.f32 %v3182, %v3222
      %v3224 = vpop.f32.mrb[0].mxu0
      %v3225 = vpop.f32.mrb[0].mxu0
      %v3226 = vadd.f32 %v3185, %v3225
      %v3227 = vpop.f32.mrb[0].mxu0
      %3228 = vdwg.mxu0
      %3229 = vmatprep.subr.bf16.mxu0 0
      %3230 = vmatpush1.bf16.msra.mxu0 %v3042
      %3231 = vmatprep.subr.bf16.mxu0 0
      %3232 = vmatpush1.bf16.msra.mxu0 %v3043
      %3233 = vmatprep.subr.bf16.mxu0 0
      %3234 = vmatpush1.bf16.msra.mxu0 %v3044
      %3235 = vmatprep.subr.bf16.mxu0 0
      %3236 = vmatpush1.bf16.msra.mxu0 %v3045
      %3237 = vmatprep.subr.bf16.mxu0 0
      %3238 = vmatpush1.bf16.msra.mxu0 %v3046
      %3239 = vmatprep.subr.bf16.mxu0 0
      %3240 = vmatpush1.bf16.msra.mxu0 %v3047
      %3241 = vmatprep.subr.bf16.mxu0 0
      %3242 = vmatpush1.bf16.msra.mxu0 %v3048
      %3243 = vmatprep.subr.bf16.mxu0 0
      %3244 = vmatpush1.bf16.msra.mxu0 %v3049
      %3245 = vmatprep.subr.bf16.mxu0 0
      %3246 = vmatpush1.bf16.msra.mxu0 0
      %3247 = vmatprep.subr.bf16.mxu0 0
      %3248 = vmatpush1.bf16.msra.mxu0 0
      %3249 = vmatprep.subr.bf16.mxu0 0
      %3250 = vmatpush1.bf16.msra.mxu0 0
      %3251 = vmatprep.subr.bf16.mxu0 0
      %3252 = vmatpush1.bf16.msra.mxu0 0
      %3253 = vmatprep.subr.bf16.mxu0 0
      %3254 = vmatpush1.bf16.msra.mxu0 0
      %3255 = vmatprep.subr.bf16.mxu0 0
      %3256 = vmatpush1.bf16.msra.mxu0 0
      %3257 = vmatprep.subr.bf16.mxu0 0
      %3258 = vmatpush1.bf16.msra.mxu0 0
      %3259 = vmatprep.subr.bf16.mxu0 0
      %3260 = vmatpush1.bf16.msra.mxu0 0
      %3261 = vmatprep.mubr.bf16.mxu0 0
      %3262 = vmatmul.mubr.bf16.gmra.mrb[0].mxu0 %v2650
      %v3263 = vpop.f32.mrb[0].mxu0
      %v3264 = vadd.f32 %v3223, %v3263
      %v3265 = vpop.f32.mrb[0].mxu0
      %v3266 = vpop.f32.mrb[0].mxu0
      %v3267 = vadd.f32 %v3226, %v3266
      %v3268 = vpop.f32.mrb[0].mxu0
      %3269 = vdwg.mxu0
      %v3270 = vmul.f32 %v3264, 0.5
      %v3271 = vmul.f32 %v3267, 0.5
      %v3272 = vmul.f32 %v3264, 0.044715
      %v3273 = vmul.f32 %v3267, 0.044715
      %v3274 = vmul.f32 %v3272, %v3264
      %v3275 = vmul.f32 %v3273, %v3267
      %v3276 = vmul.f32 %v3274, %v3264
      %v3277 = vmul.f32 %v3275, %v3267
      %v3278 = vadd.f32 %v3264, %v3276
      %v3279 = vadd.f32 %v3267, %v3277
      %v3280 = vmul.f32 %v3278, 0.7978846
      %v3281 = vmul.f32 %v3279, 0.7978846
      %v3282 = vtanh.pop %v3280
      %v3283 = vtanh.pop %v3281
      %v3284 = vadd.f32 %v3282, 1.0
      %v3285 = vadd.f32 %v3283, 1.0
      %v3286 = vmul.f32 %v3270, %v3284
      %v3287 = vmul.f32 %v3271, %v3285
      %3288 = vst [vmem:[%s630] sm:$0xff] %v3286
      %3289 = vst [vmem:[%s630 + $0x8] sm:$0x1] %v3287
      %v3290 = vld [vmem:[%s625] sm:$0xff]
      %v3291 = vld [vmem:[%s625 + $0x8] sm:$0xff]
      %v3292 = vld [vmem:[%s625 + $0x10] sm:$0xff]
      %v3293 = vld [vmem:[%s625 + $0x18] sm:$0xff]
      %v3294 = vld [vmem:[%s625 + $0x20] sm:$0xff]
      %v3295 = vld [vmem:[%s625 + $0x28] sm:$0xff]
      %v3296 = vld [vmem:[%s625 + $0x30] sm:$0xff]
      %v3297 = vld [vmem:[%s625 + $0x38] sm:$0xff]
      %v3298 = vld [vmem:[%s625 + $0x40] sm:$0xff]
      %v3299 = vld [vmem:[%s625 + $0x48] sm:$0xff]
      %v3300 = vld [vmem:[%s625 + $0x50] sm:$0xff]
      %v3301 = vld [vmem:[%s625 + $0x58] sm:$0xff]
      %v3302 = vld [vmem:[%s625 + $0x60] sm:$0xff]
      %v3303 = vld [vmem:[%s625 + $0x68] sm:$0xff]
      %v3304 = vld [vmem:[%s625 + $0x70] sm:$0xff]
      %v3305 = vld [vmem:[%s625 + $0x78] sm:$0xff]
      %v3306 = vld [vmem:[%s625 + $0x80] sm:$0xff]
      %v3307 = vld [vmem:[%s625 + $0x88] sm:$0xff]
      %v3308 = vld [vmem:[%s625 + $0x90] sm:$0xff]
      %v3309 = vld [vmem:[%s625 + $0x98] sm:$0xff]
      %v3310 = vld [vmem:[%s625 + $0xa0] sm:$0xff]
      %v3311 = vld [vmem:[%s625 + $0xa8] sm:$0xff]
      %v3312 = vld [vmem:[%s625 + $0xb0] sm:$0xff]
      %v3313 = vld [vmem:[%s625 + $0xb8] sm:$0xff]
      %v3314 = vpack.c.bf16 %v3298, %v3290
      %v3315 = vpack.c.bf16 %v3299, %v3291
      %v3316 = vpack.c.bf16 %v3300, %v3292
      %v3317 = vpack.c.bf16 %v3301, %v3293
      %v3318 = vpack.c.bf16 %v3302, %v3294
      %v3319 = vpack.c.bf16 %v3303, %v3295
      %v3320 = vpack.c.bf16 %v3304, %v3296
      %v3321 = vpack.c.bf16 %v3305, %v3297
      %v3322 = vpack.c.bf16 %v3306, %v3306
      %v3323 = vpack.c.bf16 %v3307, %v3307
      %v3324 = vpack.c.bf16 %v3308, %v3308
      %v3325 = vpack.c.bf16 %v3309, %v3309
      %v3326 = vpack.c.bf16 %v3310, %v3310
      %v3327 = vpack.c.bf16 %v3311, %v3311
      %v3328 = vpack.c.bf16 %v3312, %v3312
      %v3329 = vpack.c.bf16 %v3313, %v3313
      %v3330 = vld [vmem:[%s10] sm:$0xf]
      %v3331 = vld [vmem:[%s10 + $0x4] sm:$0xf]
      %v3332 = vld [vmem:[%s10 + $0x8] sm:$0xf]
      %v3333 = vld [vmem:[%s10 + $0xc] sm:$0xf]
      %v3334 = vld [vmem:[%s10 + $0x10] sm:$0xf]
      %v3335 = vld [vmem:[%s10 + $0x14] sm:$0xf]
      %v3336 = vld [vmem:[%s10 + $0x18] sm:$0xf]
      %v3337 = vld [vmem:[%s10 + $0x1c] sm:$0xf]
      %v3338 = vld [vmem:[%s10 + $0x20] sm:$0xf]
      %v3339 = vld [vmem:[%s10 + $0x24] sm:$0xf]
      %v3340 = vld [vmem:[%s10 + $0x28] sm:$0xf]
      %v3341 = vld [vmem:[%s10 + $0x2c] sm:$0xf]
      %v3342 = vld [vmem:[%s10 + $0x30] sm:$0xf]
      %v3343 = vld [vmem:[%s10 + $0x34] sm:$0xf]
      %v3344 = vld [vmem:[%s10 + $0x38] sm:$0xf]
      %v3345 = vld [vmem:[%s10 + $0x3c] sm:$0xf]
      %v3346 = vld [vmem:[%s10 + $0x40] sm:$0xf]
      %v3347 = vld [vmem:[%s10 + $0x44] sm:$0xf]
      %v3348 = vld [vmem:[%s10 + $0x48] sm:$0xf]
      %v3349 = vld [vmem:[%s10 + $0x4c] sm:$0xf]
      %v3350 = vld [vmem:[%s10 + $0x50] sm:$0xf]
      %v3351 = vld [vmem:[%s10 + $0x54] sm:$0xf]
      %v3352 = vld [vmem:[%s10 + $0x58] sm:$0xf]
      %v3353 = vld [vmem:[%s10 + $0x5c] sm:$0xf]
      %v3354 = vld [vmem:[%s10 + $0x60] sm:$0xf]
      %v3355 = vld [vmem:[%s10 + $0x64] sm:$0xf]
      %v3356 = vld [vmem:[%s10 + $0x68] sm:$0xf]
      %v3357 = vld [vmem:[%s10 + $0x6c] sm:$0xf]
      %v3358 = vld [vmem:[%s10 + $0x70] sm:$0xf]
      %v3359 = vld [vmem:[%s10 + $0x74] sm:$0xf]
      %v3360 = vld [vmem:[%s10 + $0x78] sm:$0xf]
      %v3361 = vld [vmem:[%s10 + $0x7c] sm:$0xf]
      %v3362 = vld [vmem:[%s10 + $0x80] sm:$0xf]
      %v3363 = vld [vmem:[%s10 + $0x84] sm:$0xf]
      %v3364 = vld [vmem:[%s10 + $0x88] sm:$0xf]
      %v3365 = vld [vmem:[%s10 + $0x8c] sm:$0xf]
      %v3366 = vld [vmem:[%s10 + $0x90] sm:$0xf]
      %v3367 = vld [vmem:[%s10 + $0x94] sm:$0xf]
      %v3368 = vld [vmem:[%s10 + $0x98] sm:$0xf]
      %v3369 = vld [vmem:[%s10 + $0x9c] sm:$0xf]
      %v3370 = vld [vmem:[%s10 + $0xa0] sm:$0xf]
      %v3371 = vld [vmem:[%s10 + $0xa4] sm:$0xf]
      %v3372 = vld [vmem:[%s10 + $0xa8] sm:$0xf]
      %v3373 = vld [vmem:[%s10 + $0xac] sm:$0xf]
      %v3374 = vld [vmem:[%s10 + $0xb0] sm:$0xf]
      %v3375 = vld [vmem:[%s10 + $0xb4] sm:$0xf]
      %v3376 = vld [vmem:[%s10 + $0xb8] sm:$0xf]
      %v3377 = vld [vmem:[%s10 + $0xbc] sm:$0xf]
      %v3378 = vld [vmem:[%s10 + $0xc0] sm:$0xf]
      %v3379 = vld [vmem:[%s10 + $0xc4] sm:$0xf]
      %v3380 = vld [vmem:[%s10 + $0xc8] sm:$0xf]
      %v3381 = vld [vmem:[%s10 + $0xcc] sm:$0xf]
      %v3382 = vld [vmem:[%s10 + $0xd0] sm:$0xf]
      %v3383 = vld [vmem:[%s10 + $0xd4] sm:$0xf]
      %v3384 = vld [vmem:[%s10 + $0xd8] sm:$0xf]
      %v3385 = vld [vmem:[%s10 + $0xdc] sm:$0xf]
      %v3386 = vld [vmem:[%s10 + $0xe0] sm:$0xf]
      %v3387 = vld [vmem:[%s10 + $0xe4] sm:$0xf]
      %v3388 = vld [vmem:[%s10 + $0xe8] sm:$0xf]
      %v3389 = vld [vmem:[%s10 + $0xec] sm:$0xf]
      %v3390 = vld [vmem:[%s10 + $0xf0] sm:$0xf]
      %v3391 = vld [vmem:[%s10 + $0xf4] sm:$0xf]
      %v3392 = vld [vmem:[%s10 + $0xf8] sm:$0xf]
      %v3393 = vld [vmem:[%s10 + $0xfc] sm:$0xf]
      %v3394 = vld [vmem:[%s10 + $0x100] sm:$0xf]
      %v3395 = vld [vmem:[%s10 + $0x104] sm:$0xf]
      %v3396 = vld [vmem:[%s10 + $0x108] sm:$0xf]
      %v3397 = vld [vmem:[%s10 + $0x10c] sm:$0xf]
      %v3398 = vld [vmem:[%s10 + $0x110] sm:$0xf]
      %v3399 = vld [vmem:[%s10 + $0x114] sm:$0xf]
      %v3400 = vld [vmem:[%s10 + $0x118] sm:$0xf]
      %v3401 = vld [vmem:[%s10 + $0x11c] sm:$0xf]
      %v3402 = vld [vmem:[%s10 + $0x120] sm:$0xf]
      %v3403 = vld [vmem:[%s10 + $0x124] sm:$0xf]
      %v3404 = vld [vmem:[%s10 + $0x128] sm:$0xf]
      %v3405 = vld [vmem:[%s10 + $0x12c] sm:$0xf]
      %v3406 = vld [vmem:[%s10 + $0x130] sm:$0xf]
      %v3407 = vld [vmem:[%s10 + $0x134] sm:$0xf]
      %v3408 = vld [vmem:[%s10 + $0x138] sm:$0xf]
      %v3409 = vld [vmem:[%s10 + $0x13c] sm:$0xf]
      %v3410 = vld [vmem:[%s10 + $0x140] sm:$0xf]
      %v3411 = vld [vmem:[%s10 + $0x144] sm:$0xf]
      %v3412 = vld [vmem:[%s10 + $0x148] sm:$0xf]
      %v3413 = vld [vmem:[%s10 + $0x14c] sm:$0xf]
      %v3414 = vld [vmem:[%s10 + $0x150] sm:$0xf]
      %v3415 = vld [vmem:[%s10 + $0x154] sm:$0xf]
      %v3416 = vld [vmem:[%s10 + $0x158] sm:$0xf]
      %v3417 = vld [vmem:[%s10 + $0x15c] sm:$0xf]
      %v3418 = vld [vmem:[%s10 + $0x160] sm:$0xf]
      %v3419 = vld [vmem:[%s10 + $0x164] sm:$0xf]
      %v3420 = vld [vmem:[%s10 + $0x168] sm:$0xf]
      %v3421 = vld [vmem:[%s10 + $0x16c] sm:$0xf]
      %v3422 = vld [vmem:[%s10 + $0x170] sm:$0xf]
      %v3423 = vld [vmem:[%s10 + $0x174] sm:$0xf]
      %v3424 = vld [vmem:[%s10 + $0x178] sm:$0xf]
      %v3425 = vld [vmem:[%s10 + $0x17c] sm:$0xf]
      %v3426 = vld [vmem:[%s10 + $0x180] sm:$0xf]
      %v3427 = vld [vmem:[%s10 + $0x184] sm:$0xf]
      %v3428 = vld [vmem:[%s10 + $0x188] sm:$0xf]
      %v3429 = vld [vmem:[%s10 + $0x18c] sm:$0xf]
      %v3430 = vld [vmem:[%s10 + $0x190] sm:$0xf]
      %v3431 = vld [vmem:[%s10 + $0x194] sm:$0xf]
      %v3432 = vld [vmem:[%s10 + $0x198] sm:$0xf]
      %v3433 = vld [vmem:[%s10 + $0x19c] sm:$0xf]
      %v3434 = vld [vmem:[%s10 + $0x1a0] sm:$0xf]
      %v3435 = vld [vmem:[%s10 + $0x1a4] sm:$0xf]
      %v3436 = vld [vmem:[%s10 + $0x1a8] sm:$0xf]
      %v3437 = vld [vmem:[%s10 + $0x1ac] sm:$0xf]
      %v3438 = vld [vmem:[%s10 + $0x1b0] sm:$0xf]
      %v3439 = vld [vmem:[%s10 + $0x1b4] sm:$0xf]
      %v3440 = vld [vmem:[%s10 + $0x1b8] sm:$0xf]
      %v3441 = vld [vmem:[%s10 + $0x1bc] sm:$0xf]
      %v3442 = vld [vmem:[%s10 + $0x1c0] sm:$0xf]
      %v3443 = vld [vmem:[%s10 + $0x1c4] sm:$0xf]
      %v3444 = vld [vmem:[%s10 + $0x1c8] sm:$0xf]
      %v3445 = vld [vmem:[%s10 + $0x1cc] sm:$0xf]
      %v3446 = vld [vmem:[%s10 + $0x1d0] sm:$0xf]
      %v3447 = vld [vmem:[%s10 + $0x1d4] sm:$0xf]
      %v3448 = vld [vmem:[%s10 + $0x1d8] sm:$0xf]
      %v3449 = vld [vmem:[%s10 + $0x1dc] sm:$0xf]
      %v3450 = vld [vmem:[%s10 + $0x1e0] sm:$0xf]
      %v3451 = vld [vmem:[%s10 + $0x1e4] sm:$0xf]
      %v3452 = vld [vmem:[%s10 + $0x1e8] sm:$0xf]
      %v3453 = vld [vmem:[%s10 + $0x1ec] sm:$0xf]
      %v3454 = vld [vmem:[%s10 + $0x1f0] sm:$0xf]
      %v3455 = vld [vmem:[%s10 + $0x1f4] sm:$0xf]
      %v3456 = vld [vmem:[%s10 + $0x1f8] sm:$0xf]
      %v3457 = vld [vmem:[%s10 + $0x1fc] sm:$0xf]
      %v3458 = vld [vmem:[%s11] sm:$0x1]
      %v3460 = vlaneseq
      %v3461 = vshrl.u32 %v3460, 7
      %v3462 = vsub.s32 0, %v3461
      %v3463 = vrot.slane %v3458, %v3462
      %v3593 = vunpack.c.l.b16 %v3330
      %v3594 = vunpack.c.l.b16 %v3331
      %v3595 = vunpack.c.l.b16 %v3332
      %v3596 = vunpack.c.l.b16 %v3333
      %v3597 = vunpack.c.l.b16 %v3334
      %v3598 = vunpack.c.l.b16 %v3335
      %v3599 = vunpack.c.l.b16 %v3336
      %v3600 = vunpack.c.l.b16 %v3337
      %v3601 = vunpack.c.l.b16 %v3338
      %v3602 = vunpack.c.l.b16 %v3339
      %v3603 = vunpack.c.l.b16 %v3340
      %v3604 = vunpack.c.l.b16 %v3341
      %v3605 = vunpack.c.l.b16 %v3342
      %v3606 = vunpack.c.l.b16 %v3343
      %v3607 = vunpack.c.l.b16 %v3344
      %v3608 = vunpack.c.l.b16 %v3345
      %v3609 = vunpack.c.l.b16 %v3346
      %v3610 = vunpack.c.l.b16 %v3347
      %v3611 = vunpack.c.l.b16 %v3348
      %v3612 = vunpack.c.l.b16 %v3349
      %v3613 = vunpack.c.l.b16 %v3350
      %v3614 = vunpack.c.l.b16 %v3351
      %v3615 = vunpack.c.l.b16 %v3352
      %v3616 = vunpack.c.l.b16 %v3353
      %v3617 = vunpack.c.l.b16 %v3354
      %v3618 = vunpack.c.l.b16 %v3355
      %v3619 = vunpack.c.l.b16 %v3356
      %v3620 = vunpack.c.l.b16 %v3357
      %v3621 = vunpack.c.l.b16 %v3358
      %v3622 = vunpack.c.l.b16 %v3359
      %v3623 = vunpack.c.l.b16 %v3360
      %v3624 = vunpack.c.l.b16 %v3361
      %v3625 = vunpack.c.l.b16 %v3362
      %v3626 = vunpack.c.l.b16 %v3363
      %v3627 = vunpack.c.l.b16 %v3364
      %v3628 = vunpack.c.l.b16 %v3365
      %v3629 = vunpack.c.l.b16 %v3366
      %v3630 = vunpack.c.l.b16 %v3367
      %v3631 = vunpack.c.l.b16 %v3368
      %v3632 = vunpack.c.l.b16 %v3369
      %v3633 = vunpack.c.l.b16 %v3370
      %v3634 = vunpack.c.l.b16 %v3371
      %v3635 = vunpack.c.l.b16 %v3372
      %v3636 = vunpack.c.l.b16 %v3373
      %v3637 = vunpack.c.l.b16 %v3374
      %v3638 = vunpack.c.l.b16 %v3375
      %v3639 = vunpack.c.l.b16 %v3376
      %v3640 = vunpack.c.l.b16 %v3377
      %v3641 = vunpack.c.l.b16 %v3378
      %v3642 = vunpack.c.l.b16 %v3379
      %v3643 = vunpack.c.l.b16 %v3380
      %v3644 = vunpack.c.l.b16 %v3381
      %v3645 = vunpack.c.l.b16 %v3382
      %v3646 = vunpack.c.l.b16 %v3383
      %v3647 = vunpack.c.l.b16 %v3384
      %v3648 = vunpack.c.l.b16 %v3385
      %v3649 = vunpack.c.l.b16 %v3386
      %v3650 = vunpack.c.l.b16 %v3387
      %v3651 = vunpack.c.l.b16 %v3388
      %v3652 = vunpack.c.l.b16 %v3389
      %v3653 = vunpack.c.l.b16 %v3390
      %v3654 = vunpack.c.l.b16 %v3391
      %v3655 = vunpack.c.l.b16 %v3392
      %v3656 = vunpack.c.l.b16 %v3393
      %v3657 = vunpack.c.l.b16 %v3394
      %v3658 = vunpack.c.l.b16 %v3395
      %v3659 = vunpack.c.l.b16 %v3396
      %v3660 = vunpack.c.l.b16 %v3397
      %v3661 = vunpack.c.l.b16 %v3398
      %v3662 = vunpack.c.l.b16 %v3399
      %v3663 = vunpack.c.l.b16 %v3400
      %v3664 = vunpack.c.l.b16 %v3401
      %v3665 = vunpack.c.l.b16 %v3402
      %v3666 = vunpack.c.l.b16 %v3403
      %v3667 = vunpack.c.l.b16 %v3404
      %v3668 = vunpack.c.l.b16 %v3405
      %v3669 = vunpack.c.l.b16 %v3406
      %v3670 = vunpack.c.l.b16 %v3407
      %v3671 = vunpack.c.l.b16 %v3408
      %v3672 = vunpack.c.l.b16 %v3409
      %v3673 = vunpack.c.l.b16 %v3410
      %v3674 = vunpack.c.l.b16 %v3411
      %v3675 = vunpack.c.l.b16 %v3412
      %v3676 = vunpack.c.l.b16 %v3413
      %v3677 = vunpack.c.l.b16 %v3414
      %v3678 = vunpack.c.l.b16 %v3415
      %v3679 = vunpack.c.l.b16 %v3416
      %v3680 = vunpack.c.l.b16 %v3417
      %v3681 = vunpack.c.l.b16 %v3418
      %v3682 = vunpack.c.l.b16 %v3419
      %v3683 = vunpack.c.l.b16 %v3420
      %v3684 = vunpack.c.l.b16 %v3421
      %v3685 = vunpack.c.l.b16 %v3422
      %v3686 = vunpack.c.l.b16 %v3423
      %v3687 = vunpack.c.l.b16 %v3424
      %v3688 = vunpack.c.l.b16 %v3425
      %v3689 = vunpack.c.l.b16 %v3426
      %v3690 = vunpack.c.l.b16 %v3427
      %v3691 = vunpack.c.l.b16 %v3428
      %v3692 = vunpack.c.l.b16 %v3429
      %v3693 = vunpack.c.l.b16 %v3430
      %v3694 = vunpack.c.l.b16 %v3431
      %v3695 = vunpack.c.l.b16 %v3432
      %v3696 = vunpack.c.l.b16 %v3433
      %v3697 = vunpack.c.l.b16 %v3434
      %v3698 = vunpack.c.l.b16 %v3435
      %v3699 = vunpack.c.l.b16 %v3436
      %v3700 = vunpack.c.l.b16 %v3437
      %v3701 = vunpack.c.l.b16 %v3438
      %v3702 = vunpack.c.l.b16 %v3439
      %v3703 = vunpack.c.l.b16 %v3440
      %v3704 = vunpack.c.l.b16 %v3441
      %v3705 = vunpack.c.l.b16 %v3442
      %v3706 = vunpack.c.l.b16 %v3443
      %v3707 = vunpack.c.l.b16 %v3444
      %v3708 = vunpack.c.l.b16 %v3445
      %v3709 = vunpack.c.l.b16 %v3446
      %v3710 = vunpack.c.l.b16 %v3447
      %v3711 = vunpack.c.l.b16 %v3448
      %v3712 = vunpack.c.l.b16 %v3449
      %v3713 = vunpack.c.l.b16 %v3450
      %v3714 = vunpack.c.l.b16 %v3451
      %v3715 = vunpack.c.l.b16 %v3452
      %v3716 = vunpack.c.l.b16 %v3453
      %v3717 = vunpack.c.l.b16 %v3454
      %v3718 = vunpack.c.l.b16 %v3455
      %v3719 = vunpack.c.l.b16 %v3456
      %v3720 = vunpack.c.l.b16 %v3457
      %v3721 = vpack.c.b16 %v3594, %v3593
      %v3722 = vpack.c.b16 %v3596, %v3595
      %v3723 = vpack.c.b16 %v3598, %v3597
      %v3724 = vpack.c.b16 %v3600, %v3599
      %v3725 = vpack.c.b16 %v3602, %v3601
      %v3726 = vpack.c.b16 %v3604, %v3603
      %v3727 = vpack.c.b16 %v3606, %v3605
      %v3728 = vpack.c.b16 %v3608, %v3607
      %v3729 = vpack.c.b16 %v3610, %v3609
      %v3730 = vpack.c.b16 %v3612, %v3611
      %v3731 = vpack.c.b16 %v3614, %v3613
      %v3732 = vpack.c.b16 %v3616, %v3615
      %v3733 = vpack.c.b16 %v3618, %v3617
      %v3734 = vpack.c.b16 %v3620, %v3619
      %v3735 = vpack.c.b16 %v3622, %v3621
      %v3736 = vpack.c.b16 %v3624, %v3623
      %v3737 = vpack.c.b16 %v3626, %v3625
      %v3738 = vpack.c.b16 %v3628, %v3627
      %v3739 = vpack.c.b16 %v3630, %v3629
      %v3740 = vpack.c.b16 %v3632, %v3631
      %v3741 = vpack.c.b16 %v3634, %v3633
      %v3742 = vpack.c.b16 %v3636, %v3635
      %v3743 = vpack.c.b16 %v3638, %v3637
      %v3744 = vpack.c.b16 %v3640, %v3639
      %v3745 = vpack.c.b16 %v3642, %v3641
      %v3746 = vpack.c.b16 %v3644, %v3643
      %v3747 = vpack.c.b16 %v3646, %v3645
      %v3748 = vpack.c.b16 %v3648, %v3647
      %v3749 = vpack.c.b16 %v3650, %v3649
      %v3750 = vpack.c.b16 %v3652, %v3651
      %v3751 = vpack.c.b16 %v3654, %v3653
      %v3752 = vpack.c.b16 %v3656, %v3655
      %v3753 = vpack.c.b16 %v3658, %v3657
      %v3754 = vpack.c.b16 %v3660, %v3659
      %v3755 = vpack.c.b16 %v3662, %v3661
      %v3756 = vpack.c.b16 %v3664, %v3663
      %v3757 = vpack.c.b16 %v3666, %v3665
      %v3758 = vpack.c.b16 %v3668, %v3667
      %v3759 = vpack.c.b16 %v3670, %v3669
      %v3760 = vpack.c.b16 %v3672, %v3671
      %v3761 = vpack.c.b16 %v3674, %v3673
      %v3762 = vpack.c.b16 %v3676, %v3675
      %v3763 = vpack.c.b16 %v3678, %v3677
      %v3764 = vpack.c.b16 %v3680, %v3679
      %v3765 = vpack.c.b16 %v3682, %v3681
      %v3766 = vpack.c.b16 %v3684, %v3683
      %v3767 = vpack.c.b16 %v3686, %v3685
      %v3768 = vpack.c.b16 %v3688, %v3687
      %v3769 = vpack.c.b16 %v3690, %v3689
      %v3770 = vpack.c.b16 %v3692, %v3691
      %v3771 = vpack.c.b16 %v3694, %v3693
      %v3772 = vpack.c.b16 %v3696, %v3695
      %v3773 = vpack.c.b16 %v3698, %v3697
      %v3774 = vpack.c.b16 %v3700, %v3699
      %v3775 = vpack.c.b16 %v3702, %v3701
      %v3776 = vpack.c.b16 %v3704, %v3703
      %v3777 = vpack.c.b16 %v3706, %v3705
      %v3778 = vpack.c.b16 %v3708, %v3707
      %v3779 = vpack.c.b16 %v3710, %v3709
      %v3780 = vpack.c.b16 %v3712, %v3711
      %v3781 = vpack.c.b16 %v3714, %v3713
      %v3782 = vpack.c.b16 %v3716, %v3715
      %v3783 = vpack.c.b16 %v3718, %v3717
      %v3784 = vpack.c.b16 %v3720, %v3719
      %3849 = vmatprep.subr.bf16.mxu0 0
      %3850 = vmatpush1.bf16.msra.mxu0 %v3721
      %3851 = vmatprep.subr.bf16.mxu0 0
      %3852 = vmatpush1.bf16.msra.mxu0 %v3722
      %3853 = vmatprep.subr.bf16.mxu0 0
      %3854 = vmatpush1.bf16.msra.mxu0 %v3723
      %3855 = vmatprep.subr.bf16.mxu0 0
      %3856 = vmatpush1.bf16.msra.mxu0 %v3724
      %3857 = vmatprep.subr.bf16.mxu0 0
      %3858 = vmatpush1.bf16.msra.mxu0 %v3725
      %3859 = vmatprep.subr.bf16.mxu0 0
      %3860 = vmatpush1.bf16.msra.mxu0 %v3726
      %3861 = vmatprep.subr.bf16.mxu0 0
      %3862 = vmatpush1.bf16.msra.mxu0 %v3727
      %3863 = vmatprep.subr.bf16.mxu0 0
      %3864 = vmatpush1.bf16.msra.mxu0 %v3728
      %3865 = vmatprep.subr.bf16.mxu0 0
      %3866 = vmatpush1.bf16.msra.mxu0 %v3729
      %3867 = vmatprep.subr.bf16.mxu0 0
      %3868 = vmatpush1.bf16.msra.mxu0 %v3730
      %3869 = vmatprep.subr.bf16.mxu0 0
      %3870 = vmatpush1.bf16.msra.mxu0 %v3731
      %3871 = vmatprep.subr.bf16.mxu0 0
      %3872 = vmatpush1.bf16.msra.mxu0 %v3732
      %3873 = vmatprep.subr.bf16.mxu0 0
      %3874 = vmatpush1.bf16.msra.mxu0 %v3733
      %3875 = vmatprep.subr.bf16.mxu0 0
      %3876 = vmatpush1.bf16.msra.mxu0 %v3734
      %3877 = vmatprep.subr.bf16.mxu0 0
      %3878 = vmatpush1.bf16.msra.mxu0 %v3735
      %3879 = vmatprep.subr.bf16.mxu0 0
      %3880 = vmatpush1.bf16.msra.mxu0 %v3736
      %3881 = vmatprep.mubr.bf16.mxu0 %v3315
      %3882 = vmatmul.mubr.bf16.gmra.mrb[0].mxu0 %v3314
      %v3883 = vpop.f32.mrb[0].mxu0
      %v3884 = vadd.f32 %v3463, %v3883
      %v3885 = vpop.f32.mrb[0].mxu0
      %v3886 = vpop.f32.mrb[0].mxu0
      %v3887 = vadd.f32 %v3463, %v3886
      %v3888 = vpop.f32.mrb[0].mxu0
      %3889 = vmatprep.mubr.bf16.mxu0 %v3323
      %3890 = vmatmul.mubr.bf16.gmra.mrb[0].mxu0 %v3322
      %v3891 = vpop.f32.mrb[0].mxu0
      %v3892 = vadd.f32 %v3463, %v3891
      %v3893 = vpop.f32.mrb[0].mxu0
      %v3894 = vpop.f32.mrb[0].mxu0
      %v3895 = vpop.f32.mrb[0].mxu0
      %3896 = vdwg.mxu0
      %3897 = vmatprep.subr.bf16.mxu0 0
      %3898 = vmatpush1.bf16.msra.mxu0 %v3737
      %3899 = vmatprep.subr.bf16.mxu0 0
      %3900 = vmatpush1.bf16.msra.mxu0 %v3738
      %3901 = vmatprep.subr.bf16.mxu0 0
      %3902 = vmatpush1.bf16.msra.mxu0 %v3739
      %3903 = vmatprep.subr.bf16.mxu0 0
      %3904 = vmatpush1.bf16.msra.mxu0 %v3740
      %3905 = vmatprep.subr.bf16.mxu0 0
      %3906 = vmatpush1.bf16.msra.mxu0 %v3741
      %3907 = vmatprep.subr.bf16.mxu0 0
      %3908 = vmatpush1.bf16.msra.mxu0 %v3742
      %3909 = vmatprep.subr.bf16.mxu0 0
      %3910 = vmatpush1.bf16.msra.mxu0 %v3743
      %3911 = vmatprep.subr.bf16.mxu0 0
      %3912 = vmatpush1.bf16.msra.mxu0 %v3744
      %3913 = vmatprep.subr.bf16.mxu0 0
      %3914 = vmatpush1.bf16.msra.mxu0 %v3745
      %3915 = vmatprep.subr.bf16.mxu0 0
      %3916 = vmatpush1.bf16.msra.mxu0 %v3746
      %3917 = vmatprep.subr.bf16.mxu0 0
      %3918 = vmatpush1.bf16.msra.mxu0 %v3747
      %3919 = vmatprep.subr.bf16.mxu0 0
      %3920 = vmatpush1.bf16.msra.mxu0 %v3748
      %3921 = vmatprep.subr.bf16.mxu0 0
      %3922 = vmatpush1.bf16.msra.mxu0 %v3749
      %3923 = vmatprep.subr.bf16.mxu0 0
      %3924 = vmatpush1.bf16.msra.mxu0 %v3750
      %3925 = vmatprep.subr.bf16.mxu0 0
      %3926 = vmatpush1.bf16.msra.mxu0 %v3751
      %3927 = vmatprep.subr.bf16.mxu0 0
      %3928 = vmatpush1.bf16.msra.mxu0 %v3752
      %3929 = vmatprep.mubr.bf16.mxu0 %v3317
      %3930 = vmatmul.mubr.bf16.gmra.mrb[0].mxu0 %v3316
      %v3931 = vpop.f32.mrb[0].mxu0
      %v3932 = vadd.f32 %v3884, %v3931
      %v3933 = vpop.f32.mrb[0].mxu0
      %v3934 = vpop.f32.mrb[0].mxu0
      %v3935 = vadd.f32 %v3887, %v3934
      %v3936 = vpop.f32.mrb[0].mxu0
      %3937 = vmatprep.mubr.bf16.mxu0 %v3325
      %3938 = vmatmul.mubr.bf16.gmra.mrb[0].mxu0 %v3324
      %v3939 = vpop.f32.mrb[0].mxu0
      %v3940 = vadd.f32 %v3892, %v3939
      %v3941 = vpop.f32.mrb[0].mxu0
      %v3942 = vpop.f32.mrb[0].mxu0
      %v3943 = vpop.f32.mrb[0].mxu0
      %3944 = vdwg.mxu0
      %3945 = vmatprep.subr.bf16.mxu0 0
      %3946 = vmatpush1.bf16.msra.mxu0 %v3753
      %3947 = vmatprep.subr.bf16.mxu0 0
      %3948 = vmatpush1.bf16.msra.mxu0 %v3754
      %3949 = vmatprep.subr.bf16.mxu0 0
      %3950 = vmatpush1.bf16.msra.mxu0 %v3755
      %3951 = vmatprep.subr.bf16.mxu0 0
      %3952 = vmatpush1.bf16.msra.mxu0 %v3756
      %3953 = vmatprep.subr.bf16.mxu0 0
      %3954 = vmatpush1.bf16.msra.mxu0 %v3757
      %3955 = vmatprep.subr.bf16.mxu0 0
      %3956 = vmatpush1.bf16.msra.mxu0 %v3758
      %3957 = vmatprep.subr.bf16.mxu0 0
      %3958 = vmatpush1.bf16.msra.mxu0 %v3759
      %3959 = vmatprep.subr.bf16.mxu0 0
      %3960 = vmatpush1.bf16.msra.mxu0 %v3760
      %3961 = vmatprep.subr.bf16.mxu0 0
      %3962 = vmatpush1.bf16.msra.mxu0 %v3761
      %3963 = vmatprep.subr.bf16.mxu0 0
      %3964 = vmatpush1.bf16.msra.mxu0 %v3762
      %3965 = vmatprep.subr.bf16.mxu0 0
      %3966 = vmatpush1.bf16.msra.mxu0 %v3763
      %3967 = vmatprep.subr.bf16.mxu0 0
      %3968 = vmatpush1.bf16.msra.mxu0 %v3764
      %3969 = vmatprep.subr.bf16.mxu0 0
      %3970 = vmatpush1.bf16.msra.mxu0 %v3765
      %3971 = vmatprep.subr.bf16.mxu0 0
      %3972 = vmatpush1.bf16.msra.mxu0 %v3766
      %3973 = vmatprep.subr.bf16.mxu0 0
      %3974 = vmatpush1.bf16.msra.mxu0 %v3767
      %3975 = vmatprep.subr.bf16.mxu0 0
      %3976 = vmatpush1.bf16.msra.mxu0 %v3768
      %3977 = vmatprep.mubr.bf16.mxu0 %v3319
      %3978 = vmatmul.mubr.bf16.gmra.mrb[0].mxu0 %v3318
      %v3979 = vpop.f32.mrb[0].mxu0
      %v3980 = vadd.f32 %v3932, %v3979
      %v3981 = vpop.f32.mrb[0].mxu0
      %v3982 = vpop.f32.mrb[0].mxu0
      %v3983 = vadd.f32 %v3935, %v3982
      %v3984 = vpop.f32.mrb[0].mxu0
      %3985 = vmatprep.mubr.bf16.mxu0 %v3327
      %3986 = vmatmul.mubr.bf16.gmra.mrb[0].mxu0 %v3326
      %v3987 = vpop.f32.mrb[0].mxu0
      %v3988 = vadd.f32 %v3940, %v3987
      %v3989 = vpop.f32.mrb[0].mxu0
      %v3990 = vpop.f32.mrb[0].mxu0
      %v3991 = vpop.f32.mrb[0].mxu0
      %3992 = vdwg.mxu0
      %3993 = vmatprep.subr.bf16.mxu0 0
      %3994 = vmatpush1.bf16.msra.mxu0 %v3769
      %3995 = vmatprep.subr.bf16.mxu0 0
      %3996 = vmatpush1.bf16.msra.mxu0 %v3770
      %3997 = vmatprep.subr.bf16.mxu0 0
      %3998 = vmatpush1.bf16.msra.mxu0 %v3771
      %3999 = vmatprep.subr.bf16.mxu0 0
      %4000 = vmatpush1.bf16.msra.mxu0 %v3772
      %4001 = vmatprep.subr.bf16.mxu0 0
      %4002 = vmatpush1.bf16.msra.mxu0 %v3773
      %4003 = vmatprep.subr.bf16.mxu0 0
      %4004 = vmatpush1.bf16.msra.mxu0 %v3774
      %4005 = vmatprep.subr.bf16.mxu0 0
      %4006 = vmatpush1.bf16.msra.mxu0 %v3775
      %4007 = vmatprep.subr.bf16.mxu0 0
      %4008 = vmatpush1.bf16.msra.mxu0 %v3776
      %4009 = vmatprep.subr.bf16.mxu0 0
      %4010 = vmatpush1.bf16.msra.mxu0 %v3777
      %4011 = vmatprep.subr.bf16.mxu0 0
      %4012 = vmatpush1.bf16.msra.mxu0 %v3778
      %4013 = vmatprep.subr.bf16.mxu0 0
      %4014 = vmatpush1.bf16.msra.mxu0 %v3779
      %4015 = vmatprep.subr.bf16.mxu0 0
      %4016 = vmatpush1.bf16.msra.mxu0 %v3780
      %4017 = vmatprep.subr.bf16.mxu0 0
      %4018 = vmatpush1.bf16.msra.mxu0 %v3781
      %4019 = vmatprep.subr.bf16.mxu0 0
      %4020 = vmatpush1.bf16.msra.mxu0 %v3782
      %4021 = vmatprep.subr.bf16.mxu0 0
      %4022 = vmatpush1.bf16.msra.mxu0 %v3783
      %4023 = vmatprep.subr.bf16.mxu0 0
      %4024 = vmatpush1.bf16.msra.mxu0 %v3784
      %4025 = vmatprep.mubr.bf16.mxu0 %v3321
      %4026 = vmatmul.mubr.bf16.gmra.mrb[0].mxu0 %v3320
      %v4027 = vpop.f32.mrb[0].mxu0
      %v4028 = vadd.f32 %v3980, %v4027
      %v4029 = vpop.f32.mrb[0].mxu0
      %v4030 = vpop.f32.mrb[0].mxu0
      %v4031 = vadd.f32 %v3983, %v4030
      %v4032 = vpop.f32.mrb[0].mxu0
      %4033 = vmatprep.mubr.bf16.mxu0 %v3329
      %4034 = vmatmul.mubr.bf16.gmra.mrb[0].mxu0 %v3328
      %v4035 = vpop.f32.mrb[0].mxu0
      %v4036 = vadd.f32 %v3988, %v4035
      %v4037 = vpop.f32.mrb[0].mxu0
      %v4038 = vpop.f32.mrb[0].mxu0
      %v4039 = vpop.f32.mrb[0].mxu0
      %4040 = vdwg.mxu0
      %v4041 = vmul.f32 %v4028, 0.5
      %v4042 = vmul.f32 %v4031, 0.5
      %v4043 = vmul.f32 %v4036, 0.5
      %v4044 = vmul.f32 %v4028, 0.044715
      %v4045 = vmul.f32 %v4031, 0.044715
      %v4046 = vmul.f32 %v4036, 0.044715
      %v4047 = vmul.f32 %v4044, %v4028
      %v4048 = vmul.f32 %v4045, %v4031
      %v4049 = vmul.f32 %v4046, %v4036
      %v4050 = vmul.f32 %v4047, %v4028
      %v4051 = vmul.f32 %v4048, %v4031
      %v4052 = vmul.f32 %v4049, %v4036
      %v4053 = vadd.f32 %v4028, %v4050
      %v4054 = vadd.f32 %v4031, %v4051
      %v4055 = vadd.f32 %v4036, %v4052
      %v4056 = vmul.f32 %v4053, 0.7978846
      %v4057 = vmul.f32 %v4054, 0.7978846
      %v4058 = vmul.f32 %v4055, 0.7978846
      %v4059 = vtanh.pop %v4056
      %v4060 = vtanh.pop %v4057
      %v4061 = vtanh.pop %v4058
      %v4062 = vadd.f32 %v4059, 1.0
      %v4063 = vadd.f32 %v4060, 1.0
      %v4064 = vadd.f32 %v4061, 1.0
      %v4065 = vmul.f32 %v4041, %v4062
      %v4066 = vmul.f32 %v4042, %v4063
      %v4067 = vmul.f32 %v4043, %v4064
      %4068 = vst [vmem:[#allocation4] sm:$0xff] %v4065
      %4069 = vst [vmem:[#allocation4 + $0x8] sm:$0xff] %v4066
      %4070 = vst [vmem:[#allocation4 + $0x10] sm:$0xff] %v4067
      %v4071 = vld [vmem:[#allocation4] sm:$0xff]
      %v4072 = vld [vmem:[#allocation4 + $0x8] sm:$0xff]
      %v4073 = vld [vmem:[#allocation4 + $0x10] sm:$0x3]
      %v4074 = vld [vmem:[#allocation4 + $0x1] sm:$0xff]
      %v4075 = vld [vmem:[#allocation4 + $0x9] sm:$0xff]
      %v4076 = vld [vmem:[#allocation4 + $0x11] sm:$0x3]
      %v4077 = vld [vmem:[#allocation4 + $0x2] sm:$0xff]
      %v4078 = vld [vmem:[#allocation4 + $0xa] sm:$0xff]
      %v4079 = vld [vmem:[#allocation4 + $0x12] sm:$0x3]
      %v4080 = vld [vmem:[#allocation4 + $0x3] sm:$0xff]
      %v4081 = vld [vmem:[#allocation4 + $0xb] sm:$0xff]
      %v4082 = vld [vmem:[#allocation4 + $0x13] sm:$0x3]
      %v4083 = vld [vmem:[#allocation4 + $0x4] sm:$0xff]
      %v4084 = vld [vmem:[#allocation4 + $0xc] sm:$0xff]
      %v4085 = vld [vmem:[#allocation4 + $0x14] sm:$0x3]
      %v4086 = vld [vmem:[#allocation4 + $0x5] sm:$0xff]
      %v4087 = vld [vmem:[#allocation4 + $0xd] sm:$0xff]
      %v4088 = vld [vmem:[#allocation4 + $0x15] sm:$0x3]
      %v4089 = vld [vmem:[#allocation4 + $0x6] sm:$0xff]
      %v4090 = vld [vmem:[#allocation4 + $0xe] sm:$0xff]
      %v4091 = vld [vmem:[#allocation4 + $0x16] sm:$0x3]
      %v4092 = vpack.c.bf16 %v4072, %v4071
      %v4093 = vpack.c.bf16 %v4075, %v4074
      %v4094 = vpack.c.bf16 %v4078, %v4077
      %v4095 = vpack.c.bf16 %v4081, %v4080
      %v4096 = vpack.c.bf16 %v4084, %v4083
      %v4097 = vpack.c.bf16 %v4087, %v4086
      %v4098 = vpack.c.bf16 %v4090, %v4089
      %v4099 = vpack.c.bf16 %v4073, %v4073
      %v4100 = vpack.c.bf16 %v4076, %v4076
      %v4101 = vpack.c.bf16 %v4079, %v4079
      %v4102 = vpack.c.bf16 %v4082, %v4082
      %v4103 = vpack.c.bf16 %v4085, %v4085
      %v4104 = vpack.c.bf16 %v4088, %v4088
      %v4105 = vpack.c.bf16 %v4091, %v4091
      %v4106 = vld [vmem:[%s12] sm:$0xf]
      %v4107 = vld [vmem:[%s12 + $0x4] sm:$0xf]
      %v4108 = vld [vmem:[%s12 + $0x8] sm:$0xf]
      %v4109 = vld [vmem:[%s12 + $0xc] sm:$0xf]
      %v4110 = vld [vmem:[%s12 + $0x10] sm:$0xf]
      %v4111 = vld [vmem:[%s12 + $0x14] sm:$0xf]
      %v4112 = vld [vmem:[%s12 + $0x18] sm:$0xf]
      %v4113 = vld [vmem:[%s12 + $0x1c] sm:$0xf]
      %v4114 = vld [vmem:[%s12 + $0x20] sm:$0xf]
      %v4115 = vld [vmem:[%s12 + $0x24] sm:$0xf]
      %v4116 = vld [vmem:[%s12 + $0x28] sm:$0xf]
      %v4117 = vld [vmem:[%s12 + $0x2c] sm:$0xf]
      %v4118 = vld [vmem:[%s12 + $0x30] sm:$0xf]
      %v4119 = vld [vmem:[%s12 + $0x34] sm:$0xf]
      %v4120 = vld [vmem:[%s12 + $0x38] sm:$0xf]
      %v4121 = vld [vmem:[%s12 + $0x3c] sm:$0xf]
      %v4122 = vld [vmem:[%s12 + $0x40] sm:$0xf]
      %v4123 = vld [vmem:[%s12 + $0x44] sm:$0xf]
      %v4124 = vld [vmem:[%s12 + $0x48] sm:$0xf]
      %v4125 = vld [vmem:[%s12 + $0x4c] sm:$0xf]
      %v4126 = vld [vmem:[%s12 + $0x50] sm:$0xf]
      %v4127 = vld [vmem:[%s12 + $0x54] sm:$0xf]
      %v4128 = vld [vmem:[%s12 + $0x58] sm:$0xf]
      %v4129 = vld [vmem:[%s12 + $0x5c] sm:$0xf]
      %v4130 = vld [vmem:[%s12 + $0x60] sm:$0xf]
      %v4131 = vld [vmem:[%s12 + $0x64] sm:$0xf]
      %v4132 = vld [vmem:[%s12 + $0x68] sm:$0xf]
      %v4133 = vld [vmem:[%s12 + $0x6c] sm:$0xf]
      %v4134 = vld [vmem:[%s12 + $0x70] sm:$0xf]
      %v4135 = vld [vmem:[%s12 + $0x74] sm:$0xf]
      %v4136 = vld [vmem:[%s12 + $0x78] sm:$0xf]
      %v4137 = vld [vmem:[%s12 + $0x7c] sm:$0xf]
      %v4138 = vld [vmem:[%s12 + $0x80] sm:$0xf]
      %v4139 = vld [vmem:[%s12 + $0x84] sm:$0xf]
      %v4140 = vld [vmem:[%s12 + $0x88] sm:$0xf]
      %v4141 = vld [vmem:[%s12 + $0x8c] sm:$0xf]
      %v4142 = vld [vmem:[%s12 + $0x90] sm:$0xf]
      %v4143 = vld [vmem:[%s12 + $0x94] sm:$0xf]
      %v4144 = vld [vmem:[%s12 + $0x98] sm:$0xf]
      %v4145 = vld [vmem:[%s12 + $0x9c] sm:$0xf]
      %v4146 = vld [vmem:[%s12 + $0xa0] sm:$0xf]
      %v4147 = vld [vmem:[%s12 + $0xa4] sm:$0xf]
      %v4148 = vld [vmem:[%s12 + $0xa8] sm:$0xf]
      %v4149 = vld [vmem:[%s12 + $0xac] sm:$0xf]
      %v4150 = vld [vmem:[%s12 + $0xb0] sm:$0xf]
      %v4151 = vld [vmem:[%s12 + $0xb4] sm:$0xf]
      %v4152 = vld [vmem:[%s12 + $0xb8] sm:$0xf]
      %v4153 = vld [vmem:[%s12 + $0xbc] sm:$0xf]
      %v4154 = vld [vmem:[%s12 + $0xc0] sm:$0xf]
      %v4155 = vld [vmem:[%s12 + $0xc4] sm:$0xf]
      %v4156 = vld [vmem:[%s12 + $0xc8] sm:$0xf]
      %v4157 = vld [vmem:[%s12 + $0xcc] sm:$0xf]
      %v4158 = vld [vmem:[%s12 + $0xd0] sm:$0xf]
      %v4159 = vld [vmem:[%s12 + $0xd4] sm:$0xf]
      %v4160 = vld [vmem:[%s12 + $0xd8] sm:$0xf]
      %v4161 = vld [vmem:[%s12 + $0xdc] sm:$0xf]
      %v4162 = vld [vmem:[%s12 + $0xe0] sm:$0xf]
      %v4163 = vld [vmem:[%s12 + $0xe4] sm:$0xf]
      %v4164 = vld [vmem:[%s12 + $0xe8] sm:$0xf]
      %v4165 = vld [vmem:[%s12 + $0xec] sm:$0xf]
      %v4166 = vld [vmem:[%s12 + $0xf0] sm:$0xf]
      %v4167 = vld [vmem:[%s12 + $0xf4] sm:$0xf]
      %v4168 = vld [vmem:[%s12 + $0xf8] sm:$0xf]
      %v4169 = vld [vmem:[%s12 + $0xfc] sm:$0xf]
      %v4170 = vld [vmem:[%s12 + $0x100] sm:$0xf]
      %v4171 = vld [vmem:[%s12 + $0x104] sm:$0xf]
      %v4172 = vld [vmem:[%s12 + $0x108] sm:$0xf]
      %v4173 = vld [vmem:[%s12 + $0x10c] sm:$0xf]
      %v4174 = vld [vmem:[%s12 + $0x110] sm:$0xf]
      %v4175 = vld [vmem:[%s12 + $0x114] sm:$0xf]
      %v4176 = vld [vmem:[%s12 + $0x118] sm:$0xf]
      %v4177 = vld [vmem:[%s12 + $0x11c] sm:$0xf]
      %v4178 = vld [vmem:[%s12 + $0x120] sm:$0xf]
      %v4179 = vld [vmem:[%s12 + $0x124] sm:$0xf]
      %v4180 = vld [vmem:[%s12 + $0x128] sm:$0xf]
      %v4181 = vld [vmem:[%s12 + $0x12c] sm:$0xf]
      %v4182 = vld [vmem:[%s12 + $0x130] sm:$0xf]
      %v4183 = vld [vmem:[%s12 + $0x134] sm:$0xf]
      %v4184 = vld [vmem:[%s12 + $0x138] sm:$0xf]
      %v4185 = vld [vmem:[%s12 + $0x13c] sm:$0xf]
      %v4186 = vld [vmem:[%s12 + $0x140] sm:$0xf]
      %v4187 = vld [vmem:[%s12 + $0x144] sm:$0xf]
      %v4188 = vld [vmem:[%s12 + $0x148] sm:$0xf]
      %v4189 = vld [vmem:[%s12 + $0x14c] sm:$0xf]
      %v4190 = vld [vmem:[%s12 + $0x150] sm:$0xf]
      %v4191 = vld [vmem:[%s12 + $0x154] sm:$0xf]
      %v4192 = vld [vmem:[%s12 + $0x158] sm:$0xf]
      %v4193 = vld [vmem:[%s12 + $0x15c] sm:$0xf]
      %v4194 = vld [vmem:[%s12 + $0x160] sm:$0xf]
      %v4195 = vld [vmem:[%s12 + $0x164] sm:$0xf]
      %v4196 = vld [vmem:[%s12 + $0x168] sm:$0xf]
      %v4197 = vld [vmem:[%s12 + $0x16c] sm:$0xf]
      %v4198 = vld [vmem:[%s12 + $0x170] sm:$0xf]
      %v4199 = vld [vmem:[%s12 + $0x174] sm:$0xf]
      %v4200 = vld [vmem:[%s12 + $0x178] sm:$0xf]
      %v4201 = vld [vmem:[%s12 + $0x17c] sm:$0xf]
      %v4202 = vld [vmem:[%s12 + $0x180] sm:$0xf]
      %v4203 = vld [vmem:[%s12 + $0x184] sm:$0xf]
      %v4204 = vld [vmem:[%s12 + $0x188] sm:$0xf]
      %v4205 = vld [vmem:[%s12 + $0x18c] sm:$0xf]
      %v4206 = vld [vmem:[%s12 + $0x190] sm:$0xf]
      %v4207 = vld [vmem:[%s12 + $0x194] sm:$0xf]
      %v4208 = vld [vmem:[%s12 + $0x198] sm:$0xf]
      %v4209 = vld [vmem:[%s12 + $0x19c] sm:$0xf]
      %v4210 = vld [vmem:[%s12 + $0x1a0] sm:$0xf]
      %v4211 = vld [vmem:[%s12 + $0x1a4] sm:$0xf]
      %v4212 = vld [vmem:[%s12 + $0x1a8] sm:$0xf]
      %v4213 = vld [vmem:[%s12 + $0x1ac] sm:$0xf]
      %v4214 = vld [vmem:[%s12 + $0x1b0] sm:$0xf]
      %v4215 = vld [vmem:[%s12 + $0x1b4] sm:$0xf]
      %v4216 = vld [vmem:[%s12 + $0x1b8] sm:$0xf]
      %v4217 = vld [vmem:[%s12 + $0x1bc] sm:$0xf]
      %v4218 = vld [vmem:[%s13] sm:$0x1]
      %v4220 = vlaneseq
      %v4221 = vshrl.u32 %v4220, 7
      %v4222 = vsub.s32 0, %v4221
      %v4223 = vrot.slane %v4218, %v4222
      %v4337 = vunpack.c.l.b16 %v4106
      %v4338 = vunpack.c.l.b16 %v4107
      %v4339 = vunpack.c.l.b16 %v4108
      %v4340 = vunpack.c.l.b16 %v4109
      %v4341 = vunpack.c.l.b16 %v4110
      %v4342 = vunpack.c.l.b16 %v4111
      %v4343 = vunpack.c.l.b16 %v4112
      %v4344 = vunpack.c.l.b16 %v4113
      %v4345 = vunpack.c.l.b16 %v4114
      %v4346 = vunpack.c.l.b16 %v4115
      %v4347 = vunpack.c.l.b16 %v4116
      %v4348 = vunpack.c.l.b16 %v4117
      %v4349 = vunpack.c.l.b16 %v4118
      %v4350 = vunpack.c.l.b16 %v4119
      %v4351 = vunpack.c.l.b16 %v4120
      %v4352 = vunpack.c.l.b16 %v4121
      %v4353 = vunpack.c.l.b16 %v4122
      %v4354 = vunpack.c.l.b16 %v4123
      %v4355 = vunpack.c.l.b16 %v4124
      %v4356 = vunpack.c.l.b16 %v4125
      %v4357 = vunpack.c.l.b16 %v4126
      %v4358 = vunpack.c.l.b16 %v4127
      %v4359 = vunpack.c.l.b16 %v4128
      %v4360 = vunpack.c.l.b16 %v4129
      %v4361 = vunpack.c.l.b16 %v4130
      %v4362 = vunpack.c.l.b16 %v4131
      %v4363 = vunpack.c.l.b16 %v4132
      %v4364 = vunpack.c.l.b16 %v4133
      %v4365 = vunpack.c.l.b16 %v4134
      %v4366 = vunpack.c.l.b16 %v4135
      %v4367 = vunpack.c.l.b16 %v4136
      %v4368 = vunpack.c.l.b16 %v4137
      %v4369 = vunpack.c.l.b16 %v4138
      %v4370 = vunpack.c.l.b16 %v4139
      %v4371 = vunpack.c.l.b16 %v4140
      %v4372 = vunpack.c.l.b16 %v4141
      %v4373 = vunpack.c.l.b16 %v4142
      %v4374 = vunpack.c.l.b16 %v4143
      %v4375 = vunpack.c.l.b16 %v4144
      %v4376 = vunpack.c.l.b16 %v4145
      %v4377 = vunpack.c.l.b16 %v4146
      %v4378 = vunpack.c.l.b16 %v4147
      %v4379 = vunpack.c.l.b16 %v4148
      %v4380 = vunpack.c.l.b16 %v4149
      %v4381 = vunpack.c.l.b16 %v4150
      %v4382 = vunpack.c.l.b16 %v4151
      %v4383 = vunpack.c.l.b16 %v4152
      %v4384 = vunpack.c.l.b16 %v4153
      %v4385 = vunpack.c.l.b16 %v4154
      %v4386 = vunpack.c.l.b16 %v4155
      %v4387 = vunpack.c.l.b16 %v4156
      %v4388 = vunpack.c.l.b16 %v4157
      %v4389 = vunpack.c.l.b16 %v4158
      %v4390 = vunpack.c.l.b16 %v4159
      %v4391 = vunpack.c.l.b16 %v4160
      %v4392 = vunpack.c.l.b16 %v4161
      %v4393 = vunpack.c.l.b16 %v4162
      %v4394 = vunpack.c.l.b16 %v4163
      %v4395 = vunpack.c.l.b16 %v4164
      %v4396 = vunpack.c.l.b16 %v4165
      %v4397 = vunpack.c.l.b16 %v4166
      %v4398 = vunpack.c.l.b16 %v4167
      %v4399 = vunpack.c.l.b16 %v4168
      %v4400 = vunpack.c.l.b16 %v4169
      %v4401 = vunpack.c.l.b16 %v4170
      %v4402 = vunpack.c.l.b16 %v4171
      %v4403 = vunpack.c.l.b16 %v4172
      %v4404 = vunpack.c.l.b16 %v4173
      %v4405 = vunpack.c.l.b16 %v4174
      %v4406 = vunpack.c.l.b16 %v4175
      %v4407 = vunpack.c.l.b16 %v4176
      %v4408 = vunpack.c.l.b16 %v4177
      %v4409 = vunpack.c.l.b16 %v4178
      %v4410 = vunpack.c.l.b16 %v4179
      %v4411 = vunpack.c.l.b16 %v4180
      %v4412 = vunpack.c.l.b16 %v4181
      %v4413 = vunpack.c.l.b16 %v4182
      %v4414 = vunpack.c.l.b16 %v4183
      %v4415 = vunpack.c.l.b16 %v4184
      %v4416 = vunpack.c.l.b16 %v4185
      %v4417 = vunpack.c.l.b16 %v4186
      %v4418 = vunpack.c.l.b16 %v4187
      %v4419 = vunpack.c.l.b16 %v4188
      %v4420 = vunpack.c.l.b16 %v4189
      %v4421 = vunpack.c.l.b16 %v4190
      %v4422 = vunpack.c.l.b16 %v4191
      %v4423 = vunpack.c.l.b16 %v4192
      %v4424 = vunpack.c.l.b16 %v4193
      %v4425 = vunpack.c.l.b16 %v4194
      %v4426 = vunpack.c.l.b16 %v4195
      %v4427 = vunpack.c.l.b16 %v4196
      %v4428 = vunpack.c.l.b16 %v4197
      %v4429 = vunpack.c.l.b16 %v4198
      %v4430 = vunpack.c.l.b16 %v4199
      %v4431 = vunpack.c.l.b16 %v4200
      %v4432 = vunpack.c.l.b16 %v4201
      %v4433 = vunpack.c.l.b16 %v4202
      %v4434 = vunpack.c.l.b16 %v4203
      %v4435 = vunpack.c.l.b16 %v4204
      %v4436 = vunpack.c.l.b16 %v4205
      %v4437 = vunpack.c.l.b16 %v4206
      %v4438 = vunpack.c.l.b16 %v4207
      %v4439 = vunpack.c.l.b16 %v4208
      %v4440 = vunpack.c.l.b16 %v4209
      %v4441 = vunpack.c.l.b16 %v4210
      %v4442 = vunpack.c.l.b16 %v4211
      %v4443 = vunpack.c.l.b16 %v4212
      %v4444 = vunpack.c.l.b16 %v4213
      %v4445 = vunpack.c.l.b16 %v4214
      %v4446 = vunpack.c.l.b16 %v4215
      %v4447 = vunpack.c.l.b16 %v4216
      %v4448 = vunpack.c.l.b16 %v4217
      %v4449 = vpack.c.b16 %v4338, %v4337
      %v4450 = vpack.c.b16 %v4340, %v4339
      %v4451 = vpack.c.b16 %v4342, %v4341
      %v4452 = vpack.c.b16 %v4344, %v4343
      %v4453 = vpack.c.b16 %v4346, %v4345
      %v4454 = vpack.c.b16 %v4348, %v4347
      %v4455 = vpack.c.b16 %v4350, %v4349
      %v4456 = vpack.c.b16 %v4352, %v4351
      %v4457 = vpack.c.b16 %v4354, %v4353
      %v4458 = vpack.c.b16 %v4356, %v4355
      %v4459 = vpack.c.b16 %v4358, %v4357
      %v4460 = vpack.c.b16 %v4360, %v4359
      %v4461 = vpack.c.b16 %v4362, %v4361
      %v4462 = vpack.c.b16 %v4364, %v4363
      %v4463 = vpack.c.b16 %v4366, %v4365
      %v4464 = vpack.c.b16 %v4368, %v4367
      %v4465 = vpack.c.b16 %v4370, %v4369
      %v4466 = vpack.c.b16 %v4372, %v4371
      %v4467 = vpack.c.b16 %v4374, %v4373
      %v4468 = vpack.c.b16 %v4376, %v4375
      %v4469 = vpack.c.b16 %v4378, %v4377
      %v4470 = vpack.c.b16 %v4380, %v4379
      %v4471 = vpack.c.b16 %v4382, %v4381
      %v4472 = vpack.c.b16 %v4384, %v4383
      %v4473 = vpack.c.b16 %v4386, %v4385
      %v4474 = vpack.c.b16 %v4388, %v4387
      %v4475 = vpack.c.b16 %v4390, %v4389
      %v4476 = vpack.c.b16 %v4392, %v4391
      %v4477 = vpack.c.b16 %v4394, %v4393
      %v4478 = vpack.c.b16 %v4396, %v4395
      %v4479 = vpack.c.b16 %v4398, %v4397
      %v4480 = vpack.c.b16 %v4400, %v4399
      %v4481 = vpack.c.b16 %v4402, %v4401
      %v4482 = vpack.c.b16 %v4404, %v4403
      %v4483 = vpack.c.b16 %v4406, %v4405
      %v4484 = vpack.c.b16 %v4408, %v4407
      %v4485 = vpack.c.b16 %v4410, %v4409
      %v4486 = vpack.c.b16 %v4412, %v4411
      %v4487 = vpack.c.b16 %v4414, %v4413
      %v4488 = vpack.c.b16 %v4416, %v4415
      %v4489 = vpack.c.b16 %v4418, %v4417
      %v4490 = vpack.c.b16 %v4420, %v4419
      %v4491 = vpack.c.b16 %v4422, %v4421
      %v4492 = vpack.c.b16 %v4424, %v4423
      %v4493 = vpack.c.b16 %v4426, %v4425
      %v4494 = vpack.c.b16 %v4428, %v4427
      %v4495 = vpack.c.b16 %v4430, %v4429
      %v4496 = vpack.c.b16 %v4432, %v4431
      %v4497 = vpack.c.b16 %v4434, %v4433
      %v4498 = vpack.c.b16 %v4436, %v4435
      %v4499 = vpack.c.b16 %v4438, %v4437
      %v4500 = vpack.c.b16 %v4440, %v4439
      %v4501 = vpack.c.b16 %v4442, %v4441
      %v4502 = vpack.c.b16 %v4444, %v4443
      %v4503 = vpack.c.b16 %v4446, %v4445
      %v4504 = vpack.c.b16 %v4448, %v4447
      %4561 = vmatprep.subr.bf16.mxu0 0
      %4562 = vmatpush1.bf16.msra.mxu0 %v4449
      %4563 = vmatprep.subr.bf16.mxu0 0
      %4564 = vmatpush1.bf16.msra.mxu0 %v4450
      %4565 = vmatprep.subr.bf16.mxu0 0
      %4566 = vmatpush1.bf16.msra.mxu0 %v4451
      %4567 = vmatprep.subr.bf16.mxu0 0
      %4568 = vmatpush1.bf16.msra.mxu0 %v4452
      %4569 = vmatprep.subr.bf16.mxu0 0
      %4570 = vmatpush1.bf16.msra.mxu0 %v4453
      %4571 = vmatprep.subr.bf16.mxu0 0
      %4572 = vmatpush1.bf16.msra.mxu0 %v4454
      %4573 = vmatprep.subr.bf16.mxu0 0
      %4574 = vmatpush1.bf16.msra.mxu0 %v4455
      %4575 = vmatprep.subr.bf16.mxu0 0
      %4576 = vmatpush1.bf16.msra.mxu0 %v4456
      %4577 = vmatprep.subr.bf16.mxu0 0
      %4578 = vmatpush1.bf16.msra.mxu0 %v4457
      %4579 = vmatprep.subr.bf16.mxu0 0
      %4580 = vmatpush1.bf16.msra.mxu0 %v4458
      %4581 = vmatprep.subr.bf16.mxu0 0
      %4582 = vmatpush1.bf16.msra.mxu0 %v4459
      %4583 = vmatprep.subr.bf16.mxu0 0
      %4584 = vmatpush1.bf16.msra.mxu0 %v4460
      %4585 = vmatprep.subr.bf16.mxu0 0
      %4586 = vmatpush1.bf16.msra.mxu0 %v4461
      %4587 = vmatprep.subr.bf16.mxu0 0
      %4588 = vmatpush1.bf16.msra.mxu0 %v4462
      %4589 = vmatprep.subr.bf16.mxu0 0
      %4590 = vmatpush1.bf16.msra.mxu0 %v4463
      %4591 = vmatprep.subr.bf16.mxu0 0
      %4592 = vmatpush1.bf16.msra.mxu0 %v4464
      %4593 = vmatprep.mubr.bf16.mxu0 %v4093
      %4594 = vmatmul.mubr.bf16.gmra.mrb[0].mxu0 %v4092
      %v4595 = vpop.f32.mrb[0].mxu0
      %v4596 = vadd.f32 %v4223, %v4595
      %v4597 = vpop.f32.mrb[0].mxu0
      %v4598 = vpop.f32.mrb[0].mxu0
      %v4599 = vadd.f32 %v4223, %v4598
      %v4600 = vpop.f32.mrb[0].mxu0
      %4601 = vmatprep.mubr.bf16.mxu0 %v4100
      %4602 = vmatmul.mubr.bf16.gmra.mrb[0].mxu0 %v4099
      %v4603 = vpop.f32.mrb[0].mxu0
      %v4604 = vadd.f32 %v4223, %v4603
      %v4605 = vpop.f32.mrb[0].mxu0
      %v4606 = vpop.f32.mrb[0].mxu0
      %v4607 = vpop.f32.mrb[0].mxu0
      %4608 = vdwg.mxu0
      %4609 = vmatprep.subr.bf16.mxu0 0
      %4610 = vmatpush1.bf16.msra.mxu0 %v4465
      %4611 = vmatprep.subr.bf16.mxu0 0
      %4612 = vmatpush1.bf16.msra.mxu0 %v4466
      %4613 = vmatprep.subr.bf16.mxu0 0
      %4614 = vmatpush1.bf16.msra.mxu0 %v4467
      %4615 = vmatprep.subr.bf16.mxu0 0
      %4616 = vmatpush1.bf16.msra.mxu0 %v4468
      %4617 = vmatprep.subr.bf16.mxu0 0
      %4618 = vmatpush1.bf16.msra.mxu0 %v4469
      %4619 = vmatprep.subr.bf16.mxu0 0
      %4620 = vmatpush1.bf16.msra.mxu0 %v4470
      %4621 = vmatprep.subr.bf16.mxu0 0
      %4622 = vmatpush1.bf16.msra.mxu0 %v4471
      %4623 = vmatprep.subr.bf16.mxu0 0
      %4624 = vmatpush1.bf16.msra.mxu0 %v4472
      %4625 = vmatprep.subr.bf16.mxu0 0
      %4626 = vmatpush1.bf16.msra.mxu0 %v4473
      %4627 = vmatprep.subr.bf16.mxu0 0
      %4628 = vmatpush1.bf16.msra.mxu0 %v4474
      %4629 = vmatprep.subr.bf16.mxu0 0
      %4630 = vmatpush1.bf16.msra.mxu0 %v4475
      %4631 = vmatprep.subr.bf16.mxu0 0
      %4632 = vmatpush1.bf16.msra.mxu0 %v4476
      %4633 = vmatprep.subr.bf16.mxu0 0
      %4634 = vmatpush1.bf16.msra.mxu0 %v4477
      %4635 = vmatprep.subr.bf16.mxu0 0
      %4636 = vmatpush1.bf16.msra.mxu0 %v4478
      %4637 = vmatprep.subr.bf16.mxu0 0
      %4638 = vmatpush1.bf16.msra.mxu0 %v4479
      %4639 = vmatprep.subr.bf16.mxu0 0
      %4640 = vmatpush1.bf16.msra.mxu0 %v4480
      %4641 = vmatprep.mubr.bf16.mxu0 %v4095
      %4642 = vmatmul.mubr.bf16.gmra.mrb[0].mxu0 %v4094
      %v4643 = vpop.f32.mrb[0].mxu0
      %v4644 = vadd.f32 %v4596, %v4643
      %v4645 = vpop.f32.mrb[0].mxu0
      %v4646 = vpop.f32.mrb[0].mxu0
      %v4647 = vadd.f32 %v4599, %v4646
      %v4648 = vpop.f32.mrb[0].mxu0
      %4649 = vmatprep.mubr.bf16.mxu0 %v4102
      %4650 = vmatmul.mubr.bf16.gmra.mrb[0].mxu0 %v4101
      %v4651 = vpop.f32.mrb[0].mxu0
      %v4652 = vadd.f32 %v4604, %v4651
      %v4653 = vpop.f32.mrb[0].mxu0
      %v4654 = vpop.f32.mrb[0].mxu0
      %v4655 = vpop.f32.mrb[0].mxu0
      %4656 = vdwg.mxu0
      %4657 = vmatprep.subr.bf16.mxu0 0
      %4658 = vmatpush1.bf16.msra.mxu0 %v4481
      %4659 = vmatprep.subr.bf16.mxu0 0
      %4660 = vmatpush1.bf16.msra.mxu0 %v4482
      %4661 = vmatprep.subr.bf16.mxu0 0
      %4662 = vmatpush1.bf16.msra.mxu0 %v4483
      %4663 = vmatprep.subr.bf16.mxu0 0
      %4664 = vmatpush1.bf16.msra.mxu0 %v4484
      %4665 = vmatprep.subr.bf16.mxu0 0
      %4666 = vmatpush1.bf16.msra.mxu0 %v4485
      %4667 = vmatprep.subr.bf16.mxu0 0
      %4668 = vmatpush1.bf16.msra.mxu0 %v4486
      %4669 = vmatprep.subr.bf16.mxu0 0
      %4670 = vmatpush1.bf16.msra.mxu0 %v4487
      %4671 = vmatprep.subr.bf16.mxu0 0
      %4672 = vmatpush1.bf16.msra.mxu0 %v4488
      %4673 = vmatprep.subr.bf16.mxu0 0
      %4674 = vmatpush1.bf16.msra.mxu0 %v4489
      %4675 = vmatprep.subr.bf16.mxu0 0
      %4676 = vmatpush1.bf16.msra.mxu0 %v4490
      %4677 = vmatprep.subr.bf16.mxu0 0
      %4678 = vmatpush1.bf16.msra.mxu0 %v4491
      %4679 = vmatprep.subr.bf16.mxu0 0
      %4680 = vmatpush1.bf16.msra.mxu0 %v4492
      %4681 = vmatprep.subr.bf16.mxu0 0
      %4682 = vmatpush1.bf16.msra.mxu0 %v4493
      %4683 = vmatprep.subr.bf16.mxu0 0
      %4684 = vmatpush1.bf16.msra.mxu0 %v4494
      %4685 = vmatprep.subr.bf16.mxu0 0
      %4686 = vmatpush1.bf16.msra.mxu0 %v4495
      %4687 = vmatprep.subr.bf16.mxu0 0
      %4688 = vmatpush1.bf16.msra.mxu0 %v4496
      %4689 = vmatprep.mubr.bf16.mxu0 %v4097
      %4690 = vmatmul.mubr.bf16.gmra.mrb[0].mxu0 %v4096
      %v4691 = vpop.f32.mrb[0].mxu0
      %v4692 = vadd.f32 %v4644, %v4691
      %v4693 = vpop.f32.mrb[0].mxu0
      %v4694 = vpop.f32.mrb[0].mxu0
      %v4695 = vadd.f32 %v4647, %v4694
      %v4696 = vpop.f32.mrb[0].mxu0
      %4697 = vmatprep.mubr.bf16.mxu0 %v4104
      %4698 = vmatmul.mubr.bf16.gmra.mrb[0].mxu0 %v4103
      %v4699 = vpop.f32.mrb[0].mxu0
      %v4700 = vadd.f32 %v4652, %v4699
      %v4701 = vpop.f32.mrb[0].mxu0
      %v4702 = vpop.f32.mrb[0].mxu0
      %v4703 = vpop.f32.mrb[0].mxu0
      %4704 = vdwg.mxu0
      %4705 = vmatprep.subr.bf16.mxu0 0
      %4706 = vmatpush1.bf16.msra.mxu0 %v4497
      %4707 = vmatprep.subr.bf16.mxu0 0
      %4708 = vmatpush1.bf16.msra.mxu0 %v4498
      %4709 = vmatprep.subr.bf16.mxu0 0
      %4710 = vmatpush1.bf16.msra.mxu0 %v4499
      %4711 = vmatprep.subr.bf16.mxu0 0
      %4712 = vmatpush1.bf16.msra.mxu0 %v4500
      %4713 = vmatprep.subr.bf16.mxu0 0
      %4714 = vmatpush1.bf16.msra.mxu0 %v4501
      %4715 = vmatprep.subr.bf16.mxu0 0
      %4716 = vmatpush1.bf16.msra.mxu0 %v4502
      %4717 = vmatprep.subr.bf16.mxu0 0
      %4718 = vmatpush1.bf16.msra.mxu0 %v4503
      %4719 = vmatprep.subr.bf16.mxu0 0
      %4720 = vmatpush1.bf16.msra.mxu0 %v4504
      %4721 = vmatprep.subr.bf16.mxu0 0
      %4722 = vmatpush1.bf16.msra.mxu0 0
      %4723 = vmatprep.subr.bf16.mxu0 0
      %4724 = vmatpush1.bf16.msra.mxu0 0
      %4725 = vmatprep.subr.bf16.mxu0 0
      %4726 = vmatpush1.bf16.msra.mxu0 0
      %4727 = vmatprep.subr.bf16.mxu0 0
      %4728 = vmatpush1.bf16.msra.mxu0 0
      %4729 = vmatprep.subr.bf16.mxu0 0
      %4730 = vmatpush1.bf16.msra.mxu0 0
      %4731 = vmatprep.subr.bf16.mxu0 0
      %4732 = vmatpush1.bf16.msra.mxu0 0
      %4733 = vmatprep.subr.bf16.mxu0 0
      %4734 = vmatpush1.bf16.msra.mxu0 0
      %4735 = vmatprep.subr.bf16.mxu0 0
      %4736 = vmatpush1.bf16.msra.mxu0 0
      %4737 = vmatprep.mubr.bf16.mxu0 0
      %4738 = vmatmul.mubr.bf16.gmra.mrb[0].mxu0 %v4098
      %v4739 = vpop.f32.mrb[0].mxu0
      %v4740 = vadd.f32 %v4692, %v4739
      %v4741 = vpop.f32.mrb[0].mxu0
      %v4742 = vpop.f32.mrb[0].mxu0
      %v4743 = vadd.f32 %v4695, %v4742
      %v4744 = vpop.f32.mrb[0].mxu0
      %4745 = vmatprep.mubr.bf16.mxu0 0
      %4746 = vmatmul.mubr.bf16.gmra.mrb[0].mxu0 %v4105
      %v4747 = vpop.f32.mrb[0].mxu0
      %v4748 = vadd.f32 %v4700, %v4747
      %v4749 = vpop.f32.mrb[0].mxu0
      %v4750 = vpop.f32.mrb[0].mxu0
      %v4751 = vpop.f32.mrb[0].mxu0
      %4752 = vdwg.mxu0
      %v4753 = vadd.f32 %v4740, %v4743
      %vm4754 = vcmask 1041408
      %v4755 = vsel %vm4754, %v4748, 0.0
      %v4756 = vadd.f32 %v4753, %v4755
      %v4757 = vrot.slane %v4756, 4
      %v4758 = vadd.f32 %v4756, %v4757
      %v4759 = vrot.slane %v4758, 2
      %v4760 = vadd.f32 %v4758, %v4759
      %v4761 = vrot.slane %v4760, 1
      %v4762 = vadd.f32 %v4760, %v4761
      %v4763 = vrcp.pop 18.0
      %v4764 = vmul.f32 %v4762, %v4763
      %v4765 = vmul.f32 %v4740, %v4740
      %v4766 = vmul.f32 %v4743, %v4743
      %v4767 = vmul.f32 %v4748, %v4748
      %v4768 = vadd.f32 %v4765, %v4766
      %v4769 = vsel %vm4754, %v4767, 0.0
      %v4770 = vadd.f32 %v4768, %v4769
      %v4771 = vrot.slane %v4770, 4
      %v4772 = vadd.f32 %v4770, %v4771
      %v4773 = vrot.slane %v4772, 2
      %v4774 = vadd.f32 %v4772, %v4773
      %v4775 = vrot.slane %v4774, 1
      %v4776 = vadd.f32 %v4774, %v4775
      %v4777 = vmul.f32 %v4776, %v4763
      %v4778 = vmul.f32 %v4764, %v4764
      %v4779 = vsub.f32 %v4777, %v4778
      %v4780 = vsub.f32 %v4740, %v4764
      %v4781 = vsub.f32 %v4743, %v4764
      %v4782 = vsub.f32 %v4748, %v4764
      %v4783 = vadd.f32 %v4779, 1e-05
      %v4784 = vrsqrt.pop %v4783
      %v4785 = vmul.f32 %v4780, %v4784
      %v4786 = vmul.f32 %v4781, %v4784
      %v4787 = vmul.f32 %v4782, %v4784
      %v4788 = vld [vmem:[%s14] sm:$0x1]
      %v4790 = vlaneseq
      %v4791 = vshrl.u32 %v4790, 7
      %v4792 = vsub.s32 0, %v4791
      %v4793 = vrot.slane %v4788, %v4792
      %v4795 = vmul.f32 %v4785, %v4793
      %v4796 = vmul.f32 %v4786, %v4793
      %v4797 = vmul.f32 %v4787, %v4793
      %v4798 = vld [vmem:[%s15] sm:$0x1]
      %v4800 = vlaneseq
      %v4801 = vshrl.u32 %v4800, 7
      %v4802 = vsub.s32 0, %v4801
      %v4803 = vrot.slane %v4798, %v4802
      %v4805 = vadd.f32 %v4795, %v4803
      %v4806 = vadd.f32 %v4796, %v4803
      %v4807 = vadd.f32 %v4797, %v4803
      %v4808 = vmul.f32 %v4805, 0.5
      %v4809 = vmul.f32 %v4806, 0.5
      %v4810 = vmul.f32 %v4807, 0.5
      %v4811 = vmul.f32 %v4805, 0.044715
      %v4812 = vmul.f32 %v4806, 0.044715
      %v4813 = vmul.f32 %v4807, 0.044715
      %v4814 = vmul.f32 %v4811, %v4805
      %v4815 = vmul.f32 %v4812, %v4806
      %v4816 = vmul.f32 %v4813, %v4807
      %v4817 = vmul.f32 %v4814, %v4805
      %v4818 = vmul.f32 %v4815, %v4806
      %v4819 = vmul.f32 %v4816, %v4807
      %v4820 = vadd.f32 %v4805, %v4817
      %v4821 = vadd.f32 %v4806, %v4818
      %v4822 = vadd.f32 %v4807, %v4819
      %v4823 = vmul.f32 %v4820, 0.7978846
      %v4824 = vmul.f32 %v4821, 0.7978846
      %v4825 = vmul.f32 %v4822, 0.7978846
      %v4826 = vtanh.pop %v4823
      %v4827 = vtanh.pop %v4824
      %v4828 = vtanh.pop %v4825
      %v4829 = vadd.f32 %v4826, 1.0
      %v4830 = vadd.f32 %v4827, 1.0
      %v4831 = vadd.f32 %v4828, 1.0
      %v4832 = vmul.f32 %v4808, %v4829
      %v4833 = vmul.f32 %v4809, %v4830
      %v4834 = vmul.f32 %v4810, %v4831
      %4835 = vst [vmem:[#allocation5] sm:$0xff] %v4832
      %4836 = vst [vmem:[#allocation5 + $0x8] sm:$0xff] %v4833
      %4837 = vst [vmem:[#allocation5 + $0x10] sm:$0x3] %v4834
      %v4838 = vld [vmem:[#allocation5] sm:$0xff]
      %v4839 = vld [vmem:[#allocation5 + $0x8] sm:$0xf]
      %v4840 = vld [vmem:[#allocation5 + $0x1] sm:$0xff]
      %v4841 = vld [vmem:[#allocation5 + $0x9] sm:$0xf]
      %v4842 = vld [vmem:[#allocation5 + $0x2] sm:$0xff]
      %v4843 = vld [vmem:[#allocation5 + $0xa] sm:$0xf]
      %v4844 = vld [vmem:[#allocation5 + $0x3] sm:$0xff]
      %v4845 = vld [vmem:[#allocation5 + $0xb] sm:$0xf]
      %v4846 = vld [vmem:[#allocation5 + $0x4] sm:$0xff]
      %v4847 = vld [vmem:[#allocation5 + $0xc] sm:$0xf]
      %v4848 = vld [vmem:[#allocation5 + $0x5] sm:$0xff]
      %v4849 = vld [vmem:[#allocation5 + $0xd] sm:$0xf]
      %v4850 = vld [vmem:[#allocation5 + $0x6] sm:$0xff]
      %v4851 = vld [vmem:[#allocation5 + $0xe] sm:$0xf]
      %v4852 = vpack.c.bf16 %v4839, %v4838
      %v4853 = vpack.c.bf16 %v4841, %v4840
      %v4854 = vpack.c.bf16 %v4843, %v4842
      %v4855 = vpack.c.bf16 %v4845, %v4844
      %v4856 = vpack.c.bf16 %v4847, %v4846
      %v4857 = vpack.c.bf16 %v4849, %v4848
      %v4858 = vpack.c.bf16 %v4851, %v4850
      %v4859 = vld [vmem:[%s16] sm:$0xf]
      %v4860 = vld [vmem:[%s16 + $0x4] sm:$0xf]
      %v4861 = vld [vmem:[%s16 + $0x8] sm:$0xf]
      %v4862 = vld [vmem:[%s16 + $0xc] sm:$0xf]
      %v4863 = vld [vmem:[%s16 + $0x10] sm:$0xf]
      %v4864 = vld [vmem:[%s16 + $0x14] sm:$0xf]
      %v4865 = vld [vmem:[%s16 + $0x18] sm:$0xf]
      %v4866 = vld [vmem:[%s16 + $0x1c] sm:$0xf]
      %v4867 = vld [vmem:[%s16 + $0x20] sm:$0xf]
      %v4868 = vld [vmem:[%s16 + $0x24] sm:$0xf]
      %v4869 = vld [vmem:[%s16 + $0x28] sm:$0xf]
      %v4870 = vld [vmem:[%s16 + $0x2c] sm:$0xf]
      %v4871 = vld [vmem:[%s16 + $0x30] sm:$0xf]
      %v4872 = vld [vmem:[%s16 + $0x34] sm:$0xf]
      %v4873 = vld [vmem:[%s16 + $0x38] sm:$0xf]
      %v4874 = vld [vmem:[%s16 + $0x3c] sm:$0xf]
      %v4875 = vld [vmem:[%s16 + $0x40] sm:$0xf]
      %v4876 = vld [vmem:[%s16 + $0x44] sm:$0xf]
      %v4877 = vld [vmem:[%s16 + $0x48] sm:$0xf]
      %v4878 = vld [vmem:[%s16 + $0x4c] sm:$0xf]
      %v4879 = vld [vmem:[%s16 + $0x50] sm:$0xf]
      %v4880 = vld [vmem:[%s16 + $0x54] sm:$0xf]
      %v4881 = vld [vmem:[%s16 + $0x58] sm:$0xf]
      %v4882 = vld [vmem:[%s16 + $0x5c] sm:$0xf]
      %v4883 = vld [vmem:[%s16 + $0x60] sm:$0xf]
      %v4884 = vld [vmem:[%s16 + $0x64] sm:$0xf]
      %v4885 = vld [vmem:[%s16 + $0x68] sm:$0xf]
      %v4886 = vld [vmem:[%s16 + $0x6c] sm:$0xf]
      %v4887 = vld [vmem:[%s16 + $0x70] sm:$0xf]
      %v4888 = vld [vmem:[%s16 + $0x74] sm:$0xf]
      %v4889 = vld [vmem:[%s16 + $0x78] sm:$0xf]
      %v4890 = vld [vmem:[%s16 + $0x7c] sm:$0xf]
      %v4891 = vld [vmem:[%s16 + $0x80] sm:$0xf]
      %v4892 = vld [vmem:[%s16 + $0x84] sm:$0xf]
      %v4893 = vld [vmem:[%s16 + $0x88] sm:$0xf]
      %v4894 = vld [vmem:[%s16 + $0x8c] sm:$0xf]
      %v4895 = vld [vmem:[%s16 + $0x90] sm:$0xf]
      %v4896 = vld [vmem:[%s16 + $0x94] sm:$0xf]
      %v4897 = vld [vmem:[%s16 + $0x98] sm:$0xf]
      %v4898 = vld [vmem:[%s16 + $0x9c] sm:$0xf]
      %v4899 = vld [vmem:[%s16 + $0xa0] sm:$0xf]
      %v4900 = vld [vmem:[%s16 + $0xa4] sm:$0xf]
      %v4901 = vld [vmem:[%s16 + $0xa8] sm:$0xf]
      %v4902 = vld [vmem:[%s16 + $0xac] sm:$0xf]
      %v4903 = vld [vmem:[%s16 + $0xb0] sm:$0xf]
      %v4904 = vld [vmem:[%s16 + $0xb4] sm:$0xf]
      %v4905 = vld [vmem:[%s16 + $0xb8] sm:$0xf]
      %v4906 = vld [vmem:[%s16 + $0xbc] sm:$0xf]
      %v4907 = vld [vmem:[%s16 + $0xc0] sm:$0xf]
      %v4908 = vld [vmem:[%s16 + $0xc4] sm:$0xf]
      %v4909 = vld [vmem:[%s16 + $0xc8] sm:$0xf]
      %v4910 = vld [vmem:[%s16 + $0xcc] sm:$0xf]
      %v4911 = vld [vmem:[%s16 + $0xd0] sm:$0xf]
      %v4912 = vld [vmem:[%s16 + $0xd4] sm:$0xf]
      %v4913 = vld [vmem:[%s16 + $0xd8] sm:$0xf]
      %v4914 = vld [vmem:[%s16 + $0xdc] sm:$0xf]
      %v4915 = vld [vmem:[%s16 + $0xe0] sm:$0xf]
      %v4916 = vld [vmem:[%s16 + $0xe4] sm:$0xf]
      %v4917 = vld [vmem:[%s16 + $0xe8] sm:$0xf]
      %v4918 = vld [vmem:[%s16 + $0xec] sm:$0xf]
      %v4919 = vld [vmem:[%s16 + $0xf0] sm:$0xf]
      %v4920 = vld [vmem:[%s16 + $0xf4] sm:$0xf]
      %v4921 = vld [vmem:[%s16 + $0xf8] sm:$0xf]
      %v4922 = vld [vmem:[%s16 + $0xfc] sm:$0xf]
      %v4923 = vld [vmem:[%s16 + $0x100] sm:$0xf]
      %v4924 = vld [vmem:[%s16 + $0x104] sm:$0xf]
      %v4925 = vld [vmem:[%s16 + $0x108] sm:$0xf]
      %v4926 = vld [vmem:[%s16 + $0x10c] sm:$0xf]
      %v4927 = vld [vmem:[%s16 + $0x110] sm:$0xf]
      %v4928 = vld [vmem:[%s16 + $0x114] sm:$0xf]
      %v4929 = vld [vmem:[%s16 + $0x118] sm:$0xf]
      %v4930 = vld [vmem:[%s16 + $0x11c] sm:$0xf]
      %v4931 = vld [vmem:[%s16 + $0x120] sm:$0xf]
      %v4932 = vld [vmem:[%s16 + $0x124] sm:$0xf]
      %v4933 = vld [vmem:[%s16 + $0x128] sm:$0xf]
      %v4934 = vld [vmem:[%s16 + $0x12c] sm:$0xf]
      %v4935 = vld [vmem:[%s16 + $0x130] sm:$0xf]
      %v4936 = vld [vmem:[%s16 + $0x134] sm:$0xf]
      %v4937 = vld [vmem:[%s16 + $0x138] sm:$0xf]
      %v4938 = vld [vmem:[%s16 + $0x13c] sm:$0xf]
      %v4939 = vld [vmem:[%s16 + $0x140] sm:$0xf]
      %v4940 = vld [vmem:[%s16 + $0x144] sm:$0xf]
      %v4941 = vld [vmem:[%s16 + $0x148] sm:$0xf]
      %v4942 = vld [vmem:[%s16 + $0x14c] sm:$0xf]
      %v4943 = vld [vmem:[%s16 + $0x150] sm:$0xf]
      %v4944 = vld [vmem:[%s16 + $0x154] sm:$0xf]
      %v4945 = vld [vmem:[%s16 + $0x158] sm:$0xf]
      %v4946 = vld [vmem:[%s16 + $0x15c] sm:$0xf]
      %v4947 = vld [vmem:[%s16 + $0x160] sm:$0xf]
      %v4948 = vld [vmem:[%s16 + $0x164] sm:$0xf]
      %v4949 = vld [vmem:[%s16 + $0x168] sm:$0xf]
      %v4950 = vld [vmem:[%s16 + $0x16c] sm:$0xf]
      %v4951 = vld [vmem:[%s16 + $0x170] sm:$0xf]
      %v4952 = vld [vmem:[%s16 + $0x174] sm:$0xf]
      %v4953 = vld [vmem:[%s16 + $0x178] sm:$0xf]
      %v4954 = vld [vmem:[%s16 + $0x17c] sm:$0xf]
      %v4955 = vld [vmem:[%s16 + $0x180] sm:$0xf]
      %v4956 = vld [vmem:[%s16 + $0x184] sm:$0xf]
      %v4957 = vld [vmem:[%s16 + $0x188] sm:$0xf]
      %v4958 = vld [vmem:[%s16 + $0x18c] sm:$0xf]
      %v4959 = vld [vmem:[%s16 + $0x190] sm:$0xf]
      %v4960 = vld [vmem:[%s16 + $0x194] sm:$0xf]
      %v4961 = vld [vmem:[%s16 + $0x198] sm:$0xf]
      %v4962 = vld [vmem:[%s16 + $0x19c] sm:$0xf]
      %v4963 = vld [vmem:[%s16 + $0x1a0] sm:$0xf]
      %v4964 = vld [vmem:[%s16 + $0x1a4] sm:$0xf]
      %v4965 = vld [vmem:[%s16 + $0x1a8] sm:$0xf]
      %v4966 = vld [vmem:[%s16 + $0x1ac] sm:$0xf]
      %v4967 = vld [vmem:[%s16 + $0x1b0] sm:$0xf]
      %v4968 = vld [vmem:[%s16 + $0x1b4] sm:$0xf]
      %v4969 = vld [vmem:[%s16 + $0x1b8] sm:$0xf]
      %v4970 = vld [vmem:[%s16 + $0x1bc] sm:$0xf]
      %v4971 = vld [vmem:[%s17] sm:$0x1]
      %v4973 = vlaneseq
      %v4974 = vshrl.u32 %v4973, 7
      %v4975 = vsub.s32 0, %v4974
      %v4976 = vrot.slane %v4971, %v4975
      %v5090 = vunpack.c.l.b16 %v4859
      %v5091 = vunpack.c.l.b16 %v4860
      %v5092 = vunpack.c.l.b16 %v4861
      %v5093 = vunpack.c.l.b16 %v4862
      %v5094 = vunpack.c.l.b16 %v4863
      %v5095 = vunpack.c.l.b16 %v4864
      %v5096 = vunpack.c.l.b16 %v4865
      %v5097 = vunpack.c.l.b16 %v4866
      %v5098 = vunpack.c.l.b16 %v4867
      %v5099 = vunpack.c.l.b16 %v4868
      %v5100 = vunpack.c.l.b16 %v4869
      %v5101 = vunpack.c.l.b16 %v4870
      %v5102 = vunpack.c.l.b16 %v4871
      %v5103 = vunpack.c.l.b16 %v4872
      %v5104 = vunpack.c.l.b16 %v4873
      %v5105 = vunpack.c.l.b16 %v4874
      %v5106 = vunpack.c.l.b16 %v4875
      %v5107 = vunpack.c.l.b16 %v4876
      %v5108 = vunpack.c.l.b16 %v4877
      %v5109 = vunpack.c.l.b16 %v4878
      %v5110 = vunpack.c.l.b16 %v4879
      %v5111 = vunpack.c.l.b16 %v4880
      %v5112 = vunpack.c.l.b16 %v4881
      %v5113 = vunpack.c.l.b16 %v4882
      %v5114 = vunpack.c.l.b16 %v4883
      %v5115 = vunpack.c.l.b16 %v4884
      %v5116 = vunpack.c.l.b16 %v4885
      %v5117 = vunpack.c.l.b16 %v4886
      %v5118 = vunpack.c.l.b16 %v4887
      %v5119 = vunpack.c.l.b16 %v4888
      %v5120 = vunpack.c.l.b16 %v4889
      %v5121 = vunpack.c.l.b16 %v4890
      %v5122 = vunpack.c.l.b16 %v4891
      %v5123 = vunpack.c.l.b16 %v4892
      %v5124 = vunpack.c.l.b16 %v4893
      %v5125 = vunpack.c.l.b16 %v4894
      %v5126 = vunpack.c.l.b16 %v4895
      %v5127 = vunpack.c.l.b16 %v4896
      %v5128 = vunpack.c.l.b16 %v4897
      %v5129 = vunpack.c.l.b16 %v4898
      %v5130 = vunpack.c.l.b16 %v4899
      %v5131 = vunpack.c.l.b16 %v4900
      %v5132 = vunpack.c.l.b16 %v4901
      %v5133 = vunpack.c.l.b16 %v4902
      %v5134 = vunpack.c.l.b16 %v4903
      %v5135 = vunpack.c.l.b16 %v4904
      %v5136 = vunpack.c.l.b16 %v4905
      %v5137 = vunpack.c.l.b16 %v4906
      %v5138 = vunpack.c.l.b16 %v4907
      %v5139 = vunpack.c.l.b16 %v4908
      %v5140 = vunpack.c.l.b16 %v4909
      %v5141 = vunpack.c.l.b16 %v4910
      %v5142 = vunpack.c.l.b16 %v4911
      %v5143 = vunpack.c.l.b16 %v4912
      %v5144 = vunpack.c.l.b16 %v4913
      %v5145 = vunpack.c.l.b16 %v4914
      %v5146 = vunpack.c.l.b16 %v4915
      %v5147 = vunpack.c.l.b16 %v4916
      %v5148 = vunpack.c.l.b16 %v4917
      %v5149 = vunpack.c.l.b16 %v4918
      %v5150 = vunpack.c.l.b16 %v4919
      %v5151 = vunpack.c.l.b16 %v4920
      %v5152 = vunpack.c.l.b16 %v4921
      %v5153 = vunpack.c.l.b16 %v4922
      %v5154 = vunpack.c.l.b16 %v4923
      %v5155 = vunpack.c.l.b16 %v4924
      %v5156 = vunpack.c.l.b16 %v4925
      %v5157 = vunpack.c.l.b16 %v4926
      %v5158 = vunpack.c.l.b16 %v4927
      %v5159 = vunpack.c.l.b16 %v4928
      %v5160 = vunpack.c.l.b16 %v4929
      %v5161 = vunpack.c.l.b16 %v4930
      %v5162 = vunpack.c.l.b16 %v4931
      %v5163 = vunpack.c.l.b16 %v4932
      %v5164 = vunpack.c.l.b16 %v4933
      %v5165 = vunpack.c.l.b16 %v4934
      %v5166 = vunpack.c.l.b16 %v4935
      %v5167 = vunpack.c.l.b16 %v4936
      %v5168 = vunpack.c.l.b16 %v4937
      %v5169 = vunpack.c.l.b16 %v4938
      %v5170 = vunpack.c.l.b16 %v4939
      %v5171 = vunpack.c.l.b16 %v4940
      %v5172 = vunpack.c.l.b16 %v4941
      %v5173 = vunpack.c.l.b16 %v4942
      %v5174 = vunpack.c.l.b16 %v4943
      %v5175 = vunpack.c.l.b16 %v4944
      %v5176 = vunpack.c.l.b16 %v4945
      %v5177 = vunpack.c.l.b16 %v4946
      %v5178 = vunpack.c.l.b16 %v4947
      %v5179 = vunpack.c.l.b16 %v4948
      %v5180 = vunpack.c.l.b16 %v4949
      %v5181 = vunpack.c.l.b16 %v4950
      %v5182 = vunpack.c.l.b16 %v4951
      %v5183 = vunpack.c.l.b16 %v4952
      %v5184 = vunpack.c.l.b16 %v4953
      %v5185 = vunpack.c.l.b16 %v4954
      %v5186 = vunpack.c.l.b16 %v4955
      %v5187 = vunpack.c.l.b16 %v4956
      %v5188 = vunpack.c.l.b16 %v4957
      %v5189 = vunpack.c.l.b16 %v4958
      %v5190 = vunpack.c.l.b16 %v4959
      %v5191 = vunpack.c.l.b16 %v4960
      %v5192 = vunpack.c.l.b16 %v4961
      %v5193 = vunpack.c.l.b16 %v4962
      %v5194 = vunpack.c.l.b16 %v4963
      %v5195 = vunpack.c.l.b16 %v4964
      %v5196 = vunpack.c.l.b16 %v4965
      %v5197 = vunpack.c.l.b16 %v4966
      %v5198 = vunpack.c.l.b16 %v4967
      %v5199 = vunpack.c.l.b16 %v4968
      %v5200 = vunpack.c.l.b16 %v4969
      %v5201 = vunpack.c.l.b16 %v4970
      %v5202 = vpack.c.b16 %v5091, %v5090
      %v5203 = vpack.c.b16 %v5093, %v5092
      %v5204 = vpack.c.b16 %v5095, %v5094
      %v5205 = vpack.c.b16 %v5097, %v5096
      %v5206 = vpack.c.b16 %v5099, %v5098
      %v5207 = vpack.c.b16 %v5101, %v5100
      %v5208 = vpack.c.b16 %v5103, %v5102
      %v5209 = vpack.c.b16 %v5105, %v5104
      %v5210 = vpack.c.b16 %v5107, %v5106
      %v5211 = vpack.c.b16 %v5109, %v5108
      %v5212 = vpack.c.b16 %v5111, %v5110
      %v5213 = vpack.c.b16 %v5113, %v5112
      %v5214 = vpack.c.b16 %v5115, %v5114
      %v5215 = vpack.c.b16 %v5117, %v5116
      %v5216 = vpack.c.b16 %v5119, %v5118
      %v5217 = vpack.c.b16 %v5121, %v5120
      %v5218 = vpack.c.b16 %v5123, %v5122
      %v5219 = vpack.c.b16 %v5125, %v5124
      %v5220 = vpack.c.b16 %v5127, %v5126
      %v5221 = vpack.c.b16 %v5129, %v5128
      %v5222 = vpack.c.b16 %v5131, %v5130
      %v5223 = vpack.c.b16 %v5133, %v5132
      %v5224 = vpack.c.b16 %v5135, %v5134
      %v5225 = vpack.c.b16 %v5137, %v5136
      %v5226 = vpack.c.b16 %v5139, %v5138
      %v5227 = vpack.c.b16 %v5141, %v5140
      %v5228 = vpack.c.b16 %v5143, %v5142
      %v5229 = vpack.c.b16 %v5145, %v5144
      %v5230 = vpack.c.b16 %v5147, %v5146
      %v5231 = vpack.c.b16 %v5149, %v5148
      %v5232 = vpack.c.b16 %v5151, %v5150
      %v5233 = vpack.c.b16 %v5153, %v5152
      %v5234 = vpack.c.b16 %v5155, %v5154
      %v5235 = vpack.c.b16 %v5157, %v5156
      %v5236 = vpack.c.b16 %v5159, %v5158
      %v5237 = vpack.c.b16 %v5161, %v5160
      %v5238 = vpack.c.b16 %v5163, %v5162
      %v5239 = vpack.c.b16 %v5165, %v5164
      %v5240 = vpack.c.b16 %v5167, %v5166
      %v5241 = vpack.c.b16 %v5169, %v5168
      %v5242 = vpack.c.b16 %v5171, %v5170
      %v5243 = vpack.c.b16 %v5173, %v5172
      %v5244 = vpack.c.b16 %v5175, %v5174
      %v5245 = vpack.c.b16 %v5177, %v5176
      %v5246 = vpack.c.b16 %v5179, %v5178
      %v5247 = vpack.c.b16 %v5181, %v5180
      %v5248 = vpack.c.b16 %v5183, %v5182
      %v5249 = vpack.c.b16 %v5185, %v5184
      %v5250 = vpack.c.b16 %v5187, %v5186
      %v5251 = vpack.c.b16 %v5189, %v5188
      %v5252 = vpack.c.b16 %v5191, %v5190
      %v5253 = vpack.c.b16 %v5193, %v5192
      %v5254 = vpack.c.b16 %v5195, %v5194
      %v5255 = vpack.c.b16 %v5197, %v5196
      %v5256 = vpack.c.b16 %v5199, %v5198
      %v5257 = vpack.c.b16 %v5201, %v5200
      %5314 = vmatprep.subr.bf16.mxu0 0
      %5315 = vmatpush1.bf16.msra.mxu0 %v5202
      %5316 = vmatprep.subr.bf16.mxu0 0
      %5317 = vmatpush1.bf16.msra.mxu0 %v5203
      %5318 = vmatprep.subr.bf16.mxu0 0
      %5319 = vmatpush1.bf16.msra.mxu0 %v5204
      %5320 = vmatprep.subr.bf16.mxu0 0
      %5321 = vmatpush1.bf16.msra.mxu0 %v5205
      %5322 = vmatprep.subr.bf16.mxu0 0
      %5323 = vmatpush1.bf16.msra.mxu0 %v5206
      %5324 = vmatprep.subr.bf16.mxu0 0
      %5325 = vmatpush1.bf16.msra.mxu0 %v5207
      %5326 = vmatprep.subr.bf16.mxu0 0
      %5327 = vmatpush1.bf16.msra.mxu0 %v5208
      %5328 = vmatprep.subr.bf16.mxu0 0
      %5329 = vmatpush1.bf16.msra.mxu0 %v5209
      %5330 = vmatprep.subr.bf16.mxu0 0
      %5331 = vmatpush1.bf16.msra.mxu0 %v5210
      %5332 = vmatprep.subr.bf16.mxu0 0
      %5333 = vmatpush1.bf16.msra.mxu0 %v5211
      %5334 = vmatprep.subr.bf16.mxu0 0
      %5335 = vmatpush1.bf16.msra.mxu0 %v5212
      %5336 = vmatprep.subr.bf16.mxu0 0
      %5337 = vmatpush1.bf16.msra.mxu0 %v5213
      %5338 = vmatprep.subr.bf16.mxu0 0
      %5339 = vmatpush1.bf16.msra.mxu0 %v5214
      %5340 = vmatprep.subr.bf16.mxu0 0
      %5341 = vmatpush1.bf16.msra.mxu0 %v5215
      %5342 = vmatprep.subr.bf16.mxu0 0
      %5343 = vmatpush1.bf16.msra.mxu0 %v5216
      %5344 = vmatprep.subr.bf16.mxu0 0
      %5345 = vmatpush1.bf16.msra.mxu0 %v5217
      %5346 = vmatprep.mubr.bf16.mxu0 %v4853
      %5347 = vmatmul.mubr.bf16.gmra.mrb[0].mxu0 %v4852
      %v5348 = vpop.f32.mrb[0].mxu0
      %v5349 = vadd.f32 %v4976, %v5348
      %v5350 = vpop.f32.mrb[0].mxu0
      %v5351 = vpop.f32.mrb[0].mxu0
      %v5352 = vadd.f32 %v4976, %v5351
      %v5353 = vpop.f32.mrb[0].mxu0
      %5354 = vdwg.mxu0
      %5355 = vmatprep.subr.bf16.mxu0 0
      %5356 = vmatpush1.bf16.msra.mxu0 %v5218
      %5357 = vmatprep.subr.bf16.mxu0 0
      %5358 = vmatpush1.bf16.msra.mxu0 %v5219
      %5359 = vmatprep.subr.bf16.mxu0 0
      %5360 = vmatpush1.bf16.msra.mxu0 %v5220
      %5361 = vmatprep.subr.bf16.mxu0 0
      %5362 = vmatpush1.bf16.msra.mxu0 %v5221
      %5363 = vmatprep.subr.bf16.mxu0 0
      %5364 = vmatpush1.bf16.msra.mxu0 %v5222
      %5365 = vmatprep.subr.bf16.mxu0 0
      %5366 = vmatpush1.bf16.msra.mxu0 %v5223
      %5367 = vmatprep.subr.bf16.mxu0 0
      %5368 = vmatpush1.bf16.msra.mxu0 %v5224
      %5369 = vmatprep.subr.bf16.mxu0 0
      %5370 = vmatpush1.bf16.msra.mxu0 %v5225
      %5371 = vmatprep.subr.bf16.mxu0 0
      %5372 = vmatpush1.bf16.msra.mxu0 %v5226
      %5373 = vmatprep.subr.bf16.mxu0 0
      %5374 = vmatpush1.bf16.msra.mxu0 %v5227
      %5375 = vmatprep.subr.bf16.mxu0 0
      %5376 = vmatpush1.bf16.msra.mxu0 %v5228
      %5377 = vmatprep.subr.bf16.mxu0 0
      %5378 = vmatpush1.bf16.msra.mxu0 %v5229
      %5379 = vmatprep.subr.bf16.mxu0 0
      %5380 = vmatpush1.bf16.msra.mxu0 %v5230
      %5381 = vmatprep.subr.bf16.mxu0 0
      %5382 = vmatpush1.bf16.msra.mxu0 %v5231
      %5383 = vmatprep.subr.bf16.mxu0 0
      %5384 = vmatpush1.bf16.msra.mxu0 %v5232
      %5385 = vmatprep.subr.bf16.mxu0 0
      %5386 = vmatpush1.bf16.msra.mxu0 %v5233
      %5387 = vmatprep.mubr.bf16.mxu0 %v4855
      %5388 = vmatmul.mubr.bf16.gmra.mrb[0].mxu0 %v4854
      %v5389 = vpop.f32.mrb[0].mxu0
      %v5390 = vadd.f32 %v5349, %v5389
      %v5391 = vpop.f32.mrb[0].mxu0
      %v5392 = vpop.f32.mrb[0].mxu0
      %v5393 = vadd.f32 %v5352, %v5392
      %v5394 = vpop.f32.mrb[0].mxu0
      %5395 = vdwg.mxu0
      %5396 = vmatprep.subr.bf16.mxu0 0
      %5397 = vmatpush1.bf16.msra.mxu0 %v5234
      %5398 = vmatprep.subr.bf16.mxu0 0
      %5399 = vmatpush1.bf16.msra.mxu0 %v5235
      %5400 = vmatprep.subr.bf16.mxu0 0
      %5401 = vmatpush1.bf16.msra.mxu0 %v5236
      %5402 = vmatprep.subr.bf16.mxu0 0
      %5403 = vmatpush1.bf16.msra.mxu0 %v5237
      %5404 = vmatprep.subr.bf16.mxu0 0
      %5405 = vmatpush1.bf16.msra.mxu0 %v5238
      %5406 = vmatprep.subr.bf16.mxu0 0
      %5407 = vmatpush1.bf16.msra.mxu0 %v5239
      %5408 = vmatprep.subr.bf16.mxu0 0
      %5409 = vmatpush1.bf16.msra.mxu0 %v5240
      %5410 = vmatprep.subr.bf16.mxu0 0
      %5411 = vmatpush1.bf16.msra.mxu0 %v5241
      %5412 = vmatprep.subr.bf16.mxu0 0
      %5413 = vmatpush1.bf16.msra.mxu0 %v5242
      %5414 = vmatprep.subr.bf16.mxu0 0
      %5415 = vmatpush1.bf16.msra.mxu0 %v5243
      %5416 = vmatprep.subr.bf16.mxu0 0
      %5417 = vmatpush1.bf16.msra.mxu0 %v5244
      %5418 = vmatprep.subr.bf16.mxu0 0
      %5419 = vmatpush1.bf16.msra.mxu0 %v5245
      %5420 = vmatprep.subr.bf16.mxu0 0
      %5421 = vmatpush1.bf16.msra.mxu0 %v5246
      %5422 = vmatprep.subr.bf16.mxu0 0
      %5423 = vmatpush1.bf16.msra.mxu0 %v5247
      %5424 = vmatprep.subr.bf16.mxu0 0
      %5425 = vmatpush1.bf16.msra.mxu0 %v5248
      %5426 = vmatprep.subr.bf16.mxu0 0
      %5427 = vmatpush1.bf16.msra.mxu0 %v5249
      %5428 = vmatprep.mubr.bf16.mxu0 %v4857
      %5429 = vmatmul.mubr.bf16.gmra.mrb[0].mxu0 %v4856
      %v5430 = vpop.f32.mrb[0].mxu0
      %v5431 = vadd.f32 %v5390, %v5430
      %v5432 = vpop.f32.mrb[0].mxu0
      %v5433 = vpop.f32.mrb[0].mxu0
      %v5434 = vadd.f32 %v5393, %v5433
      %v5435 = vpop.f32.mrb[0].mxu0
      %5436 = vdwg.mxu0
      %5437 = vmatprep.subr.bf16.mxu0 0
      %5438 = vmatpush1.bf16.msra.mxu0 %v5250
      %5439 = vmatprep.subr.bf16.mxu0 0
      %5440 = vmatpush1.bf16.msra.mxu0 %v5251
      %5441 = vmatprep.subr.bf16.mxu0 0
      %5442 = vmatpush1.bf16.msra.mxu0 %v5252
      %5443 = vmatprep.subr.bf16.mxu0 0
      %5444 = vmatpush1.bf16.msra.mxu0 %v5253
      %5445 = vmatprep.subr.bf16.mxu0 0
      %5446 = vmatpush1.bf16.msra.mxu0 %v5254
      %5447 = vmatprep.subr.bf16.mxu0 0
      %5448 = vmatpush1.bf16.msra.mxu0 %v5255
      %5449 = vmatprep.subr.bf16.mxu0 0
      %5450 = vmatpush1.bf16.msra.mxu0 %v5256
      %5451 = vmatprep.subr.bf16.mxu0 0
      %5452 = vmatpush1.bf16.msra.mxu0 %v5257
      %5453 = vmatprep.subr.bf16.mxu0 0
      %5454 = vmatpush1.bf16.msra.mxu0 0
      %5455 = vmatprep.subr.bf16.mxu0 0
      %5456 = vmatpush1.bf16.msra.mxu0 0
      %5457 = vmatprep.subr.bf16.mxu0 0
      %5458 = vmatpush1.bf16.msra.mxu0 0
      %5459 = vmatprep.subr.bf16.mxu0 0
      %5460 = vmatpush1.bf16.msra.mxu0 0
      %5461 = vmatprep.subr.bf16.mxu0 0
      %5462 = vmatpush1.bf16.msra.mxu0 0
      %5463 = vmatprep.subr.bf16.mxu0 0
      %5464 = vmatpush1.bf16.msra.mxu0 0
      %5465 = vmatprep.subr.bf16.mxu0 0
      %5466 = vmatpush1.bf16.msra.mxu0 0
      %5467 = vmatprep.subr.bf16.mxu0 0
      %5468 = vmatpush1.bf16.msra.mxu0 0
      %5469 = vmatprep.mubr.bf16.mxu0 0
      %5470 = vmatmul.mubr.bf16.gmra.mrb[0].mxu0 %v4858
      %v5471 = vpop.f32.mrb[0].mxu0
      %v5472 = vadd.f32 %v5431, %v5471
      %v5473 = vpop.f32.mrb[0].mxu0
      %v5474 = vpop.f32.mrb[0].mxu0
      %v5475 = vadd.f32 %v5434, %v5474
      %v5476 = vpop.f32.mrb[0].mxu0
      %5477 = vdwg.mxu0
      %v5478 = vmul.f32 %v5472, 0.5
      %v5479 = vmul.f32 %v5475, 0.5
      %v5480 = vmul.f32 %v5472, 0.044715
      %v5481 = vmul.f32 %v5475, 0.044715
      %v5482 = vmul.f32 %v5480, %v5472
      %v5483 = vmul.f32 %v5481, %v5475
      %v5484 = vmul.f32 %v5482, %v5472
      %v5485 = vmul.f32 %v5483, %v5475
      %v5486 = vadd.f32 %v5472, %v5484
      %v5487 = vadd.f32 %v5475, %v5485
      %v5488 = vmul.f32 %v5486, 0.7978846
      %v5489 = vmul.f32 %v5487, 0.7978846
      %v5490 = vtanh.pop %v5488
      %v5491 = vtanh.pop %v5489
      %v5492 = vadd.f32 %v5490, 1.0
      %v5493 = vadd.f32 %v5491, 1.0
      %v5494 = vmul.f32 %v5478, %v5492
      %v5495 = vmul.f32 %v5479, %v5493
      %5496 = vst [vmem:[%s635] sm:$0xff] %v5494
      %5497 = vst [vmem:[%s635 + $0x8] sm:$0xf] %v5495
      %p5498 = scmp.lt.s32.totalorder %s31, 1
      %s5499 = scalar_select %p5498, %s31, 1
      %s5500 = smul.addr %s5499, 2
      %s5501 = smul.addr %s5500, 8
      %s5502 = scalar_lea.vmem %s18, %s5501
      %p5503 = scmp.lt.s32.totalorder %s31, 1
      %s5504 = scalar_select %p5503, %s31, 1
      %s5505 = smul.addr %s5504, 2
      %s5506 = smul.addr %s5505, 8
      %s5507 = scalar_lea.vmem %s19, %s5506
      // Predicated region
      $region93: #{tpu_custom_call.1} parent=91 // pred_check
        %p5508 = pneg %p437
      $region94: #{tpu_custom_call.1} parent=91 // pred_check_branch
        %5510 = sbr.rel (%p5508) target = $region96
      $region95: #{tpu_custom_call.1} parent=91 // pred_region
        _
      $region96: #{tpu_custom_call.1} parent=91 // pred_fallthru
        _
      // Predicated region
      $region97: #{tpu_custom_call.1} parent=91 // pred_check
        %p5511 = pneg %p463
      $region98: #{tpu_custom_call.1} parent=91 // pred_check_branch
        %5513 = sbr.rel (%p5511) target = $region100
      $region99: #{tpu_custom_call.1} parent=91 // pred_region
        _
      $region100: #{tpu_custom_call.1} parent=91 // pred_fallthru
        _
    $region92: #{tpu_custom_call.1} parent=5 // pred_fallthru
      _
    %p5514 = scmp.le.s32.totalorder 2, %s26
    // Predicated region
    $region101: #{tpu_custom_call.1} parent=5 // pred_check
      %p5515 = pneg %p5514
    $region102: #{tpu_custom_call.1} parent=5 // pred_check_branch
      %5517 = sbr.rel (%p5515) target = $region104
    $region103: #{tpu_custom_call.1} parent=5 // pred_region
      %s5518 = ssub.s32 %s26, 2
      // Predicated region
      $region105: #{tpu_custom_call.1} parent=103 // pred_check
        %p5519 = pneg %p443
      $region106: #{tpu_custom_call.1} parent=103 // pred_check_branch
        %5521 = sbr.rel (%p5519) target = $region108
      $region107: #{tpu_custom_call.1} parent=103 // pred_region
        %p5522 = scmp.lt.s32.totalorder %s32, 1
        %s5523 = scalar_select %p5522, %s32, 1
        %s5524 = smul.addr %s5523, 2
        %s5525 = smul.addr %s5524, 8
        %s5526 = scalar_lea.vmem %s18, %s5525
      $region108: #{tpu_custom_call.1} parent=103 // pred_fallthru
        _
      // Predicated region
      $region109: #{tpu_custom_call.1} parent=103 // pred_check
        %p5527 = pneg %p469
      $region110: #{tpu_custom_call.1} parent=103 // pred_check_branch
        %5529 = sbr.rel (%p5527) target = $region112
      $region111: #{tpu_custom_call.1} parent=103 // pred_region
        %p5530 = scmp.lt.s32.totalorder %s32, 1
        %s5531 = scalar_select %p5530, %s32, 1
        %s5532 = smul.addr %s5531, 2
        %s5533 = smul.addr %s5532, 8
        %s5534 = scalar_lea.vmem %s19, %s5533
      $region112: #{tpu_custom_call.1} parent=103 // pred_fallthru
        _
    $region104: #{tpu_custom_call.1} parent=5 // pred_fallthru
      _
  $region6: #{tpu_custom_call.1} parent=0 // loop_footer
    %s30 = sadd.s32 1, %s26
  $region7: #{tpu_custom_call.1} parent=0 // loop_footer_branch
    %25 = sbr.rel target = $region3
  $region8: #{tpu_custom_call.1} parent=0 // loop_exit
    _

</llo_original>
